<compile_context>
chip_gen: v5e
topology: v5e:2x2
jax: 0.10.0
libtpu: 0.0.40
codegen_flags: <defaults>
</compile_context>

<pallas_src>
import functools

import jax
import jax.numpy as jnp
from jax.experimental import pallas as pl
from jax.experimental.pallas import tpu as pltpu

_EPS = 1e-5
_VMEM_LIMIT = 48 * 1024 * 1024  # <= v7x's 64 MiB per-TensorCore VMEM


# ------------------------------- Pallas kernels -------------------------------

def _conv3x3_kernel(x_ref, w_ref, y_ref, s_ref, *, th):
    """Fused 3x3 conv (im2col built in VMEM) + partial BatchNorm statistics.

    x_ref : (1, H+2, W+2, Cin) bf16  whole padded image of one batch element
                                     (row-tile axis revisits the same block, so it
                                     is DMA'd once per batch element).
    w_ref : (9*Cin, Cout)      bf16  HWIO weights flattened in (kh, kw, cin) order.
    y_ref : (1, 1, th*W, Cout) f32   pre-BN conv output for this row tile.
    s_ref : (1, 1, 2, Cout)    f32   per-tile [sum ; sum-of-squares] over rows.
    """
    _, _, w_pad, cin = x_ref.shape
    w_out = w_pad - 2
    r0 = pl.multiple_of(pl.program_id(1) * th, th)

    # In-VMEM im2col: 9 shifted (th, W, Cin) windows -> (th*W, 9*Cin).
    taps = []
    for kh in range(3):
        slab = x_ref[0, pl.ds(r0 + kh, th), :, :]           # (th, W+2, Cin)
        for kw in range(3):
            taps.append(slab[:, kw:kw + w_out, :])          # (th, W, Cin)
    patches = jnp.concatenate(taps, axis=-1).reshape(th * w_out, 9 * cin)

    y = jnp.dot(patches, w_ref[...], preferred_element_type=jnp.float32)
    y_ref[0, 0] = y                                          # (th*W, Cout) f32

    ssum = jnp.sum(y, axis=0, keepdims=True)                 # (1, Cout)
    ssq = jnp.sum(y * y, axis=0, keepdims=True)              # (1, Cout)
    s_ref[0, 0] = jnp.concatenate([ssum, ssq], axis=0)       # (2, Cout)


def _bn_relu_kernel(y_ref, scale_ref, shift_ref, o_ref):
    # o = max(y * scale + shift, 0); gamma/mean/var already folded into scale/shift.
    o_ref[...] = jnp.maximum(
        y_ref[...] * scale_ref[...] + shift_ref[...], 0.0).astype(o_ref.dtype)


# --------------------------------- tiling helpers ------------------------------

def _h_tile(h, w, target_rows=512):
    """Largest divisor of H whose row-tile has <= ~512 im2col rows (MXU-friendly)."""
    for th in range(h, 0, -1):
        if h % th == 0 and th * w <= target_rows:
            return th
    return 1


def _row_tile(m, target=256):
    if m <= target:
        return m
    for t in range(target, 7, -8):
        if m % t == 0:
            return t
    return m


# --------------------------------- layer wrapper -------------------------------

def conv3x3_bn_relu(x, w, conv_bias, gamma, beta, *, out_dtype):
    """Conv2d(3x3, pad=1) -> BatchNorm2d (training-mode batch stats) -> ReLU.

    `conv_bias` is unused on purpose: train-mode BN cancels a per-channel constant.
    """
    del conv_bias
    n, h, wdt, cin = x.shape
    cout = w.shape[-1]
    th = _h_tile(h, wdt)
    num_t = h // th
    m = n * h * wdt

    xp = jnp.pad(x, ((0, 0), (1, 1), (1, 1), (0, 0))).astype(jnp.bfloat16)
    wf = w.reshape(9 * cin, cout).astype(jnp.bfloat16)

    # Pass 1: conv matmul per (batch, row-tile) + per-tile sum / sum-of-squares.
    y, stats = pl.pallas_call(
        functools.partial(_conv3x3_kernel, th=th),
        grid=(n, num_t),
        in_specs=[
            pl.BlockSpec((1, h + 2, wdt + 2, cin), lambda i, t: (i, 0, 0, 0)),
            pl.BlockSpec((9 * cin, cout), lambda i, t: (0, 0)),
        ],
        out_specs=[
            pl.BlockSpec((1, 1, th * wdt, cout), lambda i, t: (i, t, 0, 0)),
            pl.BlockSpec((1, 1, 2, cout), lambda i, t: (i, t, 0, 0)),
        ],
        out_shape=[
            jax.ShapeDtypeStruct((n, num_t, th * wdt, cout), jnp.float32),
            jax.ShapeDtypeStruct((n, num_t, 2, cout), jnp.float32),
        ],
        compiler_params=pltpu.CompilerParams(
            dimension_semantics=("parallel", "parallel"),
            vmem_limit_bytes=_VMEM_LIMIT),
        cost_estimate=pl.CostEstimate(
            flops=2 * m * 9 * cin * cout,
            transcendentals=0,
            bytes_accessed=int(xp.size) * 2 + int(wf.size) * 2 + m * cout * 4),
    )(xp, wf)

    # Global BatchNorm statistics over N*H*W (training mode, biased variance);
    # fold gamma into the rsqrt -> single fused multiply-add in pass 2.
    ssum = jnp.sum(stats[:, :, 0, :], axis=(0, 1))
    ssq = jnp.sum(stats[:, :, 1, :], axis=(0, 1))
    mean = ssum / m
    var = jnp.maximum(ssq / m - mean * mean, 0.0)
    scale = gamma * jax.lax.rsqrt(var + _EPS)
    shift = beta - mean * scale

    # Pass 2: tiled normalize + ReLU (lane dim = Cout, row tiles pipelined).
    tm = _row_tile(m)
    out = pl.pallas_call(
        _bn_relu_kernel,
        grid=(m // tm,),
        in_specs=[
            pl.BlockSpec((tm, cout), lambda i: (i, 0)),
            pl.BlockSpec((1, cout), lambda i: (0, 0)),
            pl.BlockSpec((1, cout), lambda i: (0, 0)),
        ],
        out_specs=pl.BlockSpec((tm, cout), lambda i: (i, 0)),
        out_shape=jax.ShapeDtypeStruct((m, cout), out_dtype),
        compiler_params=pltpu.CompilerParams(
            dimension_semantics=("parallel",),
            vmem_limit_bytes=_VMEM_LIMIT),
    )(y.reshape(m, cout), scale.reshape(1, cout), shift.reshape(1, cout))
    return out.reshape(n, h, wdt, cout)


def double_conv_apply(x_nhwc, params):
    p1, p2 = params
    # Intermediate activation stays bf16 (halves HBM traffic, feeds the bf16 MXU).
    a1 = conv3x3_bn_relu(x_nhwc, *p1, out_dtype=jnp.bfloat16)
    a2 = conv3x3_bn_relu(a1, *p2, out_dtype=jnp.float32)
    return a2


def inconv_forward(x_nchw, params):
    x = jnp.transpose(x_nchw, (0, 2, 3, 1))        # NCHW -> NHWC (channels on lanes)
    y = double_conv_apply(x, params)
    return jnp.transpose(y, (0, 3, 1, 2))          # NHWC -> NCHW


# ---------------------------------- parameters ---------------------------------

def _init_conv(key, cin, cout, k=3):
    kw_, kb_ = jax.random.split(key)
    w = jax.random.normal(kw_, (k, k, cin, cout), jnp.float32) / jnp.sqrt(k * k * cin)
    b = 0.1 * jax.random.normal(kb_, (cout,), jnp.float32)   # inert under train-BN
    return w, b


def _init_bn(key, c):
    kg, kb_ = jax.random.split(key)
    g = 1.0 + 0.1 * jax.random.normal(kg, (c,), jnp.float32)
    b = 0.1 * jax.random.normal(kb_, (c,), jnp.float32)
    return g, b


def init_inconv_params(key, in_ch, out_ch):
    k1, k2, k3, k4 = jax.random.split(key, 4)
    w1, cb1 = _init_conv(k1, in_ch, out_ch)
    g1, b1 = _init_bn(k2, out_ch)
    w2, cb2 = _init_conv(k3, out_ch, out_ch)
    g2, b2 = _init_bn(k4, out_ch)
    return ((w1, cb1, g1, b1), (w2, cb2, g2, b2))


# ---------------------------- pure-JAX f32 reference ----------------------------

def _reference_forward(x_nchw, params):
    """(conv -> train-mode BN -> ReLU) x 2 in f32 (conv bias omitted: BN cancels it)."""
    x = jnp.transpose(x_nchw, (0, 2, 3, 1))
    for (w, _cb, g, b) in params:
        y = jax.lax.conv_general_dilated(
            x, w, window_strides=(1, 1), padding="SAME",
            dimension_numbers=("NHWC", "HWIO", "NHWC"))
        mean = jnp.mean(y, axis=(0, 1, 2))
        var = jnp.mean(jnp.square(y - mean), axis=(0, 1, 2))
        x = jnp.maximum((y - mean) * jax.lax.rsqrt(var + _EPS) * g + b, 0.0)
    return jnp.transpose(x, (0, 3, 1, 2))


# ------------------------------------- main -------------------------------------

if __name__ == "__main__":
    key = jax.random.PRNGKey(0)
    kx, kp = jax.random.split(key)
    in_ch, out_ch = 4, 32
    x = jax.random.normal(kx, (2, in_ch, 16, 16), jnp.float32)   # NCHW like PyTorch
    params = init_inconv_params(kp, in_ch, out_ch)

    fwd = jax.jit(inconv_forward)
    y = jax.block_until_ready(fwd(x, params))

    assert y.shape == (2, out_ch, 16, 16), y.shape
    assert bool(jnp.all(jnp.isfinite(y)))

    # Correctness vs. pure-JAX f32 reference (kernel matmuls in bf16, BN in f32).
    y_ref = _reference_forward(x, params)
    max_err = float(jnp.max(jnp.abs(y - y_ref)))
    assert max_err < 0.15, f"max abs error vs reference: {max_err}"

    print("KERNEL_OK")
</pallas_src>

<mosaic_0001>
module attributes {stable_mosaic.version = 11 : i64} {
  func.func @_conv3x3_kernel(%arg0: i32, %arg1: i32, %arg2: memref<1x18x18x4xbf16, #tpu.memory_space<vmem>>, %arg3: memref<36x32xbf16, #tpu.memory_space<vmem>>, %arg4: memref<1x1x256x32xf32, #tpu.memory_space<vmem>>, %arg5: memref<1x1x2x32xf32, #tpu.memory_space<vmem>>) attributes {dimension_semantics = [#tpu.dimension_semantics<parallel>, #tpu.dimension_semantics<parallel>], iteration_bounds = array<i64: 2, 1>, scalar_prefetch = 0 : i64, scratch_operands = 0 : i64, tpu.core_type = #tpu.core_type<tc>, window_params = [{transform_indices = @transform_0, window_bounds = array<i64: 1, 18, 18, 4>}, {pipeline_mode = #tpu.pipeline_mode<synchronous>, transform_indices = @transform_1, window_bounds = array<i64: 36, 32>}, {transform_indices = @transform_2, window_bounds = array<i64: 1, 1, 256, 32>}, {transform_indices = @transform_3, window_bounds = array<i64: 1, 1, 2, 32>}]} {
    %c16_i32 = arith.constant 16 : i32
    %0 = arith.muli %arg1, %c16_i32 : i32
    %1 = tpu.assume_multiple %0, 16 : i32
    %c0_i32 = arith.constant 0 : i32
    %2 = arith.addi %1, %c0_i32 : i32
    %c0 = arith.constant 0 : index
    %3 = arith.index_cast %2 : i32 to index
    %c0_0 = arith.constant 0 : index
    %c0_1 = arith.constant 0 : index
    %4 = vector.load %arg2[%c0, %3, %c0_0, %c0_1] : memref<1x18x18x4xbf16, #tpu.memory_space<vmem>>, vector<1x16x18x4xbf16>
    %5 = vector.shape_cast %4 : vector<1x16x18x4xbf16> to vector<16x18x4xbf16>
    %6 = vector.extract_strided_slice %5 {offsets = [0, 0, 0], sizes = [16, 16, 4], strides = [1, 1, 1]} : vector<16x18x4xbf16> to vector<16x16x4xbf16>
    %7 = vector.extract_strided_slice %5 {offsets = [0, 1, 0], sizes = [16, 16, 4], strides = [1, 1, 1]} : vector<16x18x4xbf16> to vector<16x16x4xbf16>
    %8 = vector.extract_strided_slice %5 {offsets = [0, 2, 0], sizes = [16, 16, 4], strides = [1, 1, 1]} : vector<16x18x4xbf16> to vector<16x16x4xbf16>
    %c1_i32 = arith.constant 1 : i32
    %9 = arith.addi %1, %c1_i32 : i32
    %c0_2 = arith.constant 0 : index
    %10 = arith.index_cast %9 : i32 to index
    %c0_3 = arith.constant 0 : index
    %c0_4 = arith.constant 0 : index
    %11 = vector.load %arg2[%c0_2, %10, %c0_3, %c0_4] : memref<1x18x18x4xbf16, #tpu.memory_space<vmem>>, vector<1x16x18x4xbf16>
    %12 = vector.shape_cast %11 : vector<1x16x18x4xbf16> to vector<16x18x4xbf16>
    %13 = vector.extract_strided_slice %12 {offsets = [0, 0, 0], sizes = [16, 16, 4], strides = [1, 1, 1]} : vector<16x18x4xbf16> to vector<16x16x4xbf16>
    %14 = vector.extract_strided_slice %12 {offsets = [0, 1, 0], sizes = [16, 16, 4], strides = [1, 1, 1]} : vector<16x18x4xbf16> to vector<16x16x4xbf16>
    %15 = vector.extract_strided_slice %12 {offsets = [0, 2, 0], sizes = [16, 16, 4], strides = [1, 1, 1]} : vector<16x18x4xbf16> to vector<16x16x4xbf16>
    %c2_i32 = arith.constant 2 : i32
    %16 = arith.addi %1, %c2_i32 : i32
    %c0_5 = arith.constant 0 : index
    %17 = arith.index_cast %16 : i32 to index
    %c0_6 = arith.constant 0 : index
    %c0_7 = arith.constant 0 : index
    %18 = vector.load %arg2[%c0_5, %17, %c0_6, %c0_7] : memref<1x18x18x4xbf16, #tpu.memory_space<vmem>>, vector<1x16x18x4xbf16>
    %19 = vector.shape_cast %18 : vector<1x16x18x4xbf16> to vector<16x18x4xbf16>
    %20 = vector.extract_strided_slice %19 {offsets = [0, 0, 0], sizes = [16, 16, 4], strides = [1, 1, 1]} : vector<16x18x4xbf16> to vector<16x16x4xbf16>
    %21 = vector.extract_strided_slice %19 {offsets = [0, 1, 0], sizes = [16, 16, 4], strides = [1, 1, 1]} : vector<16x18x4xbf16> to vector<16x16x4xbf16>
    %22 = vector.extract_strided_slice %19 {offsets = [0, 2, 0], sizes = [16, 16, 4], strides = [1, 1, 1]} : vector<16x18x4xbf16> to vector<16x16x4xbf16>
    %23 = tpu.concatenate %6, %7, %8, %13, %14, %15, %20, %21, %22 in 2 : vector<16x16x4xbf16>, vector<16x16x4xbf16>, vector<16x16x4xbf16>, vector<16x16x4xbf16>, vector<16x16x4xbf16>, vector<16x16x4xbf16>, vector<16x16x4xbf16>, vector<16x16x4xbf16>, vector<16x16x4xbf16> -> vector<16x16x36xbf16>
    %24 = vector.shape_cast %23 : vector<16x16x36xbf16> to vector<256x36xbf16>
    %c0_8 = arith.constant 0 : index
    %c0_9 = arith.constant 0 : index
    %25 = vector.load %arg3[%c0_8, %c0_9] : memref<36x32xbf16, #tpu.memory_space<vmem>>, vector<36x32xbf16>
    %cst = arith.constant dense<0.000000e+00> : vector<256x32xf32>
    %26 = tpu.matmul %24, %25, %cst {dimension_numbers = #tpu.dot_dimension_numbers<[1], [0], [0], [1], [0, 0, 1, 1], [], []>} : vector<256x36xbf16>, vector<36x32xbf16>, vector<256x32xf32> -> vector<256x32xf32>
    %c0_10 = arith.constant 0 : index
    %c0_11 = arith.constant 0 : index
    %c0_12 = arith.constant 0 : index
    %c0_13 = arith.constant 0 : index
    %27 = vector.load %arg4[%c0_10, %c0_11, %c0_12, %c0_13] : memref<1x1x256x32xf32, #tpu.memory_space<vmem>>, vector<1x1x256x32xf32>
    %28 = vector.shape_cast %27 : vector<1x1x256x32xf32> to vector<256x32xf32>
    %29 = vector.shape_cast %26 : vector<256x32xf32> to vector<1x1x256x32xf32>
    tpu.vector_store %arg4[%c0_10, %c0_11, %c0_12, %c0_13], %29 {strides = array<i32>} : memref<1x1x256x32xf32, #tpu.memory_space<vmem>>, vector<1x1x256x32xf32>,
    %cst_14 = arith.constant dense<0.000000e+00> : vector<32xf32>
    %30 = vector.multi_reduction <add>, %26, %cst_14 [0] : vector<256x32xf32> to vector<32xf32>
    %31 = vector.shape_cast %30 : vector<32xf32> to vector<1x32xf32>
    %32 = arith.mulf %26, %26 : vector<256x32xf32>
    %cst_15 = arith.constant dense<0.000000e+00> : vector<32xf32>
    %33 = vector.multi_reduction <add>, %32, %cst_15 [0] : vector<256x32xf32> to vector<32xf32>
    %34 = vector.shape_cast %33 : vector<32xf32> to vector<1x32xf32>
    %35 = tpu.concatenate %31, %34 in 0 : vector<1x32xf32>, vector<1x32xf32> -> vector<2x32xf32>
    %c0_16 = arith.constant 0 : index
    %c0_17 = arith.constant 0 : index
    %c0_18 = arith.constant 0 : index
    %c0_19 = arith.constant 0 : index
    %36 = vector.load %arg5[%c0_16, %c0_17, %c0_18, %c0_19] : memref<1x1x2x32xf32, #tpu.memory_space<vmem>>, vector<1x1x2x32xf32>
    %37 = vector.shape_cast %36 : vector<1x1x2x32xf32> to vector<2x32xf32>
    %38 = vector.shape_cast %35 : vector<2x32xf32> to vector<1x1x2x32xf32>
    tpu.vector_store %arg5[%c0_16, %c0_17, %c0_18, %c0_19], %38 {strides = array<i32>} : memref<1x1x2x32xf32, #tpu.memory_space<vmem>>, vector<1x1x2x32xf32>,
    return
  }
  func.func @transform_0(%arg0: i32, %arg1: i32) -> (i32, i32, i32, i32) {
    %c0_i32 = arith.constant 0 : i32
    %c0_i32_0 = arith.constant 0 : i32
    %c0_i32_1 = arith.constant 0 : i32
    %c0_i32_2 = arith.constant 0 : i32
    return %arg0, %c0_i32, %c0_i32_0, %c0_i32_1 : i32, i32, i32, i32
  }
  func.func @transform_1(%arg0: i32, %arg1: i32) -> (i32, i32) {
    %c0_i32 = arith.constant 0 : i32
    %c0_i32_0 = arith.constant 0 : i32
    %c0_i32_1 = arith.constant 0 : i32
    return %c0_i32, %c0_i32_0 : i32, i32
  }
  func.func @transform_2(%arg0: i32, %arg1: i32) -> (i32, i32, i32, i32) {
    %c0_i32 = arith.constant 0 : i32
    %c0_i32_0 = arith.constant 0 : i32
    %c0_i32_1 = arith.constant 0 : i32
    return %arg0, %arg1, %c0_i32, %c0_i32_0 : i32, i32, i32, i32
  }
  func.func @transform_3(%arg0: i32, %arg1: i32) -> (i32, i32, i32, i32) {
    %c0_i32 = arith.constant 0 : i32
    %c0_i32_0 = arith.constant 0 : i32
    %c0_i32_1 = arith.constant 0 : i32
    return %arg0, %arg1, %c0_i32, %c0_i32_0 : i32, i32, i32, i32
  }
}

module attributes {stable_mosaic.version = 11 : i64} {
  func.func @_bn_relu_kernel(%arg0: i32, %arg1: memref<256x32xf32, #tpu.memory_space<vmem>>, %arg2: memref<1x32xf32, #tpu.memory_space<vmem>>, %arg3: memref<1x32xf32, #tpu.memory_space<vmem>>, %arg4: memref<256x32xbf16, #tpu.memory_space<vmem>>) attributes {dimension_semantics = [#tpu.dimension_semantics<parallel>], iteration_bounds = array<i64: 2>, scalar_prefetch = 0 : i64, scratch_operands = 0 : i64, tpu.core_type = #tpu.core_type<tc>, window_params = [{transform_indices = @transform_0, window_bounds = array<i64: 256, 32>}, {pipeline_mode = #tpu.pipeline_mode<synchronous>, transform_indices = @transform_1, window_bounds = array<i64: 1, 32>}, {pipeline_mode = #tpu.pipeline_mode<synchronous>, transform_indices = @transform_2, window_bounds = array<i64: 1, 32>}, {transform_indices = @transform_3, window_bounds = array<i64: 256, 32>}]} {
    %c0 = arith.constant 0 : index
    %c0_0 = arith.constant 0 : index
    %0 = vector.load %arg1[%c0, %c0_0] : memref<256x32xf32, #tpu.memory_space<vmem>>, vector<256x32xf32>
    %c0_1 = arith.constant 0 : index
    %c0_2 = arith.constant 0 : index
    %1 = vector.load %arg2[%c0_1, %c0_2] : memref<1x32xf32, #tpu.memory_space<vmem>>, vector<1x32xf32>
    %2 = vector.broadcast %1 : vector<1x32xf32> to vector<256x32xf32>
    %3 = arith.mulf %0, %2 : vector<256x32xf32>
    %c0_3 = arith.constant 0 : index
    %c0_4 = arith.constant 0 : index
    %4 = vector.load %arg3[%c0_3, %c0_4] : memref<1x32xf32, #tpu.memory_space<vmem>>, vector<1x32xf32>
    %5 = vector.broadcast %4 : vector<1x32xf32> to vector<256x32xf32>
    %6 = arith.addf %3, %5 : vector<256x32xf32>
    %cst = arith.constant 0.000000e+00 : f32
    %7 = vector.broadcast %cst : f32 to vector<256x32xf32>
    %8 = arith.maximumf %6, %7 : vector<256x32xf32>
    %9 = arith.truncf %8 : vector<256x32xf32> to vector<256x32xbf16>
    %c0_5 = arith.constant 0 : index
    %c0_6 = arith.constant 0 : index
    %10 = vector.load %arg4[%c0_5, %c0_6] : memref<256x32xbf16, #tpu.memory_space<vmem>>, vector<256x32xbf16>
    tpu.vector_store %arg4[%c0_5, %c0_6], %9 {strides = array<i32>} : memref<256x32xbf16, #tpu.memory_space<vmem>>, vector<256x32xbf16>,
    return
  }
  func.func @transform_0(%arg0: i32) -> (i32, i32) {
    %c0_i32 = arith.constant 0 : i32
    %c0_i32_0 = arith.constant 0 : i32
    return %arg0, %c0_i32 : i32, i32
  }
  func.func @transform_1(%arg0: i32) -> (i32, i32) {
    %c0_i32 = arith.constant 0 : i32
    %c0_i32_0 = arith.constant 0 : i32
    %c0_i32_1 = arith.constant 0 : i32
    return %c0_i32, %c0_i32_0 : i32, i32
  }
  func.func @transform_2(%arg0: i32) -> (i32, i32) {
    %c0_i32 = arith.constant 0 : i32
    %c0_i32_0 = arith.constant 0 : i32
    %c0_i32_1 = arith.constant 0 : i32
    return %c0_i32, %c0_i32_0 : i32, i32
  }
  func.func @transform_3(%arg0: i32) -> (i32, i32) {
    %c0_i32 = arith.constant 0 : i32
    %c0_i32_0 = arith.constant 0 : i32
    return %arg0, %c0_i32 : i32, i32
  }
}

module attributes {stable_mosaic.version = 11 : i64} {
  func.func @_conv3x3_kernel(%arg0: i32, %arg1: i32, %arg2: memref<1x18x18x32xbf16, #tpu.memory_space<vmem>>, %arg3: memref<288x32xbf16, #tpu.memory_space<vmem>>, %arg4: memref<1x1x256x32xf32, #tpu.memory_space<vmem>>, %arg5: memref<1x1x2x32xf32, #tpu.memory_space<vmem>>) attributes {dimension_semantics = [#tpu.dimension_semantics<parallel>, #tpu.dimension_semantics<parallel>], iteration_bounds = array<i64: 2, 1>, scalar_prefetch = 0 : i64, scratch_operands = 0 : i64, tpu.core_type = #tpu.core_type<tc>, window_params = [{transform_indices = @transform_0, window_bounds = array<i64: 1, 18, 18, 32>}, {pipeline_mode = #tpu.pipeline_mode<synchronous>, transform_indices = @transform_1, window_bounds = array<i64: 288, 32>}, {transform_indices = @transform_2, window_bounds = array<i64: 1, 1, 256, 32>}, {transform_indices = @transform_3, window_bounds = array<i64: 1, 1, 2, 32>}]} {
    %c16_i32 = arith.constant 16 : i32
    %0 = arith.muli %arg1, %c16_i32 : i32
    %1 = tpu.assume_multiple %0, 16 : i32
    %c0_i32 = arith.constant 0 : i32
    %2 = arith.addi %1, %c0_i32 : i32
    %c0 = arith.constant 0 : index
    %3 = arith.index_cast %2 : i32 to index
    %c0_0 = arith.constant 0 : index
    %c0_1 = arith.constant 0 : index
    %4 = vector.load %arg2[%c0, %3, %c0_0, %c0_1] : memref<1x18x18x32xbf16, #tpu.memory_space<vmem>>, vector<1x16x18x32xbf16>
    %5 = vector.shape_cast %4 : vector<1x16x18x32xbf16> to vector<16x18x32xbf16>
    %6 = vector.extract_strided_slice %5 {offsets = [0, 0, 0], sizes = [16, 16, 32], strides = [1, 1, 1]} : vector<16x18x32xbf16> to vector<16x16x32xbf16>
    %7 = vector.extract_strided_slice %5 {offsets = [0, 1, 0], sizes = [16, 16, 32], strides = [1, 1, 1]} : vector<16x18x32xbf16> to vector<16x16x32xbf16>
    %8 = vector.extract_strided_slice %5 {offsets = [0, 2, 0], sizes = [16, 16, 32], strides = [1, 1, 1]} : vector<16x18x32xbf16> to vector<16x16x32xbf16>
    %c1_i32 = arith.constant 1 : i32
    %9 = arith.addi %1, %c1_i32 : i32
    %c0_2 = arith.constant 0 : index
    %10 = arith.index_cast %9 : i32 to index
    %c0_3 = arith.constant 0 : index
    %c0_4 = arith.constant 0 : index
    %11 = vector.load %arg2[%c0_2, %10, %c0_3, %c0_4] : memref<1x18x18x32xbf16, #tpu.memory_space<vmem>>, vector<1x16x18x32xbf16>
    %12 = vector.shape_cast %11 : vector<1x16x18x32xbf16> to vector<16x18x32xbf16>
    %13 = vector.extract_strided_slice %12 {offsets = [0, 0, 0], sizes = [16, 16, 32], strides = [1, 1, 1]} : vector<16x18x32xbf16> to vector<16x16x32xbf16>
    %14 = vector.extract_strided_slice %12 {offsets = [0, 1, 0], sizes = [16, 16, 32], strides = [1, 1, 1]} : vector<16x18x32xbf16> to vector<16x16x32xbf16>
    %15 = vector.extract_strided_slice %12 {offsets = [0, 2, 0], sizes = [16, 16, 32], strides = [1, 1, 1]} : vector<16x18x32xbf16> to vector<16x16x32xbf16>
    %c2_i32 = arith.constant 2 : i32
    %16 = arith.addi %1, %c2_i32 : i32
    %c0_5 = arith.constant 0 : index
    %17 = arith.index_cast %16 : i32 to index
    %c0_6 = arith.constant 0 : index
    %c0_7 = arith.constant 0 : index
    %18 = vector.load %arg2[%c0_5, %17, %c0_6, %c0_7] : memref<1x18x18x32xbf16, #tpu.memory_space<vmem>>, vector<1x16x18x32xbf16>
    %19 = vector.shape_cast %18 : vector<1x16x18x32xbf16> to vector<16x18x32xbf16>
    %20 = vector.extract_strided_slice %19 {offsets = [0, 0, 0], sizes = [16, 16, 32], strides = [1, 1, 1]} : vector<16x18x32xbf16> to vector<16x16x32xbf16>
    %21 = vector.extract_strided_slice %19 {offsets = [0, 1, 0], sizes = [16, 16, 32], strides = [1, 1, 1]} : vector<16x18x32xbf16> to vector<16x16x32xbf16>
    %22 = vector.extract_strided_slice %19 {offsets = [0, 2, 0], sizes = [16, 16, 32], strides = [1, 1, 1]} : vector<16x18x32xbf16> to vector<16x16x32xbf16>
    %23 = tpu.concatenate %6, %7, %8, %13, %14, %15, %20, %21, %22 in 2 : vector<16x16x32xbf16>, vector<16x16x32xbf16>, vector<16x16x32xbf16>, vector<16x16x32xbf16>, vector<16x16x32xbf16>, vector<16x16x32xbf16>, vector<16x16x32xbf16>, vector<16x16x32xbf16>, vector<16x16x32xbf16> -> vector<16x16x288xbf16>
    %24 = vector.shape_cast %23 : vector<16x16x288xbf16> to vector<256x288xbf16>
    %c0_8 = arith.constant 0 : index
    %c0_9 = arith.constant 0 : index
    %25 = vector.load %arg3[%c0_8, %c0_9] : memref<288x32xbf16, #tpu.memory_space<vmem>>, vector<288x32xbf16>
    %cst = arith.constant dense<0.000000e+00> : vector<256x32xf32>
    %26 = tpu.matmul %24, %25, %cst {dimension_numbers = #tpu.dot_dimension_numbers<[1], [0], [0], [1], [0, 0, 1, 1], [], []>} : vector<256x288xbf16>, vector<288x32xbf16>, vector<256x32xf32> -> vector<256x32xf32>
    %c0_10 = arith.constant 0 : index
    %c0_11 = arith.constant 0 : index
    %c0_12 = arith.constant 0 : index
    %c0_13 = arith.constant 0 : index
    %27 = vector.load %arg4[%c0_10, %c0_11, %c0_12, %c0_13] : memref<1x1x256x32xf32, #tpu.memory_space<vmem>>, vector<1x1x256x32xf32>
    %28 = vector.shape_cast %27 : vector<1x1x256x32xf32> to vector<256x32xf32>
    %29 = vector.shape_cast %26 : vector<256x32xf32> to vector<1x1x256x32xf32>
    tpu.vector_store %arg4[%c0_10, %c0_11, %c0_12, %c0_13], %29 {strides = array<i32>} : memref<1x1x256x32xf32, #tpu.memory_space<vmem>>, vector<1x1x256x32xf32>,
    %cst_14 = arith.constant dense<0.000000e+00> : vector<32xf32>
    %30 = vector.multi_reduction <add>, %26, %cst_14 [0] : vector<256x32xf32> to vector<32xf32>
    %31 = vector.shape_cast %30 : vector<32xf32> to vector<1x32xf32>
    %32 = arith.mulf %26, %26 : vector<256x32xf32>
    %cst_15 = arith.constant dense<0.000000e+00> : vector<32xf32>
    %33 = vector.multi_reduction <add>, %32, %cst_15 [0] : vector<256x32xf32> to vector<32xf32>
    %34 = vector.shape_cast %33 : vector<32xf32> to vector<1x32xf32>
    %35 = tpu.concatenate %31, %34 in 0 : vector<1x32xf32>, vector<1x32xf32> -> vector<2x32xf32>
    %c0_16 = arith.constant 0 : index
    %c0_17 = arith.constant 0 : index
    %c0_18 = arith.constant 0 : index
    %c0_19 = arith.constant 0 : index
    %36 = vector.load %arg5[%c0_16, %c0_17, %c0_18, %c0_19] : memref<1x1x2x32xf32, #tpu.memory_space<vmem>>, vector<1x1x2x32xf32>
    %37 = vector.shape_cast %36 : vector<1x1x2x32xf32> to vector<2x32xf32>
    %38 = vector.shape_cast %35 : vector<2x32xf32> to vector<1x1x2x32xf32>
    tpu.vector_store %arg5[%c0_16, %c0_17, %c0_18, %c0_19], %38 {strides = array<i32>} : memref<1x1x2x32xf32, #tpu.memory_space<vmem>>, vector<1x1x2x32xf32>,
    return
  }
  func.func @transform_0(%arg0: i32, %arg1: i32) -> (i32, i32, i32, i32) {
    %c0_i32 = arith.constant 0 : i32
    %c0_i32_0 = arith.constant 0 : i32
    %c0_i32_1 = arith.constant 0 : i32
    %c0_i32_2 = arith.constant 0 : i32
    return %arg0, %c0_i32, %c0_i32_0, %c0_i32_1 : i32, i32, i32, i32
  }
  func.func @transform_1(%arg0: i32, %arg1: i32) -> (i32, i32) {
    %c0_i32 = arith.constant 0 : i32
    %c0_i32_0 = arith.constant 0 : i32
    %c0_i32_1 = arith.constant 0 : i32
    return %c0_i32, %c0_i32_0 : i32, i32
  }
  func.func @transform_2(%arg0: i32, %arg1: i32) -> (i32, i32, i32, i32) {
    %c0_i32 = arith.constant 0 : i32
    %c0_i32_0 = arith.constant 0 : i32
    %c0_i32_1 = arith.constant 0 : i32
    return %arg0, %arg1, %c0_i32, %c0_i32_0 : i32, i32, i32, i32
  }
  func.func @transform_3(%arg0: i32, %arg1: i32) -> (i32, i32, i32, i32) {
    %c0_i32 = arith.constant 0 : i32
    %c0_i32_0 = arith.constant 0 : i32
    %c0_i32_1 = arith.constant 0 : i32
    return %arg0, %arg1, %c0_i32, %c0_i32_0 : i32, i32, i32, i32
  }
}

module attributes {stable_mosaic.version = 11 : i64} {
  func.func @_bn_relu_kernel(%arg0: i32, %arg1: memref<256x32xf32, #tpu.memory_space<vmem>>, %arg2: memref<1x32xf32, #tpu.memory_space<vmem>>, %arg3: memref<1x32xf32, #tpu.memory_space<vmem>>, %arg4: memref<256x32xf32, #tpu.memory_space<vmem>>) attributes {dimension_semantics = [#tpu.dimension_semantics<parallel>], iteration_bounds = array<i64: 2>, scalar_prefetch = 0 : i64, scratch_operands = 0 : i64, tpu.core_type = #tpu.core_type<tc>, window_params = [{transform_indices = @transform_0, window_bounds = array<i64: 256, 32>}, {pipeline_mode = #tpu.pipeline_mode<synchronous>, transform_indices = @transform_1, window_bounds = array<i64: 1, 32>}, {pipeline_mode = #tpu.pipeline_mode<synchronous>, transform_indices = @transform_2, window_bounds = array<i64: 1, 32>}, {transform_indices = @transform_3, window_bounds = array<i64: 256, 32>}]} {
    %c0 = arith.constant 0 : index
    %c0_0 = arith.constant 0 : index
    %0 = vector.load %arg1[%c0, %c0_0] : memref<256x32xf32, #tpu.memory_space<vmem>>, vector<256x32xf32>
    %c0_1 = arith.constant 0 : index
    %c0_2 = arith.constant 0 : index
    %1 = vector.load %arg2[%c0_1, %c0_2] : memref<1x32xf32, #tpu.memory_space<vmem>>, vector<1x32xf32>
    %2 = vector.broadcast %1 : vector<1x32xf32> to vector<256x32xf32>
    %3 = arith.mulf %0, %2 : vector<256x32xf32>
    %c0_3 = arith.constant 0 : index
    %c0_4 = arith.constant 0 : index
    %4 = vector.load %arg3[%c0_3, %c0_4] : memref<1x32xf32, #tpu.memory_space<vmem>>, vector<1x32xf32>
    %5 = vector.broadcast %4 : vector<1x32xf32> to vector<256x32xf32>
    %6 = arith.addf %3, %5 : vector<256x32xf32>
    %cst = arith.constant 0.000000e+00 : f32
    %7 = vector.broadcast %cst : f32 to vector<256x32xf32>
    %8 = arith.maximumf %6, %7 : vector<256x32xf32>
    %c0_5 = arith.constant 0 : index
    %c0_6 = arith.constant 0 : index
    %9 = vector.load %arg4[%c0_5, %c0_6] : memref<256x32xf32, #tpu.memory_space<vmem>>, vector<256x32xf32>
    tpu.vector_store %arg4[%c0_5, %c0_6], %8 {strides = array<i32>} : memref<256x32xf32, #tpu.memory_space<vmem>>, vector<256x32xf32>,
    return
  }
  func.func @transform_0(%arg0: i32) -> (i32, i32) {
    %c0_i32 = arith.constant 0 : i32
    %c0_i32_0 = arith.constant 0 : i32
    return %arg0, %c0_i32 : i32, i32
  }
  func.func @transform_1(%arg0: i32) -> (i32, i32) {
    %c0_i32 = arith.constant 0 : i32
    %c0_i32_0 = arith.constant 0 : i32
    %c0_i32_1 = arith.constant 0 : i32
    return %c0_i32, %c0_i32_0 : i32, i32
  }
  func.func @transform_2(%arg0: i32) -> (i32, i32) {
    %c0_i32 = arith.constant 0 : i32
    %c0_i32_0 = arith.constant 0 : i32
    %c0_i32_1 = arith.constant 0 : i32
    return %c0_i32, %c0_i32_0 : i32, i32
  }
  func.func @transform_3(%arg0: i32) -> (i32, i32) {
    %c0_i32 = arith.constant 0 : i32
    %c0_i32_0 = arith.constant 0 : i32
    return %arg0, %c0_i32 : i32, i32
  }
}

</mosaic_0001>

<llo_original>
// kernel: inconv_forward.5
$region0: #{inconv_forward.5}
  #allocation0 [shape = 'u32[]', space=smem, size = 0x4, offset = 0x4, fixed_abs, tag = 'smem constant byte address 0x4 - core index']
  #allocation1 [shape = 'u32[72,128]{1,0:T(1,128)}', space=vmem, size = 0x9000, scoped, tag = 'internal scratch']
  %s0 = inlined_call_operand.vmem [shape: f32[512,32], index: 0, kind: input, shape index: {}]
  %s1 = inlined_call_operand.vmem [shape: f32[1,32], index: 1, kind: input, shape index: {}]
  %s2 = inlined_call_operand.vmem [shape: f32[1,32], index: 2, kind: input, shape index: {}]
  %s3 = inlined_call_operand.vmem [shape: bf16[512,32], index: 3, kind: output, shape index: {}]
  %s4 = sld [smem:[#allocation0]]
  $region45: #{inconv_forward.5} parent=0
    _
  %s6 = ssub.s32 1, %s4
  %s7 = scalar_select 0, %s6, %s4
  loop: start=0, step=1, limit=4
  $region2: #{inconv_forward.5} parent=0 // loop_pre_header
    _
  $region3: #{inconv_forward.5} parent=0 // loop_header
    %s9 = sphi 0, %s13
    %p10 = scmp.ge.s32.totalorder %s9, 4
    %s19 = sphi 0, %s21
    %s22 = sphi 0, %s19
    %s23 = sphi 0, %s22
    %s39 = sphi 0, %s23
    %s43 = sphi 0, %s43
    %s45 = sphi 0, %s43
    %s46 = sphi 0, %s45
    %s60 = sphi 0, %s46
    %s64 = sphi 0, %s64
    %s66 = sphi 0, %s64
    %s67 = sphi 0, %s66
    %s81 = sphi 0, %s67
    %s87 = sphi 0, %s89
    %s90 = sphi 0, %s87
    %s91 = sphi 0, %s90
    %s107 = sphi 0, %s91
  $region4: #{inconv_forward.5} parent=0 // loop_header_branch
    %12 = sbr.rel (%p10) target = $region8
  $region5: #{inconv_forward.5} parent=0 // loop_body
    %s14 = ssub.s32 %s9, 1
    %s15 = ssub.s32 %s9, 2
    %s16 = sadd.s32 %s9, 1
    %s17 = ssub.s32 %s9, %s16
    %p18 = scmp.eq.s32.totalorder %s17, 0
    %s20 = sadd.s32 %s19, 1
    %s21 = scalar_select %p18, %s19, %s20
    %p24 = pneg %p18
    %p25 = scmp.eq.s32.totalorder %s9, 1
    %p26 = por %p24, %p25
    %p27 = scmp.ne.s32.totalorder %s19, %s22
    %p28 = scmp.eq.s32.totalorder %s9, 0
    %p29 = por %p27, %p28
    %p30 = scmp.ne.s32.totalorder %s19, %s22
    %p31 = scmp.eq.s32.totalorder %s14, 1
    %p32 = por %p30, %p31
    %p33 = scmp.ne.s32.totalorder %s22, %s23
    %p34 = scmp.eq.s32.totalorder %s14, 0
    %p35 = por %p33, %p34
    %p36 = scmp.ne.s32.totalorder %s22, %s23
    %p37 = scmp.eq.s32.totalorder %s15, 1
    %p38 = por %p36, %p37
    %p40 = scmp.ne.s32.totalorder %s23, %s39
    %p41 = scmp.eq.s32.totalorder %s15, 0
    %p42 = por %p40, %p41
    %s44 = sadd.s32 %s43, 1
    %p47 = scmp.eq.s32.totalorder %s9, 1
    %p48 = scmp.ne.s32.totalorder %s43, %s45
    %p49 = scmp.eq.s32.totalorder %s9, 0
    %p50 = por %p48, %p49
    %p51 = scmp.ne.s32.totalorder %s43, %s45
    %p52 = scmp.eq.s32.totalorder %s14, 1
    %p53 = por %p51, %p52
    %p54 = scmp.ne.s32.totalorder %s45, %s46
    %p55 = scmp.eq.s32.totalorder %s14, 0
    %p56 = por %p54, %p55
    %p57 = scmp.ne.s32.totalorder %s45, %s46
    %p58 = scmp.eq.s32.totalorder %s15, 1
    %p59 = por %p57, %p58
    %p61 = scmp.ne.s32.totalorder %s46, %s60
    %p62 = scmp.eq.s32.totalorder %s15, 0
    %p63 = por %p61, %p62
    %s65 = sadd.s32 %s64, 1
    %p68 = scmp.eq.s32.totalorder %s9, 1
    %p69 = scmp.ne.s32.totalorder %s64, %s66
    %p70 = scmp.eq.s32.totalorder %s9, 0
    %p71 = por %p69, %p70
    %p72 = scmp.ne.s32.totalorder %s64, %s66
    %p73 = scmp.eq.s32.totalorder %s14, 1
    %p74 = por %p72, %p73
    %p75 = scmp.ne.s32.totalorder %s66, %s67
    %p76 = scmp.eq.s32.totalorder %s14, 0
    %p77 = por %p75, %p76
    %p78 = scmp.ne.s32.totalorder %s66, %s67
    %p79 = scmp.eq.s32.totalorder %s15, 1
    %p80 = por %p78, %p79
    %p82 = scmp.ne.s32.totalorder %s67, %s81
    %p83 = scmp.eq.s32.totalorder %s15, 0
    %p84 = por %p82, %p83
    %s85 = ssub.s32 %s9, %s16
    %p86 = scmp.eq.s32.totalorder %s85, 0
    %s88 = sadd.s32 %s87, 1
    %s89 = scalar_select %p86, %s87, %s88
    %p92 = pneg %p86
    %p93 = scmp.eq.s32.totalorder %s9, 1
    %p94 = por %p92, %p93
    %p95 = scmp.ne.s32.totalorder %s87, %s90
    %p96 = scmp.eq.s32.totalorder %s9, 0
    %p97 = por %p95, %p96
    %p98 = scmp.ne.s32.totalorder %s87, %s90
    %p99 = scmp.eq.s32.totalorder %s14, 1
    %p100 = por %p98, %p99
    %p101 = scmp.ne.s32.totalorder %s90, %s91
    %p102 = scmp.eq.s32.totalorder %s14, 0
    %p103 = por %p101, %p102
    %p104 = scmp.ne.s32.totalorder %s90, %s91
    %p105 = scmp.eq.s32.totalorder %s15, 1
    %p106 = por %p104, %p105
    %p108 = scmp.ne.s32.totalorder %s91, %s107
    %p109 = scmp.eq.s32.totalorder %s15, 0
    %p110 = por %p108, %p109
    %p111 = scmp.le.s32.totalorder 1, %s9
    %p112 = scmp.lt.s32.totalorder %s9, 3
    %p113 = pnand %p111, %p112
    %p114 = pneg %p113
    // Predicated region
    $region9: #{inconv_forward.5} parent=5 // pred_check
      _
    $region10: #{inconv_forward.5} parent=5 // pred_check_branch
      %116 = sbr.rel (%p113) target = $region12
    $region11: #{inconv_forward.5} parent=5 // pred_region
      %s117 = ssub.s32 %s9, 1
      // Predicated region
      $region13: #{inconv_forward.5} parent=11 // pred_check
        %p118 = pneg %p56
      $region14: #{inconv_forward.5} parent=11 // pred_check_branch
        %120 = sbr.rel (%p118) target = $region16
      $region15: #{inconv_forward.5} parent=11 // pred_region
        _
      $region16: #{inconv_forward.5} parent=11 // pred_fallthru
        _
      // Predicated region
      $region17: #{inconv_forward.5} parent=11 // pred_check
        %p121 = pneg %p77
      $region18: #{inconv_forward.5} parent=11 // pred_check_branch
        %123 = sbr.rel (%p121) target = $region20
      $region19: #{inconv_forward.5} parent=11 // pred_region
        _
      $region20: #{inconv_forward.5} parent=11 // pred_fallthru
        _
    $region12: #{inconv_forward.5} parent=5 // pred_fallthru
      _
    %p124 = scmp.lt.s32.totalorder %s9, 2
    // Predicated region
    $region21: #{inconv_forward.5} parent=5 // pred_check
      %p125 = pneg %p124
    $region22: #{inconv_forward.5} parent=5 // pred_check_branch
      %127 = sbr.rel (%p125) target = $region24
    $region23: #{inconv_forward.5} parent=5 // pred_region
      // Predicated region
      $region25: #{inconv_forward.5} parent=23 // pred_check
        %p128 = pneg %p29
      $region26: #{inconv_forward.5} parent=23 // pred_check_branch
        %130 = sbr.rel (%p128) target = $region28
      $region27: #{inconv_forward.5} parent=23 // pred_region
        %s131 = smul.u32 32, %s9
        %p132 = scmp.lt.s32.totalorder %s131, 63
        %s133 = scalar_select %p132, %s131, 63
        %s134 = smul.addr %s133, 8
        %s135 = scalar_lea.vmem %s0, %s134
        %s136 = smul.u32 32, %s9
      $region28: #{inconv_forward.5} parent=23 // pred_fallthru
        _
    $region24: #{inconv_forward.5} parent=5 // pred_fallthru
      _
    %p137 = scmp.le.s32.totalorder 1, %s9
    %p138 = scmp.lt.s32.totalorder %s9, 3
    %p139 = pnand %p137, %p138
    %p140 = pneg %p139
    // Predicated region
    $region29: #{inconv_forward.5} parent=5 // pred_check
      _
    $region30: #{inconv_forward.5} parent=5 // pred_check_branch
      %142 = sbr.rel (%p139) target = $region32
    $region31: #{inconv_forward.5} parent=5 // pred_region
      %s143 = ssub.s32 %s9, 1
      %s144 = smul.u32 32, %s14
      %p145 = scmp.lt.s32.totalorder %s144, 63
      %s146 = scalar_select %p145, %s144, 63
      %s147 = smul.addr %s146, 8
      %s148 = scalar_lea.vmem %s0, %s147
      %p149 = pneg %p35
      %p150 = pneg %p32
      %p151 = pneg %p56
      %p152 = pneg %p53
      %p153 = pneg %p77
      %p154 = pneg %p74
      %p155 = pneg %p103
      %p156 = pneg %p100
      %s157 = smul.u32 32, %s14
      %p158 = scmp.lt.s32.totalorder %s157, 63
      %s159 = scalar_select %p158, %s157, 63
      %s160 = smul.addr %s159, 4
      %s161 = scalar_lea.vmem %s3, %s160
      %s162 = smul.u32 32, %s14
      %p163 = scmp.lt.s32.totalorder %s162, 63
      %s164 = scalar_select %p163, %s162, 63
      %s165 = smul.addr %s164, 8
      %s166 = scalar_lea.vmem %s0, %s165
      %s167 = smul.u32 32, %s14
      %s168 = smul.u32 32, %s14
      %p169 = scmp.lt.s32.totalorder %s168, 63
      %s170 = scalar_select %p169, %s168, 63
      %s171 = smul.addr %s170, 4
      %s172 = scalar_lea.vmem %s3, %s171
      %s173 = smul.u32 32, %s14
      %v174 = vld [vmem:[%s166] sm:$0xff]
      %v175 = vld [vmem:[%s166 + $0x8] sm:$0xff]
      %v176 = vld [vmem:[%s166 + $0x10] sm:$0xff]
      %v177 = vld [vmem:[%s166 + $0x18] sm:$0xff]
      %v178 = vld [vmem:[%s166 + $0x20] sm:$0xff]
      %v179 = vld [vmem:[%s166 + $0x28] sm:$0xff]
      %v180 = vld [vmem:[%s166 + $0x30] sm:$0xff]
      %v181 = vld [vmem:[%s166 + $0x38] sm:$0xff]
      %v182 = vld [vmem:[%s166 + $0x40] sm:$0xff]
      %v183 = vld [vmem:[%s166 + $0x48] sm:$0xff]
      %v184 = vld [vmem:[%s166 + $0x50] sm:$0xff]
      %v185 = vld [vmem:[%s166 + $0x58] sm:$0xff]
      %v186 = vld [vmem:[%s166 + $0x60] sm:$0xff]
      %v187 = vld [vmem:[%s166 + $0x68] sm:$0xff]
      %v188 = vld [vmem:[%s166 + $0x70] sm:$0xff]
      %v189 = vld [vmem:[%s166 + $0x78] sm:$0xff]
      %v190 = vld [vmem:[%s166 + $0x80] sm:$0xff]
      %v191 = vld [vmem:[%s166 + $0x88] sm:$0xff]
      %v192 = vld [vmem:[%s166 + $0x90] sm:$0xff]
      %v193 = vld [vmem:[%s166 + $0x98] sm:$0xff]
      %v194 = vld [vmem:[%s166 + $0xa0] sm:$0xff]
      %v195 = vld [vmem:[%s166 + $0xa8] sm:$0xff]
      %v196 = vld [vmem:[%s166 + $0xb0] sm:$0xff]
      %v197 = vld [vmem:[%s166 + $0xb8] sm:$0xff]
      %v198 = vld [vmem:[%s166 + $0xc0] sm:$0xff]
      %v199 = vld [vmem:[%s166 + $0xc8] sm:$0xff]
      %v200 = vld [vmem:[%s166 + $0xd0] sm:$0xff]
      %v201 = vld [vmem:[%s166 + $0xd8] sm:$0xff]
      %v202 = vld [vmem:[%s166 + $0xe0] sm:$0xff]
      %v203 = vld [vmem:[%s166 + $0xe8] sm:$0xff]
      %v204 = vld [vmem:[%s166 + $0xf0] sm:$0xff]
      %v205 = vld [vmem:[%s166 + $0xf8] sm:$0xff]
      %v206 = vld [vmem:[%s1] sm:$0x1]
      %v208 = vperm.slane %v206, 0
      %v210 = vmul.f32 %v174, %v208
      %v211 = vmul.f32 %v175, %v208
      %v212 = vmul.f32 %v176, %v208
      %v213 = vmul.f32 %v177, %v208
      %v214 = vmul.f32 %v178, %v208
      %v215 = vmul.f32 %v179, %v208
      %v216 = vmul.f32 %v180, %v208
      %v217 = vmul.f32 %v181, %v208
      %v218 = vmul.f32 %v182, %v208
      %v219 = vmul.f32 %v183, %v208
      %v220 = vmul.f32 %v184, %v208
      %v221 = vmul.f32 %v185, %v208
      %v222 = vmul.f32 %v186, %v208
      %v223 = vmul.f32 %v187, %v208
      %v224 = vmul.f32 %v188, %v208
      %v225 = vmul.f32 %v189, %v208
      %v226 = vmul.f32 %v190, %v208
      %v227 = vmul.f32 %v191, %v208
      %v228 = vmul.f32 %v192, %v208
      %v229 = vmul.f32 %v193, %v208
      %v230 = vmul.f32 %v194, %v208
      %v231 = vmul.f32 %v195, %v208
      %v232 = vmul.f32 %v196, %v208
      %v233 = vmul.f32 %v197, %v208
      %v234 = vmul.f32 %v198, %v208
      %v235 = vmul.f32 %v199, %v208
      %v236 = vmul.f32 %v200, %v208
      %v237 = vmul.f32 %v201, %v208
      %v238 = vmul.f32 %v202, %v208
      %v239 = vmul.f32 %v203, %v208
      %v240 = vmul.f32 %v204, %v208
      %v241 = vmul.f32 %v205, %v208
      %v242 = vld [vmem:[%s2] sm:$0x1]
      %v244 = vperm.slane %v242, 0
      %v246 = vadd.f32 %v210, %v244
      %v247 = vadd.f32 %v211, %v244
      %v248 = vadd.f32 %v212, %v244
      %v249 = vadd.f32 %v213, %v244
      %v250 = vadd.f32 %v214, %v244
      %v251 = vadd.f32 %v215, %v244
      %v252 = vadd.f32 %v216, %v244
      %v253 = vadd.f32 %v217, %v244
      %v254 = vadd.f32 %v218, %v244
      %v255 = vadd.f32 %v219, %v244
      %v256 = vadd.f32 %v220, %v244
      %v257 = vadd.f32 %v221, %v244
      %v258 = vadd.f32 %v222, %v244
      %v259 = vadd.f32 %v223, %v244
      %v260 = vadd.f32 %v224, %v244
      %v261 = vadd.f32 %v225, %v244
      %v262 = vadd.f32 %v226, %v244
      %v263 = vadd.f32 %v227, %v244
      %v264 = vadd.f32 %v228, %v244
      %v265 = vadd.f32 %v229, %v244
      %v266 = vadd.f32 %v230, %v244
      %v267 = vadd.f32 %v231, %v244
      %v268 = vadd.f32 %v232, %v244
      %v269 = vadd.f32 %v233, %v244
      %v270 = vadd.f32 %v234, %v244
      %v271 = vadd.f32 %v235, %v244
      %v272 = vadd.f32 %v236, %v244
      %v273 = vadd.f32 %v237, %v244
      %v274 = vadd.f32 %v238, %v244
      %v275 = vadd.f32 %v239, %v244
      %v276 = vadd.f32 %v240, %v244
      %v277 = vadd.f32 %v241, %v244
      %v278 = vmax.f32 %v246, 0.0
      %v279 = vmax.f32 %v247, 0.0
      %v280 = vmax.f32 %v248, 0.0
      %v281 = vmax.f32 %v249, 0.0
      %v282 = vmax.f32 %v250, 0.0
      %v283 = vmax.f32 %v251, 0.0
      %v284 = vmax.f32 %v252, 0.0
      %v285 = vmax.f32 %v253, 0.0
      %v286 = vmax.f32 %v254, 0.0
      %v287 = vmax.f32 %v255, 0.0
      %v288 = vmax.f32 %v256, 0.0
      %v289 = vmax.f32 %v257, 0.0
      %v290 = vmax.f32 %v258, 0.0
      %v291 = vmax.f32 %v259, 0.0
      %v292 = vmax.f32 %v260, 0.0
      %v293 = vmax.f32 %v261, 0.0
      %v294 = vmax.f32 %v262, 0.0
      %v295 = vmax.f32 %v263, 0.0
      %v296 = vmax.f32 %v264, 0.0
      %v297 = vmax.f32 %v265, 0.0
      %v298 = vmax.f32 %v266, 0.0
      %v299 = vmax.f32 %v267, 0.0
      %v300 = vmax.f32 %v268, 0.0
      %v301 = vmax.f32 %v269, 0.0
      %v302 = vmax.f32 %v270, 0.0
      %v303 = vmax.f32 %v271, 0.0
      %v304 = vmax.f32 %v272, 0.0
      %v305 = vmax.f32 %v273, 0.0
      %v306 = vmax.f32 %v274, 0.0
      %v307 = vmax.f32 %v275, 0.0
      %v308 = vmax.f32 %v276, 0.0
      %v309 = vmax.f32 %v277, 0.0
      %v310 = vpack.c.bf16 %v278, %v278
      %v311 = vpack.c.bf16 %v279, %v279
      %v312 = vpack.c.bf16 %v280, %v280
      %v313 = vpack.c.bf16 %v281, %v281
      %v314 = vpack.c.bf16 %v282, %v282
      %v315 = vpack.c.bf16 %v283, %v283
      %v316 = vpack.c.bf16 %v284, %v284
      %v317 = vpack.c.bf16 %v285, %v285
      %v318 = vpack.c.bf16 %v286, %v286
      %v319 = vpack.c.bf16 %v287, %v287
      %v320 = vpack.c.bf16 %v288, %v288
      %v321 = vpack.c.bf16 %v289, %v289
      %v322 = vpack.c.bf16 %v290, %v290
      %v323 = vpack.c.bf16 %v291, %v291
      %v324 = vpack.c.bf16 %v292, %v292
      %v325 = vpack.c.bf16 %v293, %v293
      %v326 = vpack.c.bf16 %v294, %v294
      %v327 = vpack.c.bf16 %v295, %v295
      %v328 = vpack.c.bf16 %v296, %v296
      %v329 = vpack.c.bf16 %v297, %v297
      %v330 = vpack.c.bf16 %v298, %v298
      %v331 = vpack.c.bf16 %v299, %v299
      %v332 = vpack.c.bf16 %v300, %v300
      %v333 = vpack.c.bf16 %v301, %v301
      %v334 = vpack.c.bf16 %v302, %v302
      %v335 = vpack.c.bf16 %v303, %v303
      %v336 = vpack.c.bf16 %v304, %v304
      %v337 = vpack.c.bf16 %v305, %v305
      %v338 = vpack.c.bf16 %v306, %v306
      %v339 = vpack.c.bf16 %v307, %v307
      %v340 = vpack.c.bf16 %v308, %v308
      %v341 = vpack.c.bf16 %v309, %v309
      %vm342 = vcmask 257024
      %343 = vst.msk [vmem:[%s172] sm:$0xf] %vm342, %v310
      %344 = vst.msk [vmem:[%s172 + $0x4] sm:$0xf] %vm342, %v311
      %345 = vst.msk [vmem:[%s172 + $0x8] sm:$0xf] %vm342, %v312
      %346 = vst.msk [vmem:[%s172 + $0xc] sm:$0xf] %vm342, %v313
      %347 = vst.msk [vmem:[%s172 + $0x10] sm:$0xf] %vm342, %v314
      %348 = vst.msk [vmem:[%s172 + $0x14] sm:$0xf] %vm342, %v315
      %349 = vst.msk [vmem:[%s172 + $0x18] sm:$0xf] %vm342, %v316
      %350 = vst.msk [vmem:[%s172 + $0x1c] sm:$0xf] %vm342, %v317
      %351 = vst.msk [vmem:[%s172 + $0x20] sm:$0xf] %vm342, %v318
      %352 = vst.msk [vmem:[%s172 + $0x24] sm:$0xf] %vm342, %v319
      %353 = vst.msk [vmem:[%s172 + $0x28] sm:$0xf] %vm342, %v320
      %354 = vst.msk [vmem:[%s172 + $0x2c] sm:$0xf] %vm342, %v321
      %355 = vst.msk [vmem:[%s172 + $0x30] sm:$0xf] %vm342, %v322
      %356 = vst.msk [vmem:[%s172 + $0x34] sm:$0xf] %vm342, %v323
      %357 = vst.msk [vmem:[%s172 + $0x38] sm:$0xf] %vm342, %v324
      %358 = vst.msk [vmem:[%s172 + $0x3c] sm:$0xf] %vm342, %v325
      %359 = vst.msk [vmem:[%s172 + $0x40] sm:$0xf] %vm342, %v326
      %360 = vst.msk [vmem:[%s172 + $0x44] sm:$0xf] %vm342, %v327
      %361 = vst.msk [vmem:[%s172 + $0x48] sm:$0xf] %vm342, %v328
      %362 = vst.msk [vmem:[%s172 + $0x4c] sm:$0xf] %vm342, %v329
      %363 = vst.msk [vmem:[%s172 + $0x50] sm:$0xf] %vm342, %v330
      %364 = vst.msk [vmem:[%s172 + $0x54] sm:$0xf] %vm342, %v331
      %365 = vst.msk [vmem:[%s172 + $0x58] sm:$0xf] %vm342, %v332
      %366 = vst.msk [vmem:[%s172 + $0x5c] sm:$0xf] %vm342, %v333
      %367 = vst.msk [vmem:[%s172 + $0x60] sm:$0xf] %vm342, %v334
      %368 = vst.msk [vmem:[%s172 + $0x64] sm:$0xf] %vm342, %v335
      %369 = vst.msk [vmem:[%s172 + $0x68] sm:$0xf] %vm342, %v336
      %370 = vst.msk [vmem:[%s172 + $0x6c] sm:$0xf] %vm342, %v337
      %371 = vst.msk [vmem:[%s172 + $0x70] sm:$0xf] %vm342, %v338
      %372 = vst.msk [vmem:[%s172 + $0x74] sm:$0xf] %vm342, %v339
      %373 = vst.msk [vmem:[%s172 + $0x78] sm:$0xf] %vm342, %v340
      %374 = vst.msk [vmem:[%s172 + $0x7c] sm:$0xf] %vm342, %v341
      %s375 = smul.u32 32, %s14
      %p376 = scmp.lt.s32.totalorder %s375, 63
      %s377 = scalar_select %p376, %s375, 63
      %s378 = smul.addr %s377, 4
      %s379 = scalar_lea.vmem %s3, %s378
      // Predicated region
      $region33: #{inconv_forward.5} parent=31 // pred_check
        %p380 = pneg %p100
      $region34: #{inconv_forward.5} parent=31 // pred_check_branch
        %382 = sbr.rel (%p380) target = $region36
      $region35: #{inconv_forward.5} parent=31 // pred_region
        %s383 = smul.u32 32, %s14
      $region36: #{inconv_forward.5} parent=31 // pred_fallthru
        _
    $region32: #{inconv_forward.5} parent=5 // pred_fallthru
      _
    %p384 = scmp.le.s32.totalorder 2, %s9
    // Predicated region
    $region37: #{inconv_forward.5} parent=5 // pred_check
      %p385 = pneg %p384
    $region38: #{inconv_forward.5} parent=5 // pred_check_branch
      %387 = sbr.rel (%p385) target = $region40
    $region39: #{inconv_forward.5} parent=5 // pred_region
      %s388 = ssub.s32 %s9, 2
      // Predicated region
      $region41: #{inconv_forward.5} parent=39 // pred_check
        %p389 = pneg %p106
      $region42: #{inconv_forward.5} parent=39 // pred_check_branch
        %391 = sbr.rel (%p389) target = $region44
      $region43: #{inconv_forward.5} parent=39 // pred_region
        %s392 = smul.u32 32, %s15
        %p393 = scmp.lt.s32.totalorder %s392, 63
        %s394 = scalar_select %p393, %s392, 63
        %s395 = smul.addr %s394, 4
        %s396 = scalar_lea.vmem %s3, %s395
      $region44: #{inconv_forward.5} parent=39 // pred_fallthru
        _
    $region40: #{inconv_forward.5} parent=5 // pred_fallthru
      _
  $region6: #{inconv_forward.5} parent=0 // loop_footer
    %s13 = sadd.s32 1, %s9
  $region7: #{inconv_forward.5} parent=0 // loop_footer_branch
    %8 = sbr.rel target = $region3
  $region8: #{inconv_forward.5} parent=0 // loop_exit
    _

// kernel: inconv_forward.7
$region0: #{inconv_forward.7}
  #allocation0 [shape = 'u32[]', space=smem, size = 0x4, offset = 0x4, fixed_abs, tag = 'smem constant byte address 0x4 - core index']
  #allocation1 [shape = 'u32[72,128]{1,0:T(1,128)}', space=vmem, size = 0x9000, scoped, tag = 'internal scratch']
  %s0 = inlined_call_operand.vmem [shape: f32[512,32], index: 0, kind: input, shape index: {}]
  %s1 = inlined_call_operand.vmem [shape: f32[1,32], index: 1, kind: input, shape index: {}]
  %s2 = inlined_call_operand.vmem [shape: f32[1,32], index: 2, kind: input, shape index: {}]
  %s3 = inlined_call_operand.hbm [shape: f32[512,32], index: 3, kind: output, shape index: {}]
  %s4 = sld [smem:[#allocation0]]
  $region45: #{inconv_forward.7} parent=0
    _
  %s6 = ssub.s32 1, %s4
  %s7 = scalar_select 0, %s6, %s4
  $region1: #{inconv_forward.7} parent=0
    #allocation2 [shape = 'u8[262144]{0}', space=vmem, size = 0x40000, scoped, tag = 'output window, operand 0']
    #allocation3 [shape = 's32[2]{0}', space=sflag, size = 0x8, scoped, tag = 'scoped memory for inconv_forward.7']
    %8 = vsyncpa [#allocation3], 0
    %s9 = scalar_lea.sflag [#allocation3], 1
    %10 = vsyncpa %s9, 0
    loop: start=0, step=1, limit=4
    $region2: #{inconv_forward.7} parent=1 // loop_pre_header
      _
    $region3: #{inconv_forward.7} parent=1 // loop_header
      %s12 = sphi 0, %s16
      %p13 = scmp.ge.s32.totalorder %s12, 4
      %s22 = sphi 0, %s24
      %s25 = sphi 0, %s22
      %s26 = sphi 0, %s25
      %s42 = sphi 0, %s26
      %s46 = sphi 0, %s46
      %s48 = sphi 0, %s46
      %s49 = sphi 0, %s48
      %s63 = sphi 0, %s49
      %s67 = sphi 0, %s67
      %s69 = sphi 0, %s67
      %s70 = sphi 0, %s69
      %s84 = sphi 0, %s70
      %s90 = sphi 0, %s92
      %s93 = sphi 0, %s90
      %s94 = sphi 0, %s93
      %s110 = sphi 0, %s94
    $region4: #{inconv_forward.7} parent=1 // loop_header_branch
      %15 = sbr.rel (%p13) target = $region8
    $region5: #{inconv_forward.7} parent=1 // loop_body
      %s17 = ssub.s32 %s12, 1
      %s18 = ssub.s32 %s12, 2
      %s19 = sadd.s32 %s12, 1
      %s20 = ssub.s32 %s12, %s19
      %p21 = scmp.eq.s32.totalorder %s20, 0
      %s23 = sadd.s32 %s22, 1
      %s24 = scalar_select %p21, %s22, %s23
      %p27 = pneg %p21
      %p28 = scmp.eq.s32.totalorder %s12, 1
      %p29 = por %p27, %p28
      %p30 = scmp.ne.s32.totalorder %s22, %s25
      %p31 = scmp.eq.s32.totalorder %s12, 0
      %p32 = por %p30, %p31
      %p33 = scmp.ne.s32.totalorder %s22, %s25
      %p34 = scmp.eq.s32.totalorder %s17, 1
      %p35 = por %p33, %p34
      %p36 = scmp.ne.s32.totalorder %s25, %s26
      %p37 = scmp.eq.s32.totalorder %s17, 0
      %p38 = por %p36, %p37
      %p39 = scmp.ne.s32.totalorder %s25, %s26
      %p40 = scmp.eq.s32.totalorder %s18, 1
      %p41 = por %p39, %p40
      %p43 = scmp.ne.s32.totalorder %s26, %s42
      %p44 = scmp.eq.s32.totalorder %s18, 0
      %p45 = por %p43, %p44
      %s47 = sadd.s32 %s46, 1
      %p50 = scmp.eq.s32.totalorder %s12, 1
      %p51 = scmp.ne.s32.totalorder %s46, %s48
      %p52 = scmp.eq.s32.totalorder %s12, 0
      %p53 = por %p51, %p52
      %p54 = scmp.ne.s32.totalorder %s46, %s48
      %p55 = scmp.eq.s32.totalorder %s17, 1
      %p56 = por %p54, %p55
      %p57 = scmp.ne.s32.totalorder %s48, %s49
      %p58 = scmp.eq.s32.totalorder %s17, 0
      %p59 = por %p57, %p58
      %p60 = scmp.ne.s32.totalorder %s48, %s49
      %p61 = scmp.eq.s32.totalorder %s18, 1
      %p62 = por %p60, %p61
      %p64 = scmp.ne.s32.totalorder %s49, %s63
      %p65 = scmp.eq.s32.totalorder %s18, 0
      %p66 = por %p64, %p65
      %s68 = sadd.s32 %s67, 1
      %p71 = scmp.eq.s32.totalorder %s12, 1
      %p72 = scmp.ne.s32.totalorder %s67, %s69
      %p73 = scmp.eq.s32.totalorder %s12, 0
      %p74 = por %p72, %p73
      %p75 = scmp.ne.s32.totalorder %s67, %s69
      %p76 = scmp.eq.s32.totalorder %s17, 1
      %p77 = por %p75, %p76
      %p78 = scmp.ne.s32.totalorder %s69, %s70
      %p79 = scmp.eq.s32.totalorder %s17, 0
      %p80 = por %p78, %p79
      %p81 = scmp.ne.s32.totalorder %s69, %s70
      %p82 = scmp.eq.s32.totalorder %s18, 1
      %p83 = por %p81, %p82
      %p85 = scmp.ne.s32.totalorder %s70, %s84
      %p86 = scmp.eq.s32.totalorder %s18, 0
      %p87 = por %p85, %p86
      %s88 = ssub.s32 %s12, %s19
      %p89 = scmp.eq.s32.totalorder %s88, 0
      %s91 = sadd.s32 %s90, 1
      %s92 = scalar_select %p89, %s90, %s91
      %p95 = pneg %p89
      %p96 = scmp.eq.s32.totalorder %s12, 1
      %p97 = por %p95, %p96
      %p98 = scmp.ne.s32.totalorder %s90, %s93
      %p99 = scmp.eq.s32.totalorder %s12, 0
      %p100 = por %p98, %p99
      %p101 = scmp.ne.s32.totalorder %s90, %s93
      %p102 = scmp.eq.s32.totalorder %s17, 1
      %p103 = por %p101, %p102
      %p104 = scmp.ne.s32.totalorder %s93, %s94
      %p105 = scmp.eq.s32.totalorder %s17, 0
      %p106 = por %p104, %p105
      %p107 = scmp.ne.s32.totalorder %s93, %s94
      %p108 = scmp.eq.s32.totalorder %s18, 1
      %p109 = por %p107, %p108
      %p111 = scmp.ne.s32.totalorder %s94, %s110
      %p112 = scmp.eq.s32.totalorder %s18, 0
      %p113 = por %p111, %p112
      %p114 = scmp.le.s32.totalorder 1, %s12
      %p115 = scmp.lt.s32.totalorder %s12, 3
      %p116 = pnand %p114, %p115
      %p117 = pneg %p116
      // Predicated region
      $region9: #{inconv_forward.7} parent=5 // pred_check
        _
      $region10: #{inconv_forward.7} parent=5 // pred_check_branch
        %119 = sbr.rel (%p116) target = $region12
      $region11: #{inconv_forward.7} parent=5 // pred_region
        %s120 = ssub.s32 %s12, 1
        // Predicated region
        $region13: #{inconv_forward.7} parent=11 // pred_check
          %p121 = pneg %p59
        $region14: #{inconv_forward.7} parent=11 // pred_check_branch
          %123 = sbr.rel (%p121) target = $region16
        $region15: #{inconv_forward.7} parent=11 // pred_region
          _
        $region16: #{inconv_forward.7} parent=11 // pred_fallthru
          _
        // Predicated region
        $region17: #{inconv_forward.7} parent=11 // pred_check
          %p124 = pneg %p80
        $region18: #{inconv_forward.7} parent=11 // pred_check_branch
          %126 = sbr.rel (%p124) target = $region20
        $region19: #{inconv_forward.7} parent=11 // pred_region
          _
        $region20: #{inconv_forward.7} parent=11 // pred_fallthru
          _
      $region12: #{inconv_forward.7} parent=5 // pred_fallthru
        _
      %p127 = scmp.lt.s32.totalorder %s12, 2
      // Predicated region
      $region21: #{inconv_forward.7} parent=5 // pred_check
        %p128 = pneg %p127
      $region22: #{inconv_forward.7} parent=5 // pred_check_branch
        %130 = sbr.rel (%p128) target = $region24
      $region23: #{inconv_forward.7} parent=5 // pred_region
        // Predicated region
        $region25: #{inconv_forward.7} parent=23 // pred_check
          %p131 = pneg %p32
        $region26: #{inconv_forward.7} parent=23 // pred_check_branch
          %133 = sbr.rel (%p131) target = $region28
        $region27: #{inconv_forward.7} parent=23 // pred_region
          %s134 = smul.u32 32, %s12
          %p135 = scmp.lt.s32.totalorder %s134, 63
          %s136 = scalar_select %p135, %s134, 63
          %s137 = smul.addr %s136, 8
          %s138 = scalar_lea.vmem %s0, %s137
          %s139 = smul.u32 32, %s12
        $region28: #{inconv_forward.7} parent=23 // pred_fallthru
          _
      $region24: #{inconv_forward.7} parent=5 // pred_fallthru
        _
      %p140 = scmp.le.s32.totalorder 1, %s12
      %p141 = scmp.lt.s32.totalorder %s12, 3
      %p142 = pnand %p140, %p141
      %p143 = pneg %p142
      // Predicated region
      $region29: #{inconv_forward.7} parent=5 // pred_check
        _
      $region30: #{inconv_forward.7} parent=5 // pred_check_branch
        %145 = sbr.rel (%p142) target = $region32
      $region31: #{inconv_forward.7} parent=5 // pred_region
        %s146 = ssub.s32 %s12, 1
        %s147 = smul.u32 32, %s17
        %p148 = scmp.lt.s32.totalorder %s147, 63
        %s149 = scalar_select %p148, %s147, 63
        %s150 = smul.addr %s149, 8
        %s151 = scalar_lea.vmem %s0, %s150
        %p152 = pneg %p38
        %p153 = pneg %p35
        %p154 = pneg %p59
        %p155 = pneg %p56
        %p156 = pneg %p80
        %p157 = pneg %p77
        %p158 = pneg %p106
        %p159 = pneg %p103
        %s160 = sand.u32 %s93, 1
        %s161 = scalar_lea.sflag [#allocation3], %s160
        %s162 = sand.u32 %s93, 1
        %s163 = smul.addr %s162, 256
        %s164 = scalar_lea.vmem [#allocation2], %s163
        %s165 = smul.u32 32, %s17
        %p166 = scmp.lt.s32.totalorder %s165, 63
        %s167 = scalar_select %p166, %s165, 63
        %s168 = smul.addr %s167, 8
        %s169 = scalar_lea.vmem %s0, %s168
        %s170 = smul.u32 32, %s17
        %s171 = smul.u32 32, %s17
        %v172 = vld [vmem:[%s169] sm:$0xff]
        %v173 = vld [vmem:[%s169 + $0x8] sm:$0xff]
        %v174 = vld [vmem:[%s169 + $0x10] sm:$0xff]
        %v175 = vld [vmem:[%s169 + $0x18] sm:$0xff]
        %v176 = vld [vmem:[%s169 + $0x20] sm:$0xff]
        %v177 = vld [vmem:[%s169 + $0x28] sm:$0xff]
        %v178 = vld [vmem:[%s169 + $0x30] sm:$0xff]
        %v179 = vld [vmem:[%s169 + $0x38] sm:$0xff]
        %v180 = vld [vmem:[%s169 + $0x40] sm:$0xff]
        %v181 = vld [vmem:[%s169 + $0x48] sm:$0xff]
        %v182 = vld [vmem:[%s169 + $0x50] sm:$0xff]
        %v183 = vld [vmem:[%s169 + $0x58] sm:$0xff]
        %v184 = vld [vmem:[%s169 + $0x60] sm:$0xff]
        %v185 = vld [vmem:[%s169 + $0x68] sm:$0xff]
        %v186 = vld [vmem:[%s169 + $0x70] sm:$0xff]
        %v187 = vld [vmem:[%s169 + $0x78] sm:$0xff]
        %v188 = vld [vmem:[%s169 + $0x80] sm:$0xff]
        %v189 = vld [vmem:[%s169 + $0x88] sm:$0xff]
        %v190 = vld [vmem:[%s169 + $0x90] sm:$0xff]
        %v191 = vld [vmem:[%s169 + $0x98] sm:$0xff]
        %v192 = vld [vmem:[%s169 + $0xa0] sm:$0xff]
        %v193 = vld [vmem:[%s169 + $0xa8] sm:$0xff]
        %v194 = vld [vmem:[%s169 + $0xb0] sm:$0xff]
        %v195 = vld [vmem:[%s169 + $0xb8] sm:$0xff]
        %v196 = vld [vmem:[%s169 + $0xc0] sm:$0xff]
        %v197 = vld [vmem:[%s169 + $0xc8] sm:$0xff]
        %v198 = vld [vmem:[%s169 + $0xd0] sm:$0xff]
        %v199 = vld [vmem:[%s169 + $0xd8] sm:$0xff]
        %v200 = vld [vmem:[%s169 + $0xe0] sm:$0xff]
        %v201 = vld [vmem:[%s169 + $0xe8] sm:$0xff]
        %v202 = vld [vmem:[%s169 + $0xf0] sm:$0xff]
        %v203 = vld [vmem:[%s169 + $0xf8] sm:$0xff]
        %v204 = vld [vmem:[%s1] sm:$0x1]
        %v206 = vperm.slane %v204, 0
        %v208 = vmul.f32 %v172, %v206
        %v209 = vmul.f32 %v173, %v206
        %v210 = vmul.f32 %v174, %v206
        %v211 = vmul.f32 %v175, %v206
        %v212 = vmul.f32 %v176, %v206
        %v213 = vmul.f32 %v177, %v206
        %v214 = vmul.f32 %v178, %v206
        %v215 = vmul.f32 %v179, %v206
        %v216 = vmul.f32 %v180, %v206
        %v217 = vmul.f32 %v181, %v206
        %v218 = vmul.f32 %v182, %v206
        %v219 = vmul.f32 %v183, %v206
        %v220 = vmul.f32 %v184, %v206
        %v221 = vmul.f32 %v185, %v206
        %v222 = vmul.f32 %v186, %v206
        %v223 = vmul.f32 %v187, %v206
        %v224 = vmul.f32 %v188, %v206
        %v225 = vmul.f32 %v189, %v206
        %v226 = vmul.f32 %v190, %v206
        %v227 = vmul.f32 %v191, %v206
        %v228 = vmul.f32 %v192, %v206
        %v229 = vmul.f32 %v193, %v206
        %v230 = vmul.f32 %v194, %v206
        %v231 = vmul.f32 %v195, %v206
        %v232 = vmul.f32 %v196, %v206
        %v233 = vmul.f32 %v197, %v206
        %v234 = vmul.f32 %v198, %v206
        %v235 = vmul.f32 %v199, %v206
        %v236 = vmul.f32 %v200, %v206
        %v237 = vmul.f32 %v201, %v206
        %v238 = vmul.f32 %v202, %v206
        %v239 = vmul.f32 %v203, %v206
        %v240 = vld [vmem:[%s2] sm:$0x1]
        %v242 = vperm.slane %v240, 0
        %v244 = vadd.f32 %v208, %v242
        %v245 = vadd.f32 %v209, %v242
        %v246 = vadd.f32 %v210, %v242
        %v247 = vadd.f32 %v211, %v242
        %v248 = vadd.f32 %v212, %v242
        %v249 = vadd.f32 %v213, %v242
        %v250 = vadd.f32 %v214, %v242
        %v251 = vadd.f32 %v215, %v242
        %v252 = vadd.f32 %v216, %v242
        %v253 = vadd.f32 %v217, %v242
        %v254 = vadd.f32 %v218, %v242
        %v255 = vadd.f32 %v219, %v242
        %v256 = vadd.f32 %v220, %v242
        %v257 = vadd.f32 %v221, %v242
        %v258 = vadd.f32 %v222, %v242
        %v259 = vadd.f32 %v223, %v242
        %v260 = vadd.f32 %v224, %v242
        %v261 = vadd.f32 %v225, %v242
        %v262 = vadd.f32 %v226, %v242
        %v263 = vadd.f32 %v227, %v242
        %v264 = vadd.f32 %v228, %v242
        %v265 = vadd.f32 %v229, %v242
        %v266 = vadd.f32 %v230, %v242
        %v267 = vadd.f32 %v231, %v242
        %v268 = vadd.f32 %v232, %v242
        %v269 = vadd.f32 %v233, %v242
        %v270 = vadd.f32 %v234, %v242
        %v271 = vadd.f32 %v235, %v242
        %v272 = vadd.f32 %v236, %v242
        %v273 = vadd.f32 %v237, %v242
        %v274 = vadd.f32 %v238, %v242
        %v275 = vadd.f32 %v239, %v242
        %v276 = vmax.f32 %v244, 0.0
        %v277 = vmax.f32 %v245, 0.0
        %v278 = vmax.f32 %v246, 0.0
        %v279 = vmax.f32 %v247, 0.0
        %v280 = vmax.f32 %v248, 0.0
        %v281 = vmax.f32 %v249, 0.0
        %v282 = vmax.f32 %v250, 0.0
        %v283 = vmax.f32 %v251, 0.0
        %v284 = vmax.f32 %v252, 0.0
        %v285 = vmax.f32 %v253, 0.0
        %v286 = vmax.f32 %v254, 0.0
        %v287 = vmax.f32 %v255, 0.0
        %v288 = vmax.f32 %v256, 0.0
        %v289 = vmax.f32 %v257, 0.0
        %v290 = vmax.f32 %v258, 0.0
        %v291 = vmax.f32 %v259, 0.0
        %v292 = vmax.f32 %v260, 0.0
        %v293 = vmax.f32 %v261, 0.0
        %v294 = vmax.f32 %v262, 0.0
        %v295 = vmax.f32 %v263, 0.0
        %v296 = vmax.f32 %v264, 0.0
        %v297 = vmax.f32 %v265, 0.0
        %v298 = vmax.f32 %v266, 0.0
        %v299 = vmax.f32 %v267, 0.0
        %v300 = vmax.f32 %v268, 0.0
        %v301 = vmax.f32 %v269, 0.0
        %v302 = vmax.f32 %v270, 0.0
        %v303 = vmax.f32 %v271, 0.0
        %v304 = vmax.f32 %v272, 0.0
        %v305 = vmax.f32 %v273, 0.0
        %v306 = vmax.f32 %v274, 0.0
        %v307 = vmax.f32 %v275, 0.0
        %vm308 = vcmask 261120
        %309 = vst.msk [vmem:[%s164] sm:$0xff] %vm308, %v276
        %310 = vst.msk [vmem:[%s164 + $0x8] sm:$0xff] %vm308, %v277
        %311 = vst.msk [vmem:[%s164 + $0x10] sm:$0xff] %vm308, %v278
        %312 = vst.msk [vmem:[%s164 + $0x18] sm:$0xff] %vm308, %v279
        %313 = vst.msk [vmem:[%s164 + $0x20] sm:$0xff] %vm308, %v280
        %314 = vst.msk [vmem:[%s164 + $0x28] sm:$0xff] %vm308, %v281
        %315 = vst.msk [vmem:[%s164 + $0x30] sm:$0xff] %vm308, %v282
        %316 = vst.msk [vmem:[%s164 + $0x38] sm:$0xff] %vm308, %v283
        %317 = vst.msk [vmem:[%s164 + $0x40] sm:$0xff] %vm308, %v284
        %318 = vst.msk [vmem:[%s164 + $0x48] sm:$0xff] %vm308, %v285
        %319 = vst.msk [vmem:[%s164 + $0x50] sm:$0xff] %vm308, %v286
        %320 = vst.msk [vmem:[%s164 + $0x58] sm:$0xff] %vm308, %v287
        %321 = vst.msk [vmem:[%s164 + $0x60] sm:$0xff] %vm308, %v288
        %322 = vst.msk [vmem:[%s164 + $0x68] sm:$0xff] %vm308, %v289
        %323 = vst.msk [vmem:[%s164 + $0x70] sm:$0xff] %vm308, %v290
        %324 = vst.msk [vmem:[%s164 + $0x78] sm:$0xff] %vm308, %v291
        %325 = vst.msk [vmem:[%s164 + $0x80] sm:$0xff] %vm308, %v292
        %326 = vst.msk [vmem:[%s164 + $0x88] sm:$0xff] %vm308, %v293
        %327 = vst.msk [vmem:[%s164 + $0x90] sm:$0xff] %vm308, %v294
        %328 = vst.msk [vmem:[%s164 + $0x98] sm:$0xff] %vm308, %v295
        %329 = vst.msk [vmem:[%s164 + $0xa0] sm:$0xff] %vm308, %v296
        %330 = vst.msk [vmem:[%s164 + $0xa8] sm:$0xff] %vm308, %v297
        %331 = vst.msk [vmem:[%s164 + $0xb0] sm:$0xff] %vm308, %v298
        %332 = vst.msk [vmem:[%s164 + $0xb8] sm:$0xff] %vm308, %v299
        %333 = vst.msk [vmem:[%s164 + $0xc0] sm:$0xff] %vm308, %v300
        %334 = vst.msk [vmem:[%s164 + $0xc8] sm:$0xff] %vm308, %v301
        %335 = vst.msk [vmem:[%s164 + $0xd0] sm:$0xff] %vm308, %v302
        %336 = vst.msk [vmem:[%s164 + $0xd8] sm:$0xff] %vm308, %v303
        %337 = vst.msk [vmem:[%s164 + $0xe0] sm:$0xff] %vm308, %v304
        %338 = vst.msk [vmem:[%s164 + $0xe8] sm:$0xff] %vm308, %v305
        %339 = vst.msk [vmem:[%s164 + $0xf0] sm:$0xff] %vm308, %v306
        %340 = vst.msk [vmem:[%s164 + $0xf8] sm:$0xff] %vm308, %v307
        %s341 = sand.u32 %s93, 1
        %s342 = scalar_lea.sflag [#allocation3], %s341
        %s343 = sand.u32 %s93, 1
        %s344 = smul.addr %s343, 256
        %s345 = scalar_lea.vmem [#allocation2], %s344
        // Predicated region
        $region33: #{inconv_forward.7} parent=31 // pred_check
          %p346 = pneg %p103
        $region34: #{inconv_forward.7} parent=31 // pred_check_branch
          %348 = sbr.rel (%p346) target = $region36
        $region35: #{inconv_forward.7} parent=31 // pred_region
          %s349 = smul.u32 32, %s17
          %351 = vsyncadd %s342, 0
          %s352 = smul.addr %s349, 8
          %s353 = scalar_lea.hbm %s3, %s352
          %s354 = sshll.u32 %s345, 4
          %s355 = int_to_ptr.vmem [resolvable:$true] %s354
          %s356 = sshll.u32 %s353, 4
          %s357 = int_to_ptr.hbm [resolvable:$true] %s356
          %362 = dma.vmem_to_hbm [thread:$0]  %s355, 4096, %s357, %s342, 128, 128, 8
        $region36: #{inconv_forward.7} parent=31 // pred_fallthru
          _
      $region32: #{inconv_forward.7} parent=5 // pred_fallthru
        _
      %p363 = scmp.le.s32.totalorder 2, %s12
      // Predicated region
      $region37: #{inconv_forward.7} parent=5 // pred_check
        %p364 = pneg %p363
      $region38: #{inconv_forward.7} parent=5 // pred_check_branch
        %366 = sbr.rel (%p364) target = $region40
      $region39: #{inconv_forward.7} parent=5 // pred_region
        %s367 = ssub.s32 %s12, 2
        // Predicated region
        $region41: #{inconv_forward.7} parent=39 // pred_check
          %p368 = pneg %p109
        $region42: #{inconv_forward.7} parent=39 // pred_check_branch
          %370 = sbr.rel (%p368) target = $region44
        $region43: #{inconv_forward.7} parent=39 // pred_region
          %s371 = sand.u32 %s94, 1
          %s372 = scalar_lea.sflag [#allocation3], %s371
          %s373 = sand.u32 %s94, 1
          %s374 = smul.addr %s373, 256
          %s375 = scalar_lea.vmem [#allocation2], %s374
          %377 = dma.done %s372, 4096
        $region44: #{inconv_forward.7} parent=39 // pred_fallthru
          _
      $region40: #{inconv_forward.7} parent=5 // pred_fallthru
        _
    $region6: #{inconv_forward.7} parent=1 // loop_footer
      %s16 = sadd.s32 1, %s12
    $region7: #{inconv_forward.7} parent=1 // loop_footer_branch
      %11 = sbr.rel target = $region3
    $region8: #{inconv_forward.7} parent=1 // loop_exit
      _
    %378 = vsyncpa [#allocation3], 1
    %s379 = scalar_lea.sflag [#allocation3], 1
    %380 = vsyncpa %s379, 1

// kernel: inconv_forward.4
$region0: #{inconv_forward.4}
  #allocation0 [shape = 'u32[]', space=smem, size = 0x4, offset = 0x4, fixed_abs, tag = 'smem constant byte address 0x4 - core index']
  #allocation1 [shape = 'u32[72,128]{1,0:T(1,128)}', space=vmem, size = 0x9000, scoped, tag = 'internal scratch']
  %s0 = inlined_call_operand.vmem [shape: bf16[2,18,18,4], index: 0, kind: input, shape index: {}]
  %s1 = inlined_call_operand.vmem [shape: bf16[36,32], index: 1, kind: input, shape index: {}]
  %s2 = inlined_call_operand.vmem [shape: f32[2,1,256,32], index: 2, kind: output, shape index: {0}]
  %s3 = inlined_call_operand.vmem [shape: f32[2,1,2,32], index: 3, kind: output, shape index: {1}]
  %4 = xla_tuple %s2, %s3
  %s5 = sld [smem:[#allocation0]]
  $region49: #{inconv_forward.4} parent=0
    _
  %s7 = ssub.s32 1, %s5
  %s8 = scalar_select 0, %s7, %s5
  loop: start=0, step=1, limit=4
  $region2: #{inconv_forward.4} parent=0 // loop_pre_header
    _
  $region3: #{inconv_forward.4} parent=0 // loop_header
    %s10 = sphi 0, %s14
    %p11 = scmp.ge.s32.totalorder %s10, 4
    %s17 = sphi 0, %s29
    %s18 = sphi 0, %s25
    %s19 = sphi 0, %s17
    %s20 = sphi 0, %s18
    %s21 = sphi 0, %s19
    %s22 = sphi 0, %s20
    %s32 = sphi 0, %s34
    %s35 = sphi 0, %s32
    %s36 = sphi 0, %s35
    %s52 = sphi 0, %s36
    %s56 = sphi 0, %s56
    %s58 = sphi 0, %s56
    %s59 = sphi 0, %s58
    %s73 = sphi 0, %s59
    %s81 = sphi 0, %s83
    %s84 = sphi 0, %s81
    %s85 = sphi 0, %s84
    %s101 = sphi 0, %s85
    %s109 = sphi 0, %s111
    %s112 = sphi 0, %s109
    %s113 = sphi 0, %s112
    %s129 = sphi 0, %s113
  $region4: #{inconv_forward.4} parent=0 // loop_header_branch
    %13 = sbr.rel (%p11) target = $region8
  $region5: #{inconv_forward.4} parent=0 // loop_body
    %s15 = ssub.s32 %s10, 1
    %s16 = ssub.s32 %s10, 2
    %s23 = sadd.s32 1, %s18
    %p24 = scmp.ge.s32.totalorder %s23, 1
    %s25 = scalar_select %p24, 0, %s23
    %s26 = sadd.s32 1, %s17
    %s27 = scalar_select %p24, %s26, %s17
    %p28 = scmp.ge.s32.totalorder %s27, 2
    %s29 = scalar_select %p28, 0, %s27
    %s30 = ssub.s32 %s17, %s29
    %p31 = scmp.eq.s32.totalorder %s30, 0
    %s33 = sadd.s32 %s32, 1
    %s34 = scalar_select %p31, %s32, %s33
    %p37 = pneg %p31
    %p38 = scmp.eq.s32.totalorder %s10, 1
    %p39 = por %p37, %p38
    %p40 = scmp.ne.s32.totalorder %s32, %s35
    %p41 = scmp.eq.s32.totalorder %s10, 0
    %p42 = por %p40, %p41
    %p43 = scmp.ne.s32.totalorder %s32, %s35
    %p44 = scmp.eq.s32.totalorder %s15, 1
    %p45 = por %p43, %p44
    %p46 = scmp.ne.s32.totalorder %s35, %s36
    %p47 = scmp.eq.s32.totalorder %s15, 0
    %p48 = por %p46, %p47
    %p49 = scmp.ne.s32.totalorder %s35, %s36
    %p50 = scmp.eq.s32.totalorder %s16, 1
    %p51 = por %p49, %p50
    %p53 = scmp.ne.s32.totalorder %s36, %s52
    %p54 = scmp.eq.s32.totalorder %s16, 0
    %p55 = por %p53, %p54
    %s57 = sadd.s32 %s56, 1
    %p60 = scmp.eq.s32.totalorder %s10, 1
    %p61 = scmp.ne.s32.totalorder %s56, %s58
    %p62 = scmp.eq.s32.totalorder %s10, 0
    %p63 = por %p61, %p62
    %p64 = scmp.ne.s32.totalorder %s56, %s58
    %p65 = scmp.eq.s32.totalorder %s15, 1
    %p66 = por %p64, %p65
    %p67 = scmp.ne.s32.totalorder %s58, %s59
    %p68 = scmp.eq.s32.totalorder %s15, 0
    %p69 = por %p67, %p68
    %p70 = scmp.ne.s32.totalorder %s58, %s59
    %p71 = scmp.eq.s32.totalorder %s16, 1
    %p72 = por %p70, %p71
    %p74 = scmp.ne.s32.totalorder %s59, %s73
    %p75 = scmp.eq.s32.totalorder %s16, 0
    %p76 = por %p74, %p75
    %s77 = ssub.s32 %s17, %s29
    %s78 = ssub.s32 %s18, %s25
    %s79 = sor.u32 %s77, %s78
    %p80 = scmp.eq.s32.totalorder %s79, 0
    %s82 = sadd.s32 %s81, 1
    %s83 = scalar_select %p80, %s81, %s82
    %p86 = pneg %p80
    %p87 = scmp.eq.s32.totalorder %s10, 1
    %p88 = por %p86, %p87
    %p89 = scmp.ne.s32.totalorder %s81, %s84
    %p90 = scmp.eq.s32.totalorder %s10, 0
    %p91 = por %p89, %p90
    %p92 = scmp.ne.s32.totalorder %s81, %s84
    %p93 = scmp.eq.s32.totalorder %s15, 1
    %p94 = por %p92, %p93
    %p95 = scmp.ne.s32.totalorder %s84, %s85
    %p96 = scmp.eq.s32.totalorder %s15, 0
    %p97 = por %p95, %p96
    %p98 = scmp.ne.s32.totalorder %s84, %s85
    %p99 = scmp.eq.s32.totalorder %s16, 1
    %p100 = por %p98, %p99
    %p102 = scmp.ne.s32.totalorder %s85, %s101
    %p103 = scmp.eq.s32.totalorder %s16, 0
    %p104 = por %p102, %p103
    %s105 = ssub.s32 %s17, %s29
    %s106 = ssub.s32 %s18, %s25
    %s107 = sor.u32 %s105, %s106
    %p108 = scmp.eq.s32.totalorder %s107, 0
    %s110 = sadd.s32 %s109, 1
    %s111 = scalar_select %p108, %s109, %s110
    %p114 = pneg %p108
    %p115 = scmp.eq.s32.totalorder %s10, 1
    %p116 = por %p114, %p115
    %p117 = scmp.ne.s32.totalorder %s109, %s112
    %p118 = scmp.eq.s32.totalorder %s10, 0
    %p119 = por %p117, %p118
    %p120 = scmp.ne.s32.totalorder %s109, %s112
    %p121 = scmp.eq.s32.totalorder %s15, 1
    %p122 = por %p120, %p121
    %p123 = scmp.ne.s32.totalorder %s112, %s113
    %p124 = scmp.eq.s32.totalorder %s15, 0
    %p125 = por %p123, %p124
    %p126 = scmp.ne.s32.totalorder %s112, %s113
    %p127 = scmp.eq.s32.totalorder %s16, 1
    %p128 = por %p126, %p127
    %p130 = scmp.ne.s32.totalorder %s113, %s129
    %p131 = scmp.eq.s32.totalorder %s16, 0
    %p132 = por %p130, %p131
    %p133 = scmp.le.s32.totalorder 1, %s10
    %p134 = scmp.lt.s32.totalorder %s10, 3
    %p135 = pnand %p133, %p134
    %p136 = pneg %p135
    // Predicated region
    $region9: #{inconv_forward.4} parent=5 // pred_check
      _
    $region10: #{inconv_forward.4} parent=5 // pred_check_branch
      %138 = sbr.rel (%p135) target = $region12
    $region11: #{inconv_forward.4} parent=5 // pred_region
      %s139 = ssub.s32 %s10, 1
      // Predicated region
      $region13: #{inconv_forward.4} parent=11 // pred_check
        %p140 = pneg %p69
      $region14: #{inconv_forward.4} parent=11 // pred_check_branch
        %142 = sbr.rel (%p140) target = $region16
      $region15: #{inconv_forward.4} parent=11 // pred_region
        _
      $region16: #{inconv_forward.4} parent=11 // pred_fallthru
        _
    $region12: #{inconv_forward.4} parent=5 // pred_fallthru
      _
    %p143 = scmp.lt.s32.totalorder %s10, 2
    // Predicated region
    $region17: #{inconv_forward.4} parent=5 // pred_check
      %p144 = pneg %p143
    $region18: #{inconv_forward.4} parent=5 // pred_check_branch
      %146 = sbr.rel (%p144) target = $region20
    $region19: #{inconv_forward.4} parent=5 // pred_region
      // Predicated region
      $region21: #{inconv_forward.4} parent=19 // pred_check
        %p147 = pneg %p42
      $region22: #{inconv_forward.4} parent=19 // pred_check_branch
        %149 = sbr.rel (%p147) target = $region24
      $region23: #{inconv_forward.4} parent=19 // pred_region
        %p150 = scmp.lt.s32.totalorder %s17, 1
        %s151 = scalar_select %p150, %s17, 1
        %s152 = smul.addr %s151, 54
        %s153 = smul.addr %s152, 4
        %s154 = scalar_lea.vmem %s0, %s153
      $region24: #{inconv_forward.4} parent=19 // pred_fallthru
        _
    $region20: #{inconv_forward.4} parent=5 // pred_fallthru
      _
    %p155 = scmp.le.s32.totalorder 1, %s10
    %p156 = scmp.lt.s32.totalorder %s10, 3
    %p157 = pnand %p155, %p156
    %p158 = pneg %p157
    // Predicated region
    $region25: #{inconv_forward.4} parent=5 // pred_check
      _
    $region26: #{inconv_forward.4} parent=5 // pred_check_branch
      %160 = sbr.rel (%p157) target = $region28
    $region27: #{inconv_forward.4} parent=5 // pred_region
      %s161 = ssub.s32 %s10, 1
      %p162 = scmp.lt.s32.totalorder %s19, 1
      %s163 = scalar_select %p162, %s19, 1
      %s164 = smul.addr %s163, 54
      %s165 = smul.addr %s164, 4
      %s166 = scalar_lea.vmem %s0, %s165
      %p167 = pneg %p48
      %p168 = pneg %p45
      %p169 = pneg %p69
      %p170 = pneg %p66
      %p171 = pneg %p97
      %p172 = pneg %p94
      %p173 = scmp.lt.s32.totalorder %s19, 1
      %s174 = scalar_select %p173, %s19, 1
      %p175 = scmp.lt.s32.totalorder %s20, 0
      %s176 = scalar_select %p175, %s20, 0
      %s177 = smul.addr %s176, 32
      %s178 = smul.addr %s174, 32
      %s179 = sadd.s32 %s177, %s178
      %s180 = smul.addr %s179, 8
      %s181 = scalar_lea.vmem %s2, %s180
      %p182 = pneg %p125
      %p183 = pneg %p122
      %p184 = scmp.lt.s32.totalorder %s19, 1
      %s185 = scalar_select %p184, %s19, 1
      %p186 = scmp.lt.s32.totalorder %s20, 0
      %s187 = scalar_select %p186, %s20, 0
      %s188 = sadd.s32 %s187, %s185
      %s189 = smul.addr %s188, 2
      %s190 = scalar_lea.vmem %s3, %s189
      %p191 = scmp.lt.s32.totalorder %s19, 1
      %s192 = scalar_select %p191, %s19, 1
      %s193 = smul.addr %s192, 54
      %s194 = smul.addr %s193, 4
      %s195 = scalar_lea.vmem %s0, %s194
      %p196 = scmp.lt.s32.totalorder %s19, 1
      %s197 = scalar_select %p196, %s19, 1
      %p198 = scmp.lt.s32.totalorder %s20, 0
      %s199 = scalar_select %p198, %s20, 0
      %s200 = smul.addr %s199, 32
      %s201 = smul.addr %s197, 32
      %s202 = sadd.s32 %s200, %s201
      %s203 = smul.addr %s202, 8
      %s204 = scalar_lea.vmem %s2, %s203
      %p205 = scmp.lt.s32.totalorder %s19, 1
      %s206 = scalar_select %p205, %s19, 1
      %p207 = scmp.lt.s32.totalorder %s20, 0
      %s208 = scalar_select %p207, %s20, 0
      %s209 = sadd.s32 %s208, %s206
      %s210 = smul.addr %s209, 2
      %s211 = scalar_lea.vmem %s3, %s210
      %s213 = smul.u32 %s20, 16
      %s214 = smul.u32 %s213, 3
      %s215 = smul.addr %s214, 4
      %s216 = scalar_lea.vmem %s195, %s215
      %v217 = vld [vmem:[%s216] sm:$0xf]
      %v218 = vld [vmem:[%s216 + $0x4] sm:$0xf]
      %v219 = vld [vmem:[%s216 + $0x8] sm:$0x1]
      %v220 = vld [vmem:[%s216 + $0xc] sm:$0xf]
      %v221 = vld [vmem:[%s216 + $0x10] sm:$0xf]
      %v222 = vld [vmem:[%s216 + $0x14] sm:$0x1]
      %v223 = vld [vmem:[%s216 + $0x18] sm:$0xf]
      %v224 = vld [vmem:[%s216 + $0x1c] sm:$0xf]
      %v225 = vld [vmem:[%s216 + $0x20] sm:$0x1]
      %v226 = vld [vmem:[%s216 + $0x24] sm:$0xf]
      %v227 = vld [vmem:[%s216 + $0x28] sm:$0xf]
      %v228 = vld [vmem:[%s216 + $0x2c] sm:$0x1]
      %v229 = vld [vmem:[%s216 + $0x30] sm:$0xf]
      %v230 = vld [vmem:[%s216 + $0x34] sm:$0xf]
      %v231 = vld [vmem:[%s216 + $0x38] sm:$0x1]
      %v232 = vld [vmem:[%s216 + $0x3c] sm:$0xf]
      %v233 = vld [vmem:[%s216 + $0x40] sm:$0xf]
      %v234 = vld [vmem:[%s216 + $0x44] sm:$0x1]
      %v235 = vld [vmem:[%s216 + $0x48] sm:$0xf]
      %v236 = vld [vmem:[%s216 + $0x4c] sm:$0xf]
      %v237 = vld [vmem:[%s216 + $0x50] sm:$0x1]
      %v238 = vld [vmem:[%s216 + $0x54] sm:$0xf]
      %v239 = vld [vmem:[%s216 + $0x58] sm:$0xf]
      %v240 = vld [vmem:[%s216 + $0x5c] sm:$0x1]
      %v241 = vld [vmem:[%s216 + $0x60] sm:$0xf]
      %v242 = vld [vmem:[%s216 + $0x64] sm:$0xf]
      %v243 = vld [vmem:[%s216 + $0x68] sm:$0x1]
      %v244 = vld [vmem:[%s216 + $0x6c] sm:$0xf]
      %v245 = vld [vmem:[%s216 + $0x70] sm:$0xf]
      %v246 = vld [vmem:[%s216 + $0x74] sm:$0x1]
      %v247 = vld [vmem:[%s216 + $0x78] sm:$0xf]
      %v248 = vld [vmem:[%s216 + $0x7c] sm:$0xf]
      %v249 = vld [vmem:[%s216 + $0x80] sm:$0x1]
      %v250 = vld [vmem:[%s216 + $0x84] sm:$0xf]
      %v251 = vld [vmem:[%s216 + $0x88] sm:$0xf]
      %v252 = vld [vmem:[%s216 + $0x8c] sm:$0x1]
      %v253 = vld [vmem:[%s216 + $0x90] sm:$0xf]
      %v254 = vld [vmem:[%s216 + $0x94] sm:$0xf]
      %v255 = vld [vmem:[%s216 + $0x98] sm:$0x1]
      %v256 = vld [vmem:[%s216 + $0x9c] sm:$0xf]
      %v257 = vld [vmem:[%s216 + $0xa0] sm:$0xf]
      %v258 = vld [vmem:[%s216 + $0xa4] sm:$0x1]
      %v259 = vld [vmem:[%s216 + $0xa8] sm:$0xf]
      %v260 = vld [vmem:[%s216 + $0xac] sm:$0xf]
      %v261 = vld [vmem:[%s216 + $0xb0] sm:$0x1]
      %v262 = vld [vmem:[%s216 + $0xb4] sm:$0xf]
      %v263 = vld [vmem:[%s216 + $0xb8] sm:$0xf]
      %v264 = vld [vmem:[%s216 + $0xbc] sm:$0x1]
      %s265 = sadd.s32 %s213, 1
      %s266 = smul.u32 %s265, 3
      %s267 = smul.addr %s266, 4
      %s268 = scalar_lea.vmem %s195, %s267
      %v269 = vld [vmem:[%s268] sm:$0xf]
      %v270 = vld [vmem:[%s268 + $0x4] sm:$0xf]
      %v271 = vld [vmem:[%s268 + $0x8] sm:$0x1]
      %v272 = vld [vmem:[%s268 + $0xc] sm:$0xf]
      %v273 = vld [vmem:[%s268 + $0x10] sm:$0xf]
      %v274 = vld [vmem:[%s268 + $0x14] sm:$0x1]
      %v275 = vld [vmem:[%s268 + $0x18] sm:$0xf]
      %v276 = vld [vmem:[%s268 + $0x1c] sm:$0xf]
      %v277 = vld [vmem:[%s268 + $0x20] sm:$0x1]
      %v278 = vld [vmem:[%s268 + $0x24] sm:$0xf]
      %v279 = vld [vmem:[%s268 + $0x28] sm:$0xf]
      %v280 = vld [vmem:[%s268 + $0x2c] sm:$0x1]
      %v281 = vld [vmem:[%s268 + $0x30] sm:$0xf]
      %v282 = vld [vmem:[%s268 + $0x34] sm:$0xf]
      %v283 = vld [vmem:[%s268 + $0x38] sm:$0x1]
      %v284 = vld [vmem:[%s268 + $0x3c] sm:$0xf]
      %v285 = vld [vmem:[%s268 + $0x40] sm:$0xf]
      %v286 = vld [vmem:[%s268 + $0x44] sm:$0x1]
      %v287 = vld [vmem:[%s268 + $0x48] sm:$0xf]
      %v288 = vld [vmem:[%s268 + $0x4c] sm:$0xf]
      %v289 = vld [vmem:[%s268 + $0x50] sm:$0x1]
      %v290 = vld [vmem:[%s268 + $0x54] sm:$0xf]
      %v291 = vld [vmem:[%s268 + $0x58] sm:$0xf]
      %v292 = vld [vmem:[%s268 + $0x5c] sm:$0x1]
      %v293 = vld [vmem:[%s268 + $0x60] sm:$0xf]
      %v294 = vld [vmem:[%s268 + $0x64] sm:$0xf]
      %v295 = vld [vmem:[%s268 + $0x68] sm:$0x1]
      %v296 = vld [vmem:[%s268 + $0x6c] sm:$0xf]
      %v297 = vld [vmem:[%s268 + $0x70] sm:$0xf]
      %v298 = vld [vmem:[%s268 + $0x74] sm:$0x1]
      %v299 = vld [vmem:[%s268 + $0x78] sm:$0xf]
      %v300 = vld [vmem:[%s268 + $0x7c] sm:$0xf]
      %v301 = vld [vmem:[%s268 + $0x80] sm:$0x1]
      %v302 = vld [vmem:[%s268 + $0x84] sm:$0xf]
      %v303 = vld [vmem:[%s268 + $0x88] sm:$0xf]
      %v304 = vld [vmem:[%s268 + $0x8c] sm:$0x1]
      %v305 = vld [vmem:[%s268 + $0x90] sm:$0xf]
      %v306 = vld [vmem:[%s268 + $0x94] sm:$0xf]
      %v307 = vld [vmem:[%s268 + $0x98] sm:$0x1]
      %v308 = vld [vmem:[%s268 + $0x9c] sm:$0xf]
      %v309 = vld [vmem:[%s268 + $0xa0] sm:$0xf]
      %v310 = vld [vmem:[%s268 + $0xa4] sm:$0x1]
      %v311 = vld [vmem:[%s268 + $0xa8] sm:$0xf]
      %v312 = vld [vmem:[%s268 + $0xac] sm:$0xf]
      %v313 = vld [vmem:[%s268 + $0xb0] sm:$0x1]
      %v314 = vld [vmem:[%s268 + $0xb4] sm:$0xf]
      %v315 = vld [vmem:[%s268 + $0xb8] sm:$0xf]
      %v316 = vld [vmem:[%s268 + $0xbc] sm:$0x1]
      %s317 = sadd.s32 %s213, 2
      %s318 = smul.u32 %s317, 3
      %s319 = smul.addr %s318, 4
      %s320 = scalar_lea.vmem %s195, %s319
      %v321 = vld [vmem:[%s320] sm:$0xf]
      %v322 = vld [vmem:[%s320 + $0x4] sm:$0xf]
      %v323 = vld [vmem:[%s320 + $0x8] sm:$0x1]
      %v324 = vld [vmem:[%s320 + $0xc] sm:$0xf]
      %v325 = vld [vmem:[%s320 + $0x10] sm:$0xf]
      %v326 = vld [vmem:[%s320 + $0x14] sm:$0x1]
      %v327 = vld [vmem:[%s320 + $0x18] sm:$0xf]
      %v328 = vld [vmem:[%s320 + $0x1c] sm:$0xf]
      %v329 = vld [vmem:[%s320 + $0x20] sm:$0x1]
      %v330 = vld [vmem:[%s320 + $0x24] sm:$0xf]
      %v331 = vld [vmem:[%s320 + $0x28] sm:$0xf]
      %v332 = vld [vmem:[%s320 + $0x2c] sm:$0x1]
      %v333 = vld [vmem:[%s320 + $0x30] sm:$0xf]
      %v334 = vld [vmem:[%s320 + $0x34] sm:$0xf]
      %v335 = vld [vmem:[%s320 + $0x38] sm:$0x1]
      %v336 = vld [vmem:[%s320 + $0x3c] sm:$0xf]
      %v337 = vld [vmem:[%s320 + $0x40] sm:$0xf]
      %v338 = vld [vmem:[%s320 + $0x44] sm:$0x1]
      %v339 = vld [vmem:[%s320 + $0x48] sm:$0xf]
      %v340 = vld [vmem:[%s320 + $0x4c] sm:$0xf]
      %v341 = vld [vmem:[%s320 + $0x50] sm:$0x1]
      %v342 = vld [vmem:[%s320 + $0x54] sm:$0xf]
      %v343 = vld [vmem:[%s320 + $0x58] sm:$0xf]
      %v344 = vld [vmem:[%s320 + $0x5c] sm:$0x1]
      %v345 = vld [vmem:[%s320 + $0x60] sm:$0xf]
      %v346 = vld [vmem:[%s320 + $0x64] sm:$0xf]
      %v347 = vld [vmem:[%s320 + $0x68] sm:$0x1]
      %v348 = vld [vmem:[%s320 + $0x6c] sm:$0xf]
      %v349 = vld [vmem:[%s320 + $0x70] sm:$0xf]
      %v350 = vld [vmem:[%s320 + $0x74] sm:$0x1]
      %v351 = vld [vmem:[%s320 + $0x78] sm:$0xf]
      %v352 = vld [vmem:[%s320 + $0x7c] sm:$0xf]
      %v353 = vld [vmem:[%s320 + $0x80] sm:$0x1]
      %v354 = vld [vmem:[%s320 + $0x84] sm:$0xf]
      %v355 = vld [vmem:[%s320 + $0x88] sm:$0xf]
      %v356 = vld [vmem:[%s320 + $0x8c] sm:$0x1]
      %v357 = vld [vmem:[%s320 + $0x90] sm:$0xf]
      %v358 = vld [vmem:[%s320 + $0x94] sm:$0xf]
      %v359 = vld [vmem:[%s320 + $0x98] sm:$0x1]
      %v360 = vld [vmem:[%s320 + $0x9c] sm:$0xf]
      %v361 = vld [vmem:[%s320 + $0xa0] sm:$0xf]
      %v362 = vld [vmem:[%s320 + $0xa4] sm:$0x1]
      %v363 = vld [vmem:[%s320 + $0xa8] sm:$0xf]
      %v364 = vld [vmem:[%s320 + $0xac] sm:$0xf]
      %v365 = vld [vmem:[%s320 + $0xb0] sm:$0x1]
      %v366 = vld [vmem:[%s320 + $0xb4] sm:$0xf]
      %v367 = vld [vmem:[%s320 + $0xb8] sm:$0xf]
      %v368 = vld [vmem:[%s320 + $0xbc] sm:$0x1]
      %v401 = vunpack.c.l.b16 %v217
      %v402 = vunpack.c.l.b16 %v218
      %v403 = vunpack.c.l.b16 %v220
      %v404 = vunpack.c.l.b16 %v221
      %v405 = vunpack.c.l.b16 %v223
      %v406 = vunpack.c.l.b16 %v224
      %v407 = vunpack.c.l.b16 %v226
      %v408 = vunpack.c.l.b16 %v227
      %v409 = vunpack.c.l.b16 %v229
      %v410 = vunpack.c.l.b16 %v230
      %v411 = vunpack.c.l.b16 %v232
      %v412 = vunpack.c.l.b16 %v233
      %v413 = vunpack.c.l.b16 %v235
      %v414 = vunpack.c.l.b16 %v236
      %v415 = vunpack.c.l.b16 %v238
      %v416 = vunpack.c.l.b16 %v239
      %v417 = vunpack.c.l.b16 %v241
      %v418 = vunpack.c.l.b16 %v242
      %v419 = vunpack.c.l.b16 %v244
      %v420 = vunpack.c.l.b16 %v245
      %v421 = vunpack.c.l.b16 %v247
      %v422 = vunpack.c.l.b16 %v248
      %v423 = vunpack.c.l.b16 %v250
      %v424 = vunpack.c.l.b16 %v251
      %v425 = vunpack.c.l.b16 %v253
      %v426 = vunpack.c.l.b16 %v254
      %v427 = vunpack.c.l.b16 %v256
      %v428 = vunpack.c.l.b16 %v257
      %v429 = vunpack.c.l.b16 %v259
      %v430 = vunpack.c.l.b16 %v260
      %v431 = vunpack.c.l.b16 %v262
      %v432 = vunpack.c.l.b16 %v263
      %v433 = vpack.c.b16 %v402, %v401
      %v434 = vpack.c.b16 %v404, %v403
      %v435 = vpack.c.b16 %v406, %v405
      %v436 = vpack.c.b16 %v408, %v407
      %v437 = vpack.c.b16 %v410, %v409
      %v438 = vpack.c.b16 %v412, %v411
      %v439 = vpack.c.b16 %v414, %v413
      %v440 = vpack.c.b16 %v416, %v415
      %v441 = vpack.c.b16 %v418, %v417
      %v442 = vpack.c.b16 %v420, %v419
      %v443 = vpack.c.b16 %v422, %v421
      %v444 = vpack.c.b16 %v424, %v423
      %v445 = vpack.c.b16 %v426, %v425
      %v446 = vpack.c.b16 %v428, %v427
      %v447 = vpack.c.b16 %v430, %v429
      %v448 = vpack.c.b16 %v432, %v431
      %v465 = vunpack.c.l.b16 %v219
      %v466 = vunpack.c.l.b16 %v222
      %v467 = vunpack.c.l.b16 %v225
      %v468 = vunpack.c.l.b16 %v228
      %v469 = vunpack.c.l.b16 %v231
      %v470 = vunpack.c.l.b16 %v234
      %v471 = vunpack.c.l.b16 %v237
      %v472 = vunpack.c.l.b16 %v240
      %v473 = vunpack.c.l.b16 %v243
      %v474 = vunpack.c.l.b16 %v246
      %v475 = vunpack.c.l.b16 %v249
      %v476 = vunpack.c.l.b16 %v252
      %v477 = vunpack.c.l.b16 %v255
      %v478 = vunpack.c.l.b16 %v258
      %v479 = vunpack.c.l.b16 %v261
      %v480 = vunpack.c.l.b16 %v264
      %v481 = vpack.c.b16 %v465, %v465
      %v482 = vpack.c.b16 %v466, %v466
      %v483 = vpack.c.b16 %v467, %v467
      %v484 = vpack.c.b16 %v468, %v468
      %v485 = vpack.c.b16 %v469, %v469
      %v486 = vpack.c.b16 %v470, %v470
      %v487 = vpack.c.b16 %v471, %v471
      %v488 = vpack.c.b16 %v472, %v472
      %v489 = vpack.c.b16 %v473, %v473
      %v490 = vpack.c.b16 %v474, %v474
      %v491 = vpack.c.b16 %v475, %v475
      %v492 = vpack.c.b16 %v476, %v476
      %v493 = vpack.c.b16 %v477, %v477
      %v494 = vpack.c.b16 %v478, %v478
      %v495 = vpack.c.b16 %v479, %v479
      %v496 = vpack.c.b16 %v480, %v480
      %vm497 = vsmask.f32 7424
      %v499 = vshrl.u32 %v433, 16
      %v501 = vshll.u32 %v433, 16
      %v503 = vrot.slane %v501, 1
      %v504 = vor.u32 %v499, %v503
      %v506 = vshll.u32 %v481, 16
      %v508 = vrot.slane %v506, 1
      %v509 = vsel %vm497, %v504, %v508
      %v511 = vshrl.u32 %v434, 16
      %v513 = vshll.u32 %v434, 16
      %v515 = vrot.slane %v513, 1
      %v516 = vor.u32 %v511, %v515
      %v518 = vshll.u32 %v482, 16
      %v520 = vrot.slane %v518, 1
      %v521 = vsel %vm497, %v516, %v520
      %v523 = vshrl.u32 %v435, 16
      %v525 = vshll.u32 %v435, 16
      %v527 = vrot.slane %v525, 1
      %v528 = vor.u32 %v523, %v527
      %v530 = vshll.u32 %v483, 16
      %v532 = vrot.slane %v530, 1
      %v533 = vsel %vm497, %v528, %v532
      %v535 = vshrl.u32 %v436, 16
      %v537 = vshll.u32 %v436, 16
      %v539 = vrot.slane %v537, 1
      %v540 = vor.u32 %v535, %v539
      %v542 = vshll.u32 %v484, 16
      %v544 = vrot.slane %v542, 1
      %v545 = vsel %vm497, %v540, %v544
      %v547 = vshrl.u32 %v437, 16
      %v549 = vshll.u32 %v437, 16
      %v551 = vrot.slane %v549, 1
      %v552 = vor.u32 %v547, %v551
      %v554 = vshll.u32 %v485, 16
      %v556 = vrot.slane %v554, 1
      %v557 = vsel %vm497, %v552, %v556
      %v559 = vshrl.u32 %v438, 16
      %v561 = vshll.u32 %v438, 16
      %v563 = vrot.slane %v561, 1
      %v564 = vor.u32 %v559, %v563
      %v566 = vshll.u32 %v486, 16
      %v568 = vrot.slane %v566, 1
      %v569 = vsel %vm497, %v564, %v568
      %v571 = vshrl.u32 %v439, 16
      %v573 = vshll.u32 %v439, 16
      %v575 = vrot.slane %v573, 1
      %v576 = vor.u32 %v571, %v575
      %v578 = vshll.u32 %v487, 16
      %v580 = vrot.slane %v578, 1
      %v581 = vsel %vm497, %v576, %v580
      %v583 = vshrl.u32 %v440, 16
      %v585 = vshll.u32 %v440, 16
      %v587 = vrot.slane %v585, 1
      %v588 = vor.u32 %v583, %v587
      %v590 = vshll.u32 %v488, 16
      %v592 = vrot.slane %v590, 1
      %v593 = vsel %vm497, %v588, %v592
      %v595 = vshrl.u32 %v441, 16
      %v597 = vshll.u32 %v441, 16
      %v599 = vrot.slane %v597, 1
      %v600 = vor.u32 %v595, %v599
      %v602 = vshll.u32 %v489, 16
      %v604 = vrot.slane %v602, 1
      %v605 = vsel %vm497, %v600, %v604
      %v607 = vshrl.u32 %v442, 16
      %v609 = vshll.u32 %v442, 16
      %v611 = vrot.slane %v609, 1
      %v612 = vor.u32 %v607, %v611
      %v614 = vshll.u32 %v490, 16
      %v616 = vrot.slane %v614, 1
      %v617 = vsel %vm497, %v612, %v616
      %v619 = vshrl.u32 %v443, 16
      %v621 = vshll.u32 %v443, 16
      %v623 = vrot.slane %v621, 1
      %v624 = vor.u32 %v619, %v623
      %v626 = vshll.u32 %v491, 16
      %v628 = vrot.slane %v626, 1
      %v629 = vsel %vm497, %v624, %v628
      %v631 = vshrl.u32 %v444, 16
      %v633 = vshll.u32 %v444, 16
      %v635 = vrot.slane %v633, 1
      %v636 = vor.u32 %v631, %v635
      %v638 = vshll.u32 %v492, 16
      %v640 = vrot.slane %v638, 1
      %v641 = vsel %vm497, %v636, %v640
      %v643 = vshrl.u32 %v445, 16
      %v645 = vshll.u32 %v445, 16
      %v647 = vrot.slane %v645, 1
      %v648 = vor.u32 %v643, %v647
      %v650 = vshll.u32 %v493, 16
      %v652 = vrot.slane %v650, 1
      %v653 = vsel %vm497, %v648, %v652
      %v655 = vshrl.u32 %v446, 16
      %v657 = vshll.u32 %v446, 16
      %v659 = vrot.slane %v657, 1
      %v660 = vor.u32 %v655, %v659
      %v662 = vshll.u32 %v494, 16
      %v664 = vrot.slane %v662, 1
      %v665 = vsel %vm497, %v660, %v664
      %v667 = vshrl.u32 %v447, 16
      %v669 = vshll.u32 %v447, 16
      %v671 = vrot.slane %v669, 1
      %v672 = vor.u32 %v667, %v671
      %v674 = vshll.u32 %v495, 16
      %v676 = vrot.slane %v674, 1
      %v677 = vsel %vm497, %v672, %v676
      %v679 = vshrl.u32 %v448, 16
      %v681 = vshll.u32 %v448, 16
      %v683 = vrot.slane %v681, 1
      %v684 = vor.u32 %v679, %v683
      %v686 = vshll.u32 %v496, 16
      %v688 = vrot.slane %v686, 1
      %v689 = vsel %vm497, %v684, %v688
      %690 = vrot.lane.b32.xlu0 %v509, 4
      %v691 = vpop.permute.xlu0 %690
      %692 = vrot.lane.b32.xlu0 %v521, 4
      %v693 = vpop.permute.xlu0 %692
      %694 = vrot.lane.b32.xlu0 %v533, 4
      %v695 = vpop.permute.xlu0 %694
      %696 = vrot.lane.b32.xlu0 %v545, 4
      %v697 = vpop.permute.xlu0 %696
      %698 = vrot.lane.b32.xlu0 %v557, 4
      %v699 = vpop.permute.xlu0 %698
      %700 = vrot.lane.b32.xlu0 %v569, 4
      %v701 = vpop.permute.xlu0 %700
      %702 = vrot.lane.b32.xlu0 %v581, 4
      %v703 = vpop.permute.xlu0 %702
      %704 = vrot.lane.b32.xlu0 %v593, 4
      %v705 = vpop.permute.xlu0 %704
      %706 = vrot.lane.b32.xlu0 %v605, 4
      %v707 = vpop.permute.xlu0 %706
      %708 = vrot.lane.b32.xlu0 %v617, 4
      %v709 = vpop.permute.xlu0 %708
      %710 = vrot.lane.b32.xlu0 %v629, 4
      %v711 = vpop.permute.xlu0 %710
      %712 = vrot.lane.b32.xlu0 %v641, 4
      %v713 = vpop.permute.xlu0 %712
      %714 = vrot.lane.b32.xlu0 %v653, 4
      %v715 = vpop.permute.xlu0 %714
      %716 = vrot.lane.b32.xlu0 %v665, 4
      %v717 = vpop.permute.xlu0 %716
      %718 = vrot.lane.b32.xlu0 %v677, 4
      %v719 = vpop.permute.xlu0 %718
      %720 = vrot.lane.b32.xlu0 %v689, 4
      %v721 = vpop.permute.xlu0 %720
      %vm722 = vcmask 1046528
      %v723 = vrot.slane %v433, 1
      %v724 = vrot.slane %v481, 1
      %v725 = vsel %vm722, %v723, %v724
      %v726 = vrot.slane %v434, 1
      %v727 = vrot.slane %v482, 1
      %v728 = vsel %vm722, %v726, %v727
      %v729 = vrot.slane %v435, 1
      %v730 = vrot.slane %v483, 1
      %v731 = vsel %vm722, %v729, %v730
      %v732 = vrot.slane %v436, 1
      %v733 = vrot.slane %v484, 1
      %v734 = vsel %vm722, %v732, %v733
      %v735 = vrot.slane %v437, 1
      %v736 = vrot.slane %v485, 1
      %v737 = vsel %vm722, %v735, %v736
      %v738 = vrot.slane %v438, 1
      %v739 = vrot.slane %v486, 1
      %v740 = vsel %vm722, %v738, %v739
      %v741 = vrot.slane %v439, 1
      %v742 = vrot.slane %v487, 1
      %v743 = vsel %vm722, %v741, %v742
      %v744 = vrot.slane %v440, 1
      %v745 = vrot.slane %v488, 1
      %v746 = vsel %vm722, %v744, %v745
      %v747 = vrot.slane %v441, 1
      %v748 = vrot.slane %v489, 1
      %v749 = vsel %vm722, %v747, %v748
      %v750 = vrot.slane %v442, 1
      %v751 = vrot.slane %v490, 1
      %v752 = vsel %vm722, %v750, %v751
      %v753 = vrot.slane %v443, 1
      %v754 = vrot.slane %v491, 1
      %v755 = vsel %vm722, %v753, %v754
      %v756 = vrot.slane %v444, 1
      %v757 = vrot.slane %v492, 1
      %v758 = vsel %vm722, %v756, %v757
      %v759 = vrot.slane %v445, 1
      %v760 = vrot.slane %v493, 1
      %v761 = vsel %vm722, %v759, %v760
      %v762 = vrot.slane %v446, 1
      %v763 = vrot.slane %v494, 1
      %v764 = vsel %vm722, %v762, %v763
      %v765 = vrot.slane %v447, 1
      %v766 = vrot.slane %v495, 1
      %v767 = vsel %vm722, %v765, %v766
      %v768 = vrot.slane %v448, 1
      %v769 = vrot.slane %v496, 1
      %v770 = vsel %vm722, %v768, %v769
      %771 = vrot.lane.b32.xlu0 %v725, 8
      %v772 = vpop.permute.xlu0 %771
      %773 = vrot.lane.b32.xlu0 %v728, 8
      %v774 = vpop.permute.xlu0 %773
      %775 = vrot.lane.b32.xlu0 %v731, 8
      %v776 = vpop.permute.xlu0 %775
      %777 = vrot.lane.b32.xlu0 %v734, 8
      %v778 = vpop.permute.xlu0 %777
      %779 = vrot.lane.b32.xlu0 %v737, 8
      %v780 = vpop.permute.xlu0 %779
      %781 = vrot.lane.b32.xlu0 %v740, 8
      %v782 = vpop.permute.xlu0 %781
      %783 = vrot.lane.b32.xlu0 %v743, 8
      %v784 = vpop.permute.xlu0 %783
      %785 = vrot.lane.b32.xlu0 %v746, 8
      %v786 = vpop.permute.xlu0 %785
      %787 = vrot.lane.b32.xlu0 %v749, 8
      %v788 = vpop.permute.xlu0 %787
      %789 = vrot.lane.b32.xlu0 %v752, 8
      %v790 = vpop.permute.xlu0 %789
      %791 = vrot.lane.b32.xlu0 %v755, 8
      %v792 = vpop.permute.xlu0 %791
      %793 = vrot.lane.b32.xlu0 %v758, 8
      %v794 = vpop.permute.xlu0 %793
      %795 = vrot.lane.b32.xlu0 %v761, 8
      %v796 = vpop.permute.xlu0 %795
      %797 = vrot.lane.b32.xlu0 %v764, 8
      %v798 = vpop.permute.xlu0 %797
      %799 = vrot.lane.b32.xlu0 %v767, 8
      %v800 = vpop.permute.xlu0 %799
      %801 = vrot.lane.b32.xlu0 %v770, 8
      %v802 = vpop.permute.xlu0 %801
      %v835 = vunpack.c.l.b16 %v269
      %v836 = vunpack.c.l.b16 %v270
      %v837 = vunpack.c.l.b16 %v272
      %v838 = vunpack.c.l.b16 %v273
      %v839 = vunpack.c.l.b16 %v275
      %v840 = vunpack.c.l.b16 %v276
      %v841 = vunpack.c.l.b16 %v278
      %v842 = vunpack.c.l.b16 %v279
      %v843 = vunpack.c.l.b16 %v281
      %v844 = vunpack.c.l.b16 %v282
      %v845 = vunpack.c.l.b16 %v284
      %v846 = vunpack.c.l.b16 %v285
      %v847 = vunpack.c.l.b16 %v287
      %v848 = vunpack.c.l.b16 %v288
      %v849 = vunpack.c.l.b16 %v290
      %v850 = vunpack.c.l.b16 %v291
      %v851 = vunpack.c.l.b16 %v293
      %v852 = vunpack.c.l.b16 %v294
      %v853 = vunpack.c.l.b16 %v296
      %v854 = vunpack.c.l.b16 %v297
      %v855 = vunpack.c.l.b16 %v299
      %v856 = vunpack.c.l.b16 %v300
      %v857 = vunpack.c.l.b16 %v302
      %v858 = vunpack.c.l.b16 %v303
      %v859 = vunpack.c.l.b16 %v305
      %v860 = vunpack.c.l.b16 %v306
      %v861 = vunpack.c.l.b16 %v308
      %v862 = vunpack.c.l.b16 %v309
      %v863 = vunpack.c.l.b16 %v311
      %v864 = vunpack.c.l.b16 %v312
      %v865 = vunpack.c.l.b16 %v314
      %v866 = vunpack.c.l.b16 %v315
      %v867 = vpack.c.b16 %v836, %v835
      %v868 = vpack.c.b16 %v838, %v837
      %v869 = vpack.c.b16 %v840, %v839
      %v870 = vpack.c.b16 %v842, %v841
      %v871 = vpack.c.b16 %v844, %v843
      %v872 = vpack.c.b16 %v846, %v845
      %v873 = vpack.c.b16 %v848, %v847
      %v874 = vpack.c.b16 %v850, %v849
      %v875 = vpack.c.b16 %v852, %v851
      %v876 = vpack.c.b16 %v854, %v853
      %v877 = vpack.c.b16 %v856, %v855
      %v878 = vpack.c.b16 %v858, %v857
      %v879 = vpack.c.b16 %v860, %v859
      %v880 = vpack.c.b16 %v862, %v861
      %v881 = vpack.c.b16 %v864, %v863
      %v882 = vpack.c.b16 %v866, %v865
      %883 = vrot.lane.b32.xlu0 %v867, 12
      %v884 = vpop.permute.xlu0 %883
      %885 = vrot.lane.b32.xlu0 %v868, 12
      %v886 = vpop.permute.xlu0 %885
      %887 = vrot.lane.b32.xlu0 %v869, 12
      %v888 = vpop.permute.xlu0 %887
      %889 = vrot.lane.b32.xlu0 %v870, 12
      %v890 = vpop.permute.xlu0 %889
      %891 = vrot.lane.b32.xlu0 %v871, 12
      %v892 = vpop.permute.xlu0 %891
      %893 = vrot.lane.b32.xlu0 %v872, 12
      %v894 = vpop.permute.xlu0 %893
      %895 = vrot.lane.b32.xlu0 %v873, 12
      %v896 = vpop.permute.xlu0 %895
      %897 = vrot.lane.b32.xlu0 %v874, 12
      %v898 = vpop.permute.xlu0 %897
      %899 = vrot.lane.b32.xlu0 %v875, 12
      %v900 = vpop.permute.xlu0 %899
      %901 = vrot.lane.b32.xlu0 %v876, 12
      %v902 = vpop.permute.xlu0 %901
      %903 = vrot.lane.b32.xlu0 %v877, 12
      %v904 = vpop.permute.xlu0 %903
      %905 = vrot.lane.b32.xlu0 %v878, 12
      %v906 = vpop.permute.xlu0 %905
      %907 = vrot.lane.b32.xlu0 %v879, 12
      %v908 = vpop.permute.xlu0 %907
      %909 = vrot.lane.b32.xlu0 %v880, 12
      %v910 = vpop.permute.xlu0 %909
      %911 = vrot.lane.b32.xlu0 %v881, 12
      %v912 = vpop.permute.xlu0 %911
      %913 = vrot.lane.b32.xlu0 %v882, 12
      %v914 = vpop.permute.xlu0 %913
      %v931 = vunpack.c.l.b16 %v271
      %v932 = vunpack.c.l.b16 %v274
      %v933 = vunpack.c.l.b16 %v277
      %v934 = vunpack.c.l.b16 %v280
      %v935 = vunpack.c.l.b16 %v283
      %v936 = vunpack.c.l.b16 %v286
      %v937 = vunpack.c.l.b16 %v289
      %v938 = vunpack.c.l.b16 %v292
      %v939 = vunpack.c.l.b16 %v295
      %v940 = vunpack.c.l.b16 %v298
      %v941 = vunpack.c.l.b16 %v301
      %v942 = vunpack.c.l.b16 %v304
      %v943 = vunpack.c.l.b16 %v307
      %v944 = vunpack.c.l.b16 %v310
      %v945 = vunpack.c.l.b16 %v313
      %v946 = vunpack.c.l.b16 %v316
      %v947 = vpack.c.b16 %v931, %v931
      %v948 = vpack.c.b16 %v932, %v932
      %v949 = vpack.c.b16 %v933, %v933
      %v950 = vpack.c.b16 %v934, %v934
      %v951 = vpack.c.b16 %v935, %v935
      %v952 = vpack.c.b16 %v936, %v936
      %v953 = vpack.c.b16 %v937, %v937
      %v954 = vpack.c.b16 %v938, %v938
      %v955 = vpack.c.b16 %v939, %v939
      %v956 = vpack.c.b16 %v940, %v940
      %v957 = vpack.c.b16 %v941, %v941
      %v958 = vpack.c.b16 %v942, %v942
      %v959 = vpack.c.b16 %v943, %v943
      %v960 = vpack.c.b16 %v944, %v944
      %v961 = vpack.c.b16 %v945, %v945
      %v962 = vpack.c.b16 %v946, %v946
      %v964 = vshrl.u32 %v867, 16
      %v966 = vshll.u32 %v867, 16
      %v968 = vrot.slane %v966, 1
      %v969 = vor.u32 %v964, %v968
      %v971 = vshll.u32 %v947, 16
      %v973 = vrot.slane %v971, 1
      %v974 = vsel %vm497, %v969, %v973
      %v976 = vshrl.u32 %v868, 16
      %v978 = vshll.u32 %v868, 16
      %v980 = vrot.slane %v978, 1
      %v981 = vor.u32 %v976, %v980
      %v983 = vshll.u32 %v948, 16
      %v985 = vrot.slane %v983, 1
      %v986 = vsel %vm497, %v981, %v985
      %v988 = vshrl.u32 %v869, 16
      %v990 = vshll.u32 %v869, 16
      %v992 = vrot.slane %v990, 1
      %v993 = vor.u32 %v988, %v992
      %v995 = vshll.u32 %v949, 16
      %v997 = vrot.slane %v995, 1
      %v998 = vsel %vm497, %v993, %v997
      %v1000 = vshrl.u32 %v870, 16
      %v1002 = vshll.u32 %v870, 16
      %v1004 = vrot.slane %v1002, 1
      %v1005 = vor.u32 %v1000, %v1004
      %v1007 = vshll.u32 %v950, 16
      %v1009 = vrot.slane %v1007, 1
      %v1010 = vsel %vm497, %v1005, %v1009
      %v1012 = vshrl.u32 %v871, 16
      %v1014 = vshll.u32 %v871, 16
      %v1016 = vrot.slane %v1014, 1
      %v1017 = vor.u32 %v1012, %v1016
      %v1019 = vshll.u32 %v951, 16
      %v1021 = vrot.slane %v1019, 1
      %v1022 = vsel %vm497, %v1017, %v1021
      %v1024 = vshrl.u32 %v872, 16
      %v1026 = vshll.u32 %v872, 16
      %v1028 = vrot.slane %v1026, 1
      %v1029 = vor.u32 %v1024, %v1028
      %v1031 = vshll.u32 %v952, 16
      %v1033 = vrot.slane %v1031, 1
      %v1034 = vsel %vm497, %v1029, %v1033
      %v1036 = vshrl.u32 %v873, 16
      %v1038 = vshll.u32 %v873, 16
      %v1040 = vrot.slane %v1038, 1
      %v1041 = vor.u32 %v1036, %v1040
      %v1043 = vshll.u32 %v953, 16
      %v1045 = vrot.slane %v1043, 1
      %v1046 = vsel %vm497, %v1041, %v1045
      %v1048 = vshrl.u32 %v874, 16
      %v1050 = vshll.u32 %v874, 16
      %v1052 = vrot.slane %v1050, 1
      %v1053 = vor.u32 %v1048, %v1052
      %v1055 = vshll.u32 %v954, 16
      %v1057 = vrot.slane %v1055, 1
      %v1058 = vsel %vm497, %v1053, %v1057
      %v1060 = vshrl.u32 %v875, 16
      %v1062 = vshll.u32 %v875, 16
      %v1064 = vrot.slane %v1062, 1
      %v1065 = vor.u32 %v1060, %v1064
      %v1067 = vshll.u32 %v955, 16
      %v1069 = vrot.slane %v1067, 1
      %v1070 = vsel %vm497, %v1065, %v1069
      %v1072 = vshrl.u32 %v876, 16
      %v1074 = vshll.u32 %v876, 16
      %v1076 = vrot.slane %v1074, 1
      %v1077 = vor.u32 %v1072, %v1076
      %v1079 = vshll.u32 %v956, 16
      %v1081 = vrot.slane %v1079, 1
      %v1082 = vsel %vm497, %v1077, %v1081
      %v1084 = vshrl.u32 %v877, 16
      %v1086 = vshll.u32 %v877, 16
      %v1088 = vrot.slane %v1086, 1
      %v1089 = vor.u32 %v1084, %v1088
      %v1091 = vshll.u32 %v957, 16
      %v1093 = vrot.slane %v1091, 1
      %v1094 = vsel %vm497, %v1089, %v1093
      %v1096 = vshrl.u32 %v878, 16
      %v1098 = vshll.u32 %v878, 16
      %v1100 = vrot.slane %v1098, 1
      %v1101 = vor.u32 %v1096, %v1100
      %v1103 = vshll.u32 %v958, 16
      %v1105 = vrot.slane %v1103, 1
      %v1106 = vsel %vm497, %v1101, %v1105
      %v1108 = vshrl.u32 %v879, 16
      %v1110 = vshll.u32 %v879, 16
      %v1112 = vrot.slane %v1110, 1
      %v1113 = vor.u32 %v1108, %v1112
      %v1115 = vshll.u32 %v959, 16
      %v1117 = vrot.slane %v1115, 1
      %v1118 = vsel %vm497, %v1113, %v1117
      %v1120 = vshrl.u32 %v880, 16
      %v1122 = vshll.u32 %v880, 16
      %v1124 = vrot.slane %v1122, 1
      %v1125 = vor.u32 %v1120, %v1124
      %v1127 = vshll.u32 %v960, 16
      %v1129 = vrot.slane %v1127, 1
      %v1130 = vsel %vm497, %v1125, %v1129
      %v1132 = vshrl.u32 %v881, 16
      %v1134 = vshll.u32 %v881, 16
      %v1136 = vrot.slane %v1134, 1
      %v1137 = vor.u32 %v1132, %v1136
      %v1139 = vshll.u32 %v961, 16
      %v1141 = vrot.slane %v1139, 1
      %v1142 = vsel %vm497, %v1137, %v1141
      %v1144 = vshrl.u32 %v882, 16
      %v1146 = vshll.u32 %v882, 16
      %v1148 = vrot.slane %v1146, 1
      %v1149 = vor.u32 %v1144, %v1148
      %v1151 = vshll.u32 %v962, 16
      %v1153 = vrot.slane %v1151, 1
      %v1154 = vsel %vm497, %v1149, %v1153
      %1155 = vrot.lane.b32.xlu0 %v974, 16
      %v1156 = vpop.permute.xlu0 %1155
      %1157 = vrot.lane.b32.xlu0 %v986, 16
      %v1158 = vpop.permute.xlu0 %1157
      %1159 = vrot.lane.b32.xlu0 %v998, 16
      %v1160 = vpop.permute.xlu0 %1159
      %1161 = vrot.lane.b32.xlu0 %v1010, 16
      %v1162 = vpop.permute.xlu0 %1161
      %1163 = vrot.lane.b32.xlu0 %v1022, 16
      %v1164 = vpop.permute.xlu0 %1163
      %1165 = vrot.lane.b32.xlu0 %v1034, 16
      %v1166 = vpop.permute.xlu0 %1165
      %1167 = vrot.lane.b32.xlu0 %v1046, 16
      %v1168 = vpop.permute.xlu0 %1167
      %1169 = vrot.lane.b32.xlu0 %v1058, 16
      %v1170 = vpop.permute.xlu0 %1169
      %1171 = vrot.lane.b32.xlu0 %v1070, 16
      %v1172 = vpop.permute.xlu0 %1171
      %1173 = vrot.lane.b32.xlu0 %v1082, 16
      %v1174 = vpop.permute.xlu0 %1173
      %1175 = vrot.lane.b32.xlu0 %v1094, 16
      %v1176 = vpop.permute.xlu0 %1175
      %1177 = vrot.lane.b32.xlu0 %v1106, 16
      %v1178 = vpop.permute.xlu0 %1177
      %1179 = vrot.lane.b32.xlu0 %v1118, 16
      %v1180 = vpop.permute.xlu0 %1179
      %1181 = vrot.lane.b32.xlu0 %v1130, 16
      %v1182 = vpop.permute.xlu0 %1181
      %1183 = vrot.lane.b32.xlu0 %v1142, 16
      %v1184 = vpop.permute.xlu0 %1183
      %1185 = vrot.lane.b32.xlu0 %v1154, 16
      %v1186 = vpop.permute.xlu0 %1185
      %v1187 = vrot.slane %v867, 1
      %v1188 = vrot.slane %v947, 1
      %v1189 = vsel %vm722, %v1187, %v1188
      %v1190 = vrot.slane %v868, 1
      %v1191 = vrot.slane %v948, 1
      %v1192 = vsel %vm722, %v1190, %v1191
      %v1193 = vrot.slane %v869, 1
      %v1194 = vrot.slane %v949, 1
      %v1195 = vsel %vm722, %v1193, %v1194
      %v1196 = vrot.slane %v870, 1
      %v1197 = vrot.slane %v950, 1
      %v1198 = vsel %vm722, %v1196, %v1197
      %v1199 = vrot.slane %v871, 1
      %v1200 = vrot.slane %v951, 1
      %v1201 = vsel %vm722, %v1199, %v1200
      %v1202 = vrot.slane %v872, 1
      %v1203 = vrot.slane %v952, 1
      %v1204 = vsel %vm722, %v1202, %v1203
      %v1205 = vrot.slane %v873, 1
      %v1206 = vrot.slane %v953, 1
      %v1207 = vsel %vm722, %v1205, %v1206
      %v1208 = vrot.slane %v874, 1
      %v1209 = vrot.slane %v954, 1
      %v1210 = vsel %vm722, %v1208, %v1209
      %v1211 = vrot.slane %v875, 1
      %v1212 = vrot.slane %v955, 1
      %v1213 = vsel %vm722, %v1211, %v1212
      %v1214 = vrot.slane %v876, 1
      %v1215 = vrot.slane %v956, 1
      %v1216 = vsel %vm722, %v1214, %v1215
      %v1217 = vrot.slane %v877, 1
      %v1218 = vrot.slane %v957, 1
      %v1219 = vsel %vm722, %v1217, %v1218
      %v1220 = vrot.slane %v878, 1
      %v1221 = vrot.slane %v958, 1
      %v1222 = vsel %vm722, %v1220, %v1221
      %v1223 = vrot.slane %v879, 1
      %v1224 = vrot.slane %v959, 1
      %v1225 = vsel %vm722, %v1223, %v1224
      %v1226 = vrot.slane %v880, 1
      %v1227 = vrot.slane %v960, 1
      %v1228 = vsel %vm722, %v1226, %v1227
      %v1229 = vrot.slane %v881, 1
      %v1230 = vrot.slane %v961, 1
      %v1231 = vsel %vm722, %v1229, %v1230
      %v1232 = vrot.slane %v882, 1
      %v1233 = vrot.slane %v962, 1
      %v1234 = vsel %vm722, %v1232, %v1233
      %1235 = vrot.lane.b32.xlu0 %v1189, 20
      %v1236 = vpop.permute.xlu0 %1235
      %1237 = vrot.lane.b32.xlu0 %v1192, 20
      %v1238 = vpop.permute.xlu0 %1237
      %1239 = vrot.lane.b32.xlu0 %v1195, 20
      %v1240 = vpop.permute.xlu0 %1239
      %1241 = vrot.lane.b32.xlu0 %v1198, 20
      %v1242 = vpop.permute.xlu0 %1241
      %1243 = vrot.lane.b32.xlu0 %v1201, 20
      %v1244 = vpop.permute.xlu0 %1243
      %1245 = vrot.lane.b32.xlu0 %v1204, 20
      %v1246 = vpop.permute.xlu0 %1245
      %1247 = vrot.lane.b32.xlu0 %v1207, 20
      %v1248 = vpop.permute.xlu0 %1247
      %1249 = vrot.lane.b32.xlu0 %v1210, 20
      %v1250 = vpop.permute.xlu0 %1249
      %1251 = vrot.lane.b32.xlu0 %v1213, 20
      %v1252 = vpop.permute.xlu0 %1251
      %1253 = vrot.lane.b32.xlu0 %v1216, 20
      %v1254 = vpop.permute.xlu0 %1253
      %1255 = vrot.lane.b32.xlu0 %v1219, 20
      %v1256 = vpop.permute.xlu0 %1255
      %1257 = vrot.lane.b32.xlu0 %v1222, 20
      %v1258 = vpop.permute.xlu0 %1257
      %1259 = vrot.lane.b32.xlu0 %v1225, 20
      %v1260 = vpop.permute.xlu0 %1259
      %1261 = vrot.lane.b32.xlu0 %v1228, 20
      %v1262 = vpop.permute.xlu0 %1261
      %1263 = vrot.lane.b32.xlu0 %v1231, 20
      %v1264 = vpop.permute.xlu0 %1263
      %1265 = vrot.lane.b32.xlu0 %v1234, 20
      %v1266 = vpop.permute.xlu0 %1265
      %v1299 = vunpack.c.l.b16 %v321
      %v1300 = vunpack.c.l.b16 %v322
      %v1301 = vunpack.c.l.b16 %v324
      %v1302 = vunpack.c.l.b16 %v325
      %v1303 = vunpack.c.l.b16 %v327
      %v1304 = vunpack.c.l.b16 %v328
      %v1305 = vunpack.c.l.b16 %v330
      %v1306 = vunpack.c.l.b16 %v331
      %v1307 = vunpack.c.l.b16 %v333
      %v1308 = vunpack.c.l.b16 %v334
      %v1309 = vunpack.c.l.b16 %v336
      %v1310 = vunpack.c.l.b16 %v337
      %v1311 = vunpack.c.l.b16 %v339
      %v1312 = vunpack.c.l.b16 %v340
      %v1313 = vunpack.c.l.b16 %v342
      %v1314 = vunpack.c.l.b16 %v343
      %v1315 = vunpack.c.l.b16 %v345
      %v1316 = vunpack.c.l.b16 %v346
      %v1317 = vunpack.c.l.b16 %v348
      %v1318 = vunpack.c.l.b16 %v349
      %v1319 = vunpack.c.l.b16 %v351
      %v1320 = vunpack.c.l.b16 %v352
      %v1321 = vunpack.c.l.b16 %v354
      %v1322 = vunpack.c.l.b16 %v355
      %v1323 = vunpack.c.l.b16 %v357
      %v1324 = vunpack.c.l.b16 %v358
      %v1325 = vunpack.c.l.b16 %v360
      %v1326 = vunpack.c.l.b16 %v361
      %v1327 = vunpack.c.l.b16 %v363
      %v1328 = vunpack.c.l.b16 %v364
      %v1329 = vunpack.c.l.b16 %v366
      %v1330 = vunpack.c.l.b16 %v367
      %v1331 = vpack.c.b16 %v1300, %v1299
      %v1332 = vpack.c.b16 %v1302, %v1301
      %v1333 = vpack.c.b16 %v1304, %v1303
      %v1334 = vpack.c.b16 %v1306, %v1305
      %v1335 = vpack.c.b16 %v1308, %v1307
      %v1336 = vpack.c.b16 %v1310, %v1309
      %v1337 = vpack.c.b16 %v1312, %v1311
      %v1338 = vpack.c.b16 %v1314, %v1313
      %v1339 = vpack.c.b16 %v1316, %v1315
      %v1340 = vpack.c.b16 %v1318, %v1317
      %v1341 = vpack.c.b16 %v1320, %v1319
      %v1342 = vpack.c.b16 %v1322, %v1321
      %v1343 = vpack.c.b16 %v1324, %v1323
      %v1344 = vpack.c.b16 %v1326, %v1325
      %v1345 = vpack.c.b16 %v1328, %v1327
      %v1346 = vpack.c.b16 %v1330, %v1329
      %1347 = vrot.lane.b32.xlu0 %v1331, 24
      %v1348 = vpop.permute.xlu0 %1347
      %1349 = vrot.lane.b32.xlu0 %v1332, 24
      %v1350 = vpop.permute.xlu0 %1349
      %1351 = vrot.lane.b32.xlu0 %v1333, 24
      %v1352 = vpop.permute.xlu0 %1351
      %1353 = vrot.lane.b32.xlu0 %v1334, 24
      %v1354 = vpop.permute.xlu0 %1353
      %1355 = vrot.lane.b32.xlu0 %v1335, 24
      %v1356 = vpop.permute.xlu0 %1355
      %1357 = vrot.lane.b32.xlu0 %v1336, 24
      %v1358 = vpop.permute.xlu0 %1357
      %1359 = vrot.lane.b32.xlu0 %v1337, 24
      %v1360 = vpop.permute.xlu0 %1359
      %1361 = vrot.lane.b32.xlu0 %v1338, 24
      %v1362 = vpop.permute.xlu0 %1361
      %1363 = vrot.lane.b32.xlu0 %v1339, 24
      %v1364 = vpop.permute.xlu0 %1363
      %1365 = vrot.lane.b32.xlu0 %v1340, 24
      %v1366 = vpop.permute.xlu0 %1365
      %1367 = vrot.lane.b32.xlu0 %v1341, 24
      %v1368 = vpop.permute.xlu0 %1367
      %1369 = vrot.lane.b32.xlu0 %v1342, 24
      %v1370 = vpop.permute.xlu0 %1369
      %1371 = vrot.lane.b32.xlu0 %v1343, 24
      %v1372 = vpop.permute.xlu0 %1371
      %1373 = vrot.lane.b32.xlu0 %v1344, 24
      %v1374 = vpop.permute.xlu0 %1373
      %1375 = vrot.lane.b32.xlu0 %v1345, 24
      %v1376 = vpop.permute.xlu0 %1375
      %1377 = vrot.lane.b32.xlu0 %v1346, 24
      %v1378 = vpop.permute.xlu0 %1377
      %v1395 = vunpack.c.l.b16 %v323
      %v1396 = vunpack.c.l.b16 %v326
      %v1397 = vunpack.c.l.b16 %v329
      %v1398 = vunpack.c.l.b16 %v332
      %v1399 = vunpack.c.l.b16 %v335
      %v1400 = vunpack.c.l.b16 %v338
      %v1401 = vunpack.c.l.b16 %v341
      %v1402 = vunpack.c.l.b16 %v344
      %v1403 = vunpack.c.l.b16 %v347
      %v1404 = vunpack.c.l.b16 %v350
      %v1405 = vunpack.c.l.b16 %v353
      %v1406 = vunpack.c.l.b16 %v356
      %v1407 = vunpack.c.l.b16 %v359
      %v1408 = vunpack.c.l.b16 %v362
      %v1409 = vunpack.c.l.b16 %v365
      %v1410 = vunpack.c.l.b16 %v368
      %v1411 = vpack.c.b16 %v1395, %v1395
      %v1412 = vpack.c.b16 %v1396, %v1396
      %v1413 = vpack.c.b16 %v1397, %v1397
      %v1414 = vpack.c.b16 %v1398, %v1398
      %v1415 = vpack.c.b16 %v1399, %v1399
      %v1416 = vpack.c.b16 %v1400, %v1400
      %v1417 = vpack.c.b16 %v1401, %v1401
      %v1418 = vpack.c.b16 %v1402, %v1402
      %v1419 = vpack.c.b16 %v1403, %v1403
      %v1420 = vpack.c.b16 %v1404, %v1404
      %v1421 = vpack.c.b16 %v1405, %v1405
      %v1422 = vpack.c.b16 %v1406, %v1406
      %v1423 = vpack.c.b16 %v1407, %v1407
      %v1424 = vpack.c.b16 %v1408, %v1408
      %v1425 = vpack.c.b16 %v1409, %v1409
      %v1426 = vpack.c.b16 %v1410, %v1410
      %v1428 = vshrl.u32 %v1331, 16
      %v1430 = vshll.u32 %v1331, 16
      %v1432 = vrot.slane %v1430, 1
      %v1433 = vor.u32 %v1428, %v1432
      %v1435 = vshll.u32 %v1411, 16
      %v1437 = vrot.slane %v1435, 1
      %v1438 = vsel %vm497, %v1433, %v1437
      %v1440 = vshrl.u32 %v1332, 16
      %v1442 = vshll.u32 %v1332, 16
      %v1444 = vrot.slane %v1442, 1
      %v1445 = vor.u32 %v1440, %v1444
      %v1447 = vshll.u32 %v1412, 16
      %v1449 = vrot.slane %v1447, 1
      %v1450 = vsel %vm497, %v1445, %v1449
      %v1452 = vshrl.u32 %v1333, 16
      %v1454 = vshll.u32 %v1333, 16
      %v1456 = vrot.slane %v1454, 1
      %v1457 = vor.u32 %v1452, %v1456
      %v1459 = vshll.u32 %v1413, 16
      %v1461 = vrot.slane %v1459, 1
      %v1462 = vsel %vm497, %v1457, %v1461
      %v1464 = vshrl.u32 %v1334, 16
      %v1466 = vshll.u32 %v1334, 16
      %v1468 = vrot.slane %v1466, 1
      %v1469 = vor.u32 %v1464, %v1468
      %v1471 = vshll.u32 %v1414, 16
      %v1473 = vrot.slane %v1471, 1
      %v1474 = vsel %vm497, %v1469, %v1473
      %v1476 = vshrl.u32 %v1335, 16
      %v1478 = vshll.u32 %v1335, 16
      %v1480 = vrot.slane %v1478, 1
      %v1481 = vor.u32 %v1476, %v1480
      %v1483 = vshll.u32 %v1415, 16
      %v1485 = vrot.slane %v1483, 1
      %v1486 = vsel %vm497, %v1481, %v1485
      %v1488 = vshrl.u32 %v1336, 16
      %v1490 = vshll.u32 %v1336, 16
      %v1492 = vrot.slane %v1490, 1
      %v1493 = vor.u32 %v1488, %v1492
      %v1495 = vshll.u32 %v1416, 16
      %v1497 = vrot.slane %v1495, 1
      %v1498 = vsel %vm497, %v1493, %v1497
      %v1500 = vshrl.u32 %v1337, 16
      %v1502 = vshll.u32 %v1337, 16
      %v1504 = vrot.slane %v1502, 1
      %v1505 = vor.u32 %v1500, %v1504
      %v1507 = vshll.u32 %v1417, 16
      %v1509 = vrot.slane %v1507, 1
      %v1510 = vsel %vm497, %v1505, %v1509
      %v1512 = vshrl.u32 %v1338, 16
      %v1514 = vshll.u32 %v1338, 16
      %v1516 = vrot.slane %v1514, 1
      %v1517 = vor.u32 %v1512, %v1516
      %v1519 = vshll.u32 %v1418, 16
      %v1521 = vrot.slane %v1519, 1
      %v1522 = vsel %vm497, %v1517, %v1521
      %v1524 = vshrl.u32 %v1339, 16
      %v1526 = vshll.u32 %v1339, 16
      %v1528 = vrot.slane %v1526, 1
      %v1529 = vor.u32 %v1524, %v1528
      %v1531 = vshll.u32 %v1419, 16
      %v1533 = vrot.slane %v1531, 1
      %v1534 = vsel %vm497, %v1529, %v1533
      %v1536 = vshrl.u32 %v1340, 16
      %v1538 = vshll.u32 %v1340, 16
      %v1540 = vrot.slane %v1538, 1
      %v1541 = vor.u32 %v1536, %v1540
      %v1543 = vshll.u32 %v1420, 16
      %v1545 = vrot.slane %v1543, 1
      %v1546 = vsel %vm497, %v1541, %v1545
      %v1548 = vshrl.u32 %v1341, 16
      %v1550 = vshll.u32 %v1341, 16
      %v1552 = vrot.slane %v1550, 1
      %v1553 = vor.u32 %v1548, %v1552
      %v1555 = vshll.u32 %v1421, 16
      %v1557 = vrot.slane %v1555, 1
      %v1558 = vsel %vm497, %v1553, %v1557
      %v1560 = vshrl.u32 %v1342, 16
      %v1562 = vshll.u32 %v1342, 16
      %v1564 = vrot.slane %v1562, 1
      %v1565 = vor.u32 %v1560, %v1564
      %v1567 = vshll.u32 %v1422, 16
      %v1569 = vrot.slane %v1567, 1
      %v1570 = vsel %vm497, %v1565, %v1569
      %v1572 = vshrl.u32 %v1343, 16
      %v1574 = vshll.u32 %v1343, 16
      %v1576 = vrot.slane %v1574, 1
      %v1577 = vor.u32 %v1572, %v1576
      %v1579 = vshll.u32 %v1423, 16
      %v1581 = vrot.slane %v1579, 1
      %v1582 = vsel %vm497, %v1577, %v1581
      %v1584 = vshrl.u32 %v1344, 16
      %v1586 = vshll.u32 %v1344, 16
      %v1588 = vrot.slane %v1586, 1
      %v1589 = vor.u32 %v1584, %v1588
      %v1591 = vshll.u32 %v1424, 16
      %v1593 = vrot.slane %v1591, 1
      %v1594 = vsel %vm497, %v1589, %v1593
      %v1596 = vshrl.u32 %v1345, 16
      %v1598 = vshll.u32 %v1345, 16
      %v1600 = vrot.slane %v1598, 1
      %v1601 = vor.u32 %v1596, %v1600
      %v1603 = vshll.u32 %v1425, 16
      %v1605 = vrot.slane %v1603, 1
      %v1606 = vsel %vm497, %v1601, %v1605
      %v1608 = vshrl.u32 %v1346, 16
      %v1610 = vshll.u32 %v1346, 16
      %v1612 = vrot.slane %v1610, 1
      %v1613 = vor.u32 %v1608, %v1612
      %v1615 = vshll.u32 %v1426, 16
      %v1617 = vrot.slane %v1615, 1
      %v1618 = vsel %vm497, %v1613, %v1617
      %1619 = vrot.lane.b32.xlu0 %v1438, 28
      %v1620 = vpop.permute.xlu0 %1619
      %1621 = vrot.lane.b32.xlu0 %v1450, 28
      %v1622 = vpop.permute.xlu0 %1621
      %1623 = vrot.lane.b32.xlu0 %v1462, 28
      %v1624 = vpop.permute.xlu0 %1623
      %1625 = vrot.lane.b32.xlu0 %v1474, 28
      %v1626 = vpop.permute.xlu0 %1625
      %1627 = vrot.lane.b32.xlu0 %v1486, 28
      %v1628 = vpop.permute.xlu0 %1627
      %1629 = vrot.lane.b32.xlu0 %v1498, 28
      %v1630 = vpop.permute.xlu0 %1629
      %1631 = vrot.lane.b32.xlu0 %v1510, 28
      %v1632 = vpop.permute.xlu0 %1631
      %1633 = vrot.lane.b32.xlu0 %v1522, 28
      %v1634 = vpop.permute.xlu0 %1633
      %1635 = vrot.lane.b32.xlu0 %v1534, 28
      %v1636 = vpop.permute.xlu0 %1635
      %1637 = vrot.lane.b32.xlu0 %v1546, 28
      %v1638 = vpop.permute.xlu0 %1637
      %1639 = vrot.lane.b32.xlu0 %v1558, 28
      %v1640 = vpop.permute.xlu0 %1639
      %1641 = vrot.lane.b32.xlu0 %v1570, 28
      %v1642 = vpop.permute.xlu0 %1641
      %1643 = vrot.lane.b32.xlu0 %v1582, 28
      %v1644 = vpop.permute.xlu0 %1643
      %1645 = vrot.lane.b32.xlu0 %v1594, 28
      %v1646 = vpop.permute.xlu0 %1645
      %1647 = vrot.lane.b32.xlu0 %v1606, 28
      %v1648 = vpop.permute.xlu0 %1647
      %1649 = vrot.lane.b32.xlu0 %v1618, 28
      %v1650 = vpop.permute.xlu0 %1649
      %v1651 = vrot.slane %v1331, 1
      %v1652 = vrot.slane %v1411, 1
      %v1653 = vsel %vm722, %v1651, %v1652
      %v1654 = vrot.slane %v1332, 1
      %v1655 = vrot.slane %v1412, 1
      %v1656 = vsel %vm722, %v1654, %v1655
      %v1657 = vrot.slane %v1333, 1
      %v1658 = vrot.slane %v1413, 1
      %v1659 = vsel %vm722, %v1657, %v1658
      %v1660 = vrot.slane %v1334, 1
      %v1661 = vrot.slane %v1414, 1
      %v1662 = vsel %vm722, %v1660, %v1661
      %v1663 = vrot.slane %v1335, 1
      %v1664 = vrot.slane %v1415, 1
      %v1665 = vsel %vm722, %v1663, %v1664
      %v1666 = vrot.slane %v1336, 1
      %v1667 = vrot.slane %v1416, 1
      %v1668 = vsel %vm722, %v1666, %v1667
      %v1669 = vrot.slane %v1337, 1
      %v1670 = vrot.slane %v1417, 1
      %v1671 = vsel %vm722, %v1669, %v1670
      %v1672 = vrot.slane %v1338, 1
      %v1673 = vrot.slane %v1418, 1
      %v1674 = vsel %vm722, %v1672, %v1673
      %v1675 = vrot.slane %v1339, 1
      %v1676 = vrot.slane %v1419, 1
      %v1677 = vsel %vm722, %v1675, %v1676
      %v1678 = vrot.slane %v1340, 1
      %v1679 = vrot.slane %v1420, 1
      %v1680 = vsel %vm722, %v1678, %v1679
      %v1681 = vrot.slane %v1341, 1
      %v1682 = vrot.slane %v1421, 1
      %v1683 = vsel %vm722, %v1681, %v1682
      %v1684 = vrot.slane %v1342, 1
      %v1685 = vrot.slane %v1422, 1
      %v1686 = vsel %vm722, %v1684, %v1685
      %v1687 = vrot.slane %v1343, 1
      %v1688 = vrot.slane %v1423, 1
      %v1689 = vsel %vm722, %v1687, %v1688
      %v1690 = vrot.slane %v1344, 1
      %v1691 = vrot.slane %v1424, 1
      %v1692 = vsel %vm722, %v1690, %v1691
      %v1693 = vrot.slane %v1345, 1
      %v1694 = vrot.slane %v1425, 1
      %v1695 = vsel %vm722, %v1693, %v1694
      %v1696 = vrot.slane %v1346, 1
      %v1697 = vrot.slane %v1426, 1
      %v1698 = vsel %vm722, %v1696, %v1697
      %1699 = vrot.lane.b32.xlu0 %v1653, 32
      %v1700 = vpop.permute.xlu0 %1699
      %1701 = vrot.lane.b32.xlu0 %v1656, 32
      %v1702 = vpop.permute.xlu0 %1701
      %1703 = vrot.lane.b32.xlu0 %v1659, 32
      %v1704 = vpop.permute.xlu0 %1703
      %1705 = vrot.lane.b32.xlu0 %v1662, 32
      %v1706 = vpop.permute.xlu0 %1705
      %1707 = vrot.lane.b32.xlu0 %v1665, 32
      %v1708 = vpop.permute.xlu0 %1707
      %1709 = vrot.lane.b32.xlu0 %v1668, 32
      %v1710 = vpop.permute.xlu0 %1709
      %1711 = vrot.lane.b32.xlu0 %v1671, 32
      %v1712 = vpop.permute.xlu0 %1711
      %1713 = vrot.lane.b32.xlu0 %v1674, 32
      %v1714 = vpop.permute.xlu0 %1713
      %1715 = vrot.lane.b32.xlu0 %v1677, 32
      %v1716 = vpop.permute.xlu0 %1715
      %1717 = vrot.lane.b32.xlu0 %v1680, 32
      %v1718 = vpop.permute.xlu0 %1717
      %1719 = vrot.lane.b32.xlu0 %v1683, 32
      %v1720 = vpop.permute.xlu0 %1719
      %1721 = vrot.lane.b32.xlu0 %v1686, 32
      %v1722 = vpop.permute.xlu0 %1721
      %1723 = vrot.lane.b32.xlu0 %v1689, 32
      %v1724 = vpop.permute.xlu0 %1723
      %1725 = vrot.lane.b32.xlu0 %v1692, 32
      %v1726 = vpop.permute.xlu0 %1725
      %1727 = vrot.lane.b32.xlu0 %v1695, 32
      %v1728 = vpop.permute.xlu0 %1727
      %1729 = vrot.lane.b32.xlu0 %v1698, 32
      %v1730 = vpop.permute.xlu0 %1729
      %vm1731 = vcmask 31744
      %v1733 = vsel %vm1731, %v433, %v691
      %v1735 = vsel %vm1731, %v434, %v693
      %v1737 = vsel %vm1731, %v435, %v695
      %v1739 = vsel %vm1731, %v436, %v697
      %v1741 = vsel %vm1731, %v437, %v699
      %v1743 = vsel %vm1731, %v438, %v701
      %v1745 = vsel %vm1731, %v439, %v703
      %v1747 = vsel %vm1731, %v440, %v705
      %v1749 = vsel %vm1731, %v441, %v707
      %v1751 = vsel %vm1731, %v442, %v709
      %v1753 = vsel %vm1731, %v443, %v711
      %v1755 = vsel %vm1731, %v444, %v713
      %v1757 = vsel %vm1731, %v445, %v715
      %v1759 = vsel %vm1731, %v446, %v717
      %v1761 = vsel %vm1731, %v447, %v719
      %v1763 = vsel %vm1731, %v448, %v721
      %vm1764 = vcmask 64512
      %v1766 = vsel %vm1764, %v1733, %v772
      %v1768 = vsel %vm1764, %v1735, %v774
      %v1770 = vsel %vm1764, %v1737, %v776
      %v1772 = vsel %vm1764, %v1739, %v778
      %v1774 = vsel %vm1764, %v1741, %v780
      %v1776 = vsel %vm1764, %v1743, %v782
      %v1778 = vsel %vm1764, %v1745, %v784
      %v1780 = vsel %vm1764, %v1747, %v786
      %v1782 = vsel %vm1764, %v1749, %v788
      %v1784 = vsel %vm1764, %v1751, %v790
      %v1786 = vsel %vm1764, %v1753, %v792
      %v1788 = vsel %vm1764, %v1755, %v794
      %v1790 = vsel %vm1764, %v1757, %v796
      %v1792 = vsel %vm1764, %v1759, %v798
      %v1794 = vsel %vm1764, %v1761, %v800
      %v1796 = vsel %vm1764, %v1763, %v802
      %vm1797 = vcmask 97280
      %v1799 = vsel %vm1797, %v1766, %v884
      %v1801 = vsel %vm1797, %v1768, %v886
      %v1803 = vsel %vm1797, %v1770, %v888
      %v1805 = vsel %vm1797, %v1772, %v890
      %v1807 = vsel %vm1797, %v1774, %v892
      %v1809 = vsel %vm1797, %v1776, %v894
      %v1811 = vsel %vm1797, %v1778, %v896
      %v1813 = vsel %vm1797, %v1780, %v898
      %v1815 = vsel %vm1797, %v1782, %v900
      %v1817 = vsel %vm1797, %v1784, %v902
      %v1819 = vsel %vm1797, %v1786, %v904
      %v1821 = vsel %vm1797, %v1788, %v906
      %v1823 = vsel %vm1797, %v1790, %v908
      %v1825 = vsel %vm1797, %v1792, %v910
      %v1827 = vsel %vm1797, %v1794, %v912
      %v1829 = vsel %vm1797, %v1796, %v914
      %vm1830 = vcmask 130048
      %v1832 = vsel %vm1830, %v1799, %v1156
      %v1834 = vsel %vm1830, %v1801, %v1158
      %v1836 = vsel %vm1830, %v1803, %v1160
      %v1838 = vsel %vm1830, %v1805, %v1162
      %v1840 = vsel %vm1830, %v1807, %v1164
      %v1842 = vsel %vm1830, %v1809, %v1166
      %v1844 = vsel %vm1830, %v1811, %v1168
      %v1846 = vsel %vm1830, %v1813, %v1170
      %v1848 = vsel %vm1830, %v1815, %v1172
      %v1850 = vsel %vm1830, %v1817, %v1174
      %v1852 = vsel %vm1830, %v1819, %v1176
      %v1854 = vsel %vm1830, %v1821, %v1178
      %v1856 = vsel %vm1830, %v1823, %v1180
      %v1858 = vsel %vm1830, %v1825, %v1182
      %v1860 = vsel %vm1830, %v1827, %v1184
      %v1862 = vsel %vm1830, %v1829, %v1186
      %vm1863 = vcmask 162816
      %v1865 = vsel %vm1863, %v1832, %v1236
      %v1867 = vsel %vm1863, %v1834, %v1238
      %v1869 = vsel %vm1863, %v1836, %v1240
      %v1871 = vsel %vm1863, %v1838, %v1242
      %v1873 = vsel %vm1863, %v1840, %v1244
      %v1875 = vsel %vm1863, %v1842, %v1246
      %v1877 = vsel %vm1863, %v1844, %v1248
      %v1879 = vsel %vm1863, %v1846, %v1250
      %v1881 = vsel %vm1863, %v1848, %v1252
      %v1883 = vsel %vm1863, %v1850, %v1254
      %v1885 = vsel %vm1863, %v1852, %v1256
      %v1887 = vsel %vm1863, %v1854, %v1258
      %v1889 = vsel %vm1863, %v1856, %v1260
      %v1891 = vsel %vm1863, %v1858, %v1262
      %v1893 = vsel %vm1863, %v1860, %v1264
      %v1895 = vsel %vm1863, %v1862, %v1266
      %vm1896 = vcmask 195584
      %v1898 = vsel %vm1896, %v1865, %v1348
      %v1900 = vsel %vm1896, %v1867, %v1350
      %v1902 = vsel %vm1896, %v1869, %v1352
      %v1904 = vsel %vm1896, %v1871, %v1354
      %v1906 = vsel %vm1896, %v1873, %v1356
      %v1908 = vsel %vm1896, %v1875, %v1358
      %v1910 = vsel %vm1896, %v1877, %v1360
      %v1912 = vsel %vm1896, %v1879, %v1362
      %v1914 = vsel %vm1896, %v1881, %v1364
      %v1916 = vsel %vm1896, %v1883, %v1366
      %v1918 = vsel %vm1896, %v1885, %v1368
      %v1920 = vsel %vm1896, %v1887, %v1370
      %v1922 = vsel %vm1896, %v1889, %v1372
      %v1924 = vsel %vm1896, %v1891, %v1374
      %v1926 = vsel %vm1896, %v1893, %v1376
      %v1928 = vsel %vm1896, %v1895, %v1378
      %vm1929 = vcmask 228352
      %v1931 = vsel %vm1929, %v1898, %v1620
      %v1933 = vsel %vm1929, %v1900, %v1622
      %v1935 = vsel %vm1929, %v1902, %v1624
      %v1937 = vsel %vm1929, %v1904, %v1626
      %v1939 = vsel %vm1929, %v1906, %v1628
      %v1941 = vsel %vm1929, %v1908, %v1630
      %v1943 = vsel %vm1929, %v1910, %v1632
      %v1945 = vsel %vm1929, %v1912, %v1634
      %v1947 = vsel %vm1929, %v1914, %v1636
      %v1949 = vsel %vm1929, %v1916, %v1638
      %v1951 = vsel %vm1929, %v1918, %v1640
      %v1953 = vsel %vm1929, %v1920, %v1642
      %v1955 = vsel %vm1929, %v1922, %v1644
      %v1957 = vsel %vm1929, %v1924, %v1646
      %v1959 = vsel %vm1929, %v1926, %v1648
      %v1961 = vsel %vm1929, %v1928, %v1650
      %vm1962 = vcmask 261120
      %v1964 = vsel %vm1962, %v1931, %v1700
      %v1966 = vsel %vm1962, %v1933, %v1702
      %v1968 = vsel %vm1962, %v1935, %v1704
      %v1970 = vsel %vm1962, %v1937, %v1706
      %v1972 = vsel %vm1962, %v1939, %v1708
      %v1974 = vsel %vm1962, %v1941, %v1710
      %v1976 = vsel %vm1962, %v1943, %v1712
      %v1978 = vsel %vm1962, %v1945, %v1714
      %v1980 = vsel %vm1962, %v1947, %v1716
      %v1982 = vsel %vm1962, %v1949, %v1718
      %v1984 = vsel %vm1962, %v1951, %v1720
      %v1986 = vsel %vm1962, %v1953, %v1722
      %v1988 = vsel %vm1962, %v1955, %v1724
      %v1990 = vsel %vm1962, %v1957, %v1726
      %v1992 = vsel %vm1962, %v1959, %v1728
      %v1994 = vsel %vm1962, %v1961, %v1730
      %v1995 = vld [vmem:[%s1] sm:$0xf]
      %v1996 = vld [vmem:[%s1 + $0x4] sm:$0xf]
      %v1997 = vld [vmem:[%s1 + $0x8] sm:$0xf]
      %v1998 = vld [vmem:[%s1 + $0xc] sm:$0xf]
      %v1999 = vld [vmem:[%s1 + $0x10] sm:$0x3]
      %v2005 = vunpack.c.l.b16 %v1995
      %v2006 = vunpack.c.l.b16 %v1996
      %v2007 = vunpack.c.l.b16 %v1997
      %v2008 = vunpack.c.l.b16 %v1998
      %v2009 = vunpack.c.l.b16 %v1999
      %v2010 = vpack.c.b16 %v2006, %v2005
      %v2011 = vpack.c.b16 %v2008, %v2007
      %v2012 = vpack.c.b16 %v2009, %v2009
      %vm2015 = vcmask 293888
      %v2016 = vsel %vm2015, %v1964, 0
      %v2018 = vsel %vm2015, %v1966, 0
      %v2020 = vsel %vm2015, %v1968, 0
      %v2022 = vsel %vm2015, %v1970, 0
      %v2024 = vsel %vm2015, %v1972, 0
      %v2026 = vsel %vm2015, %v1974, 0
      %v2028 = vsel %vm2015, %v1976, 0
      %v2030 = vsel %vm2015, %v1978, 0
      %v2032 = vsel %vm2015, %v1980, 0
      %v2034 = vsel %vm2015, %v1982, 0
      %v2036 = vsel %vm2015, %v1984, 0
      %v2038 = vsel %vm2015, %v1986, 0
      %v2040 = vsel %vm2015, %v1988, 0
      %v2042 = vsel %vm2015, %v1990, 0
      %v2044 = vsel %vm2015, %v1992, 0
      %v2046 = vsel %vm2015, %v1994, 0
      %vm2048 = vcmask 1041408
      %v2050 = vsel %vm2048, %v2012, 0
      %2052 = vmatpush.bf16.msra.mxu0 0
      %2053 = vmatpush.bf16.msra.mxu0 0
      %2054 = vmatpush.bf16.msra.mxu0 0
      %2055 = vmatpush.bf16.msra.mxu0 0
      %2056 = vmatpush.bf16.msra.mxu0 0
      %2057 = vmatpush.bf16.msra.mxu0 %v2050
      %2058 = vmatpush.bf16.msra.mxu0 %v2011
      %2059 = vmatpush.bf16.msra.mxu0 %v2010
      %2060 = vmatmul.bf16.gmra.mxu0 %v2016
      %v2061 = vpop.f32.mrf.mxu0
      %v2062 = vadd.f32 0.0, %v2061
      %v2063 = vpop.f32.mrf.mxu0
      %v2064 = vadd.f32 0.0, %v2063
      %2065 = vmatmul.bf16.gmra.mxu0 %v2018
      %v2066 = vpop.f32.mrf.mxu0
      %v2067 = vadd.f32 0.0, %v2066
      %v2068 = vpop.f32.mrf.mxu0
      %v2069 = vadd.f32 0.0, %v2068
      %2070 = vmatmul.bf16.gmra.mxu0 %v2020
      %v2071 = vpop.f32.mrf.mxu0
      %v2072 = vadd.f32 0.0, %v2071
      %v2073 = vpop.f32.mrf.mxu0
      %v2074 = vadd.f32 0.0, %v2073
      %2075 = vmatmul.bf16.gmra.mxu0 %v2022
      %v2076 = vpop.f32.mrf.mxu0
      %v2077 = vadd.f32 0.0, %v2076
      %v2078 = vpop.f32.mrf.mxu0
      %v2079 = vadd.f32 0.0, %v2078
      %2080 = vmatmul.bf16.gmra.mxu0 %v2024
      %v2081 = vpop.f32.mrf.mxu0
      %v2082 = vadd.f32 0.0, %v2081
      %v2083 = vpop.f32.mrf.mxu0
      %v2084 = vadd.f32 0.0, %v2083
      %2085 = vmatmul.bf16.gmra.mxu0 %v2026
      %v2086 = vpop.f32.mrf.mxu0
      %v2087 = vadd.f32 0.0, %v2086
      %v2088 = vpop.f32.mrf.mxu0
      %v2089 = vadd.f32 0.0, %v2088
      %2090 = vmatmul.bf16.gmra.mxu0 %v2028
      %v2091 = vpop.f32.mrf.mxu0
      %v2092 = vadd.f32 0.0, %v2091
      %v2093 = vpop.f32.mrf.mxu0
      %v2094 = vadd.f32 0.0, %v2093
      %2095 = vmatmul.bf16.gmra.mxu0 %v2030
      %v2096 = vpop.f32.mrf.mxu0
      %v2097 = vadd.f32 0.0, %v2096
      %v2098 = vpop.f32.mrf.mxu0
      %v2099 = vadd.f32 0.0, %v2098
      %2100 = vmatmul.bf16.gmra.mxu0 %v2032
      %v2101 = vpop.f32.mrf.mxu0
      %v2102 = vadd.f32 0.0, %v2101
      %v2103 = vpop.f32.mrf.mxu0
      %v2104 = vadd.f32 0.0, %v2103
      %2105 = vmatmul.bf16.gmra.mxu0 %v2034
      %v2106 = vpop.f32.mrf.mxu0
      %v2107 = vadd.f32 0.0, %v2106
      %v2108 = vpop.f32.mrf.mxu0
      %v2109 = vadd.f32 0.0, %v2108
      %2110 = vmatmul.bf16.gmra.mxu0 %v2036
      %v2111 = vpop.f32.mrf.mxu0
      %v2112 = vadd.f32 0.0, %v2111
      %v2113 = vpop.f32.mrf.mxu0
      %v2114 = vadd.f32 0.0, %v2113
      %2115 = vmatmul.bf16.gmra.mxu0 %v2038
      %v2116 = vpop.f32.mrf.mxu0
      %v2117 = vadd.f32 0.0, %v2116
      %v2118 = vpop.f32.mrf.mxu0
      %v2119 = vadd.f32 0.0, %v2118
      %2120 = vmatmul.bf16.gmra.mxu0 %v2040
      %v2121 = vpop.f32.mrf.mxu0
      %v2122 = vadd.f32 0.0, %v2121
      %v2123 = vpop.f32.mrf.mxu0
      %v2124 = vadd.f32 0.0, %v2123
      %2125 = vmatmul.bf16.gmra.mxu0 %v2042
      %v2126 = vpop.f32.mrf.mxu0
      %v2127 = vadd.f32 0.0, %v2126
      %v2128 = vpop.f32.mrf.mxu0
      %v2129 = vadd.f32 0.0, %v2128
      %2130 = vmatmul.bf16.gmra.mxu0 %v2044
      %v2131 = vpop.f32.mrf.mxu0
      %v2132 = vadd.f32 0.0, %v2131
      %v2133 = vpop.f32.mrf.mxu0
      %v2134 = vadd.f32 0.0, %v2133
      %2135 = vmatmul.bf16.gmra.mxu0 %v2046
      %v2136 = vpop.f32.mrf.mxu0
      %v2137 = vadd.f32 0.0, %v2136
      %v2138 = vpop.f32.mrf.mxu0
      %v2139 = vadd.f32 0.0, %v2138
      %2140 = vdwg.mxu0
      %2141 = vst.msk [vmem:[%s204] sm:$0xff] %vm1962, %v2062
      %2142 = vst.msk [vmem:[%s204 + $0x8] sm:$0xff] %vm1962, %v2064
      %2143 = vst.msk [vmem:[%s204 + $0x10] sm:$0xff] %vm1962, %v2067
      %2144 = vst.msk [vmem:[%s204 + $0x18] sm:$0xff] %vm1962, %v2069
      %2145 = vst.msk [vmem:[%s204 + $0x20] sm:$0xff] %vm1962, %v2072
      %2146 = vst.msk [vmem:[%s204 + $0x28] sm:$0xff] %vm1962, %v2074
      %2147 = vst.msk [vmem:[%s204 + $0x30] sm:$0xff] %vm1962, %v2077
      %2148 = vst.msk [vmem:[%s204 + $0x38] sm:$0xff] %vm1962, %v2079
      %2149 = vst.msk [vmem:[%s204 + $0x40] sm:$0xff] %vm1962, %v2082
      %2150 = vst.msk [vmem:[%s204 + $0x48] sm:$0xff] %vm1962, %v2084
      %2151 = vst.msk [vmem:[%s204 + $0x50] sm:$0xff] %vm1962, %v2087
      %2152 = vst.msk [vmem:[%s204 + $0x58] sm:$0xff] %vm1962, %v2089
      %2153 = vst.msk [vmem:[%s204 + $0x60] sm:$0xff] %vm1962, %v2092
      %2154 = vst.msk [vmem:[%s204 + $0x68] sm:$0xff] %vm1962, %v2094
      %2155 = vst.msk [vmem:[%s204 + $0x70] sm:$0xff] %vm1962, %v2097
      %2156 = vst.msk [vmem:[%s204 + $0x78] sm:$0xff] %vm1962, %v2099
      %2157 = vst.msk [vmem:[%s204 + $0x80] sm:$0xff] %vm1962, %v2102
      %2158 = vst.msk [vmem:[%s204 + $0x88] sm:$0xff] %vm1962, %v2104
      %2159 = vst.msk [vmem:[%s204 + $0x90] sm:$0xff] %vm1962, %v2107
      %2160 = vst.msk [vmem:[%s204 + $0x98] sm:$0xff] %vm1962, %v2109
      %2161 = vst.msk [vmem:[%s204 + $0xa0] sm:$0xff] %vm1962, %v2112
      %2162 = vst.msk [vmem:[%s204 + $0xa8] sm:$0xff] %vm1962, %v2114
      %2163 = vst.msk [vmem:[%s204 + $0xb0] sm:$0xff] %vm1962, %v2117
      %2164 = vst.msk [vmem:[%s204 + $0xb8] sm:$0xff] %vm1962, %v2119
      %2165 = vst.msk [vmem:[%s204 + $0xc0] sm:$0xff] %vm1962, %v2122
      %2166 = vst.msk [vmem:[%s204 + $0xc8] sm:$0xff] %vm1962, %v2124
      %2167 = vst.msk [vmem:[%s204 + $0xd0] sm:$0xff] %vm1962, %v2127
      %2168 = vst.msk [vmem:[%s204 + $0xd8] sm:$0xff] %vm1962, %v2129
      %2169 = vst.msk [vmem:[%s204 + $0xe0] sm:$0xff] %vm1962, %v2132
      %2170 = vst.msk [vmem:[%s204 + $0xe8] sm:$0xff] %vm1962, %v2134
      %2171 = vst.msk [vmem:[%s204 + $0xf0] sm:$0xff] %vm1962, %v2137
      %2172 = vst.msk [vmem:[%s204 + $0xf8] sm:$0xff] %vm1962, %v2139
      %v2173 = vsel %vm1962, %v2062, 0.0
      %v2174 = vsel %vm1962, %v2064, 0.0
      %v2175 = vadd.f32 %v2173, %v2174
      %v2176 = vsel %vm1962, %v2067, 0.0
      %v2177 = vadd.f32 %v2175, %v2176
      %v2178 = vsel %vm1962, %v2069, 0.0
      %v2179 = vadd.f32 %v2177, %v2178
      %v2180 = vsel %vm1962, %v2072, 0.0
      %v2181 = vadd.f32 %v2179, %v2180
      %v2182 = vsel %vm1962, %v2074, 0.0
      %v2183 = vadd.f32 %v2181, %v2182
      %v2184 = vsel %vm1962, %v2077, 0.0
      %v2185 = vadd.f32 %v2183, %v2184
      %v2186 = vsel %vm1962, %v2079, 0.0
      %v2187 = vadd.f32 %v2185, %v2186
      %v2188 = vsel %vm1962, %v2082, 0.0
      %v2189 = vadd.f32 %v2187, %v2188
      %v2190 = vsel %vm1962, %v2084, 0.0
      %v2191 = vadd.f32 %v2189, %v2190
      %v2192 = vsel %vm1962, %v2087, 0.0
      %v2193 = vadd.f32 %v2191, %v2192
      %v2194 = vsel %vm1962, %v2089, 0.0
      %v2195 = vadd.f32 %v2193, %v2194
      %v2196 = vsel %vm1962, %v2092, 0.0
      %v2197 = vadd.f32 %v2195, %v2196
      %v2198 = vsel %vm1962, %v2094, 0.0
      %v2199 = vadd.f32 %v2197, %v2198
      %v2200 = vsel %vm1962, %v2097, 0.0
      %v2201 = vadd.f32 %v2199, %v2200
      %v2202 = vsel %vm1962, %v2099, 0.0
      %v2203 = vadd.f32 %v2201, %v2202
      %v2204 = vsel %vm1962, %v2102, 0.0
      %v2205 = vadd.f32 %v2203, %v2204
      %v2206 = vsel %vm1962, %v2104, 0.0
      %v2207 = vadd.f32 %v2205, %v2206
      %v2208 = vsel %vm1962, %v2107, 0.0
      %v2209 = vadd.f32 %v2207, %v2208
      %v2210 = vsel %vm1962, %v2109, 0.0
      %v2211 = vadd.f32 %v2209, %v2210
      %v2212 = vsel %vm1962, %v2112, 0.0
      %v2213 = vadd.f32 %v2211, %v2212
      %v2214 = vsel %vm1962, %v2114, 0.0
      %v2215 = vadd.f32 %v2213, %v2214
      %v2216 = vsel %vm1962, %v2117, 0.0
      %v2217 = vadd.f32 %v2215, %v2216
      %v2218 = vsel %vm1962, %v2119, 0.0
      %v2219 = vadd.f32 %v2217, %v2218
      %v2220 = vsel %vm1962, %v2122, 0.0
      %v2221 = vadd.f32 %v2219, %v2220
      %v2222 = vsel %vm1962, %v2124, 0.0
      %v2223 = vadd.f32 %v2221, %v2222
      %v2224 = vsel %vm1962, %v2127, 0.0
      %v2225 = vadd.f32 %v2223, %v2224
      %v2226 = vsel %vm1962, %v2129, 0.0
      %v2227 = vadd.f32 %v2225, %v2226
      %v2228 = vsel %vm1962, %v2132, 0.0
      %v2229 = vadd.f32 %v2227, %v2228
      %v2230 = vsel %vm1962, %v2134, 0.0
      %v2231 = vadd.f32 %v2229, %v2230
      %v2232 = vsel %vm1962, %v2137, 0.0
      %v2233 = vadd.f32 %v2231, %v2232
      %v2234 = vsel %vm1962, %v2139, 0.0
      %v2235 = vadd.f32 %v2233, %v2234
      %v2236 = vrot.slane %v2235, 4
      %v2237 = vadd.f32 %v2235, %v2236
      %v2238 = vrot.slane %v2237, 2
      %v2239 = vadd.f32 %v2237, %v2238
      %v2240 = vrot.slane %v2239, 1
      %v2241 = vadd.f32 %v2239, %v2240
      %v2242 = vmul.f32 %v2062, %v2062
      %v2243 = vmul.f32 %v2064, %v2064
      %v2244 = vmul.f32 %v2067, %v2067
      %v2245 = vmul.f32 %v2069, %v2069
      %v2246 = vmul.f32 %v2072, %v2072
      %v2247 = vmul.f32 %v2074, %v2074
      %v2248 = vmul.f32 %v2077, %v2077
      %v2249 = vmul.f32 %v2079, %v2079
      %v2250 = vmul.f32 %v2082, %v2082
      %v2251 = vmul.f32 %v2084, %v2084
      %v2252 = vmul.f32 %v2087, %v2087
      %v2253 = vmul.f32 %v2089, %v2089
      %v2254 = vmul.f32 %v2092, %v2092
      %v2255 = vmul.f32 %v2094, %v2094
      %v2256 = vmul.f32 %v2097, %v2097
      %v2257 = vmul.f32 %v2099, %v2099
      %v2258 = vmul.f32 %v2102, %v2102
      %v2259 = vmul.f32 %v2104, %v2104
      %v2260 = vmul.f32 %v2107, %v2107
      %v2261 = vmul.f32 %v2109, %v2109
      %v2262 = vmul.f32 %v2112, %v2112
      %v2263 = vmul.f32 %v2114, %v2114
      %v2264 = vmul.f32 %v2117, %v2117
      %v2265 = vmul.f32 %v2119, %v2119
      %v2266 = vmul.f32 %v2122, %v2122
      %v2267 = vmul.f32 %v2124, %v2124
      %v2268 = vmul.f32 %v2127, %v2127
      %v2269 = vmul.f32 %v2129, %v2129
      %v2270 = vmul.f32 %v2132, %v2132
      %v2271 = vmul.f32 %v2134, %v2134
      %v2272 = vmul.f32 %v2137, %v2137
      %v2273 = vmul.f32 %v2139, %v2139
      %v2274 = vsel %vm1962, %v2242, 0.0
      %v2275 = vsel %vm1962, %v2243, 0.0
      %v2276 = vadd.f32 %v2274, %v2275
      %v2277 = vsel %vm1962, %v2244, 0.0
      %v2278 = vadd.f32 %v2276, %v2277
      %v2279 = vsel %vm1962, %v2245, 0.0
      %v2280 = vadd.f32 %v2278, %v2279
      %v2281 = vsel %vm1962, %v2246, 0.0
      %v2282 = vadd.f32 %v2280, %v2281
      %v2283 = vsel %vm1962, %v2247, 0.0
      %v2284 = vadd.f32 %v2282, %v2283
      %v2285 = vsel %vm1962, %v2248, 0.0
      %v2286 = vadd.f32 %v2284, %v2285
      %v2287 = vsel %vm1962, %v2249, 0.0
      %v2288 = vadd.f32 %v2286, %v2287
      %v2289 = vsel %vm1962, %v2250, 0.0
      %v2290 = vadd.f32 %v2288, %v2289
      %v2291 = vsel %vm1962, %v2251, 0.0
      %v2292 = vadd.f32 %v2290, %v2291
      %v2293 = vsel %vm1962, %v2252, 0.0
      %v2294 = vadd.f32 %v2292, %v2293
      %v2295 = vsel %vm1962, %v2253, 0.0
      %v2296 = vadd.f32 %v2294, %v2295
      %v2297 = vsel %vm1962, %v2254, 0.0
      %v2298 = vadd.f32 %v2296, %v2297
      %v2299 = vsel %vm1962, %v2255, 0.0
      %v2300 = vadd.f32 %v2298, %v2299
      %v2301 = vsel %vm1962, %v2256, 0.0
      %v2302 = vadd.f32 %v2300, %v2301
      %v2303 = vsel %vm1962, %v2257, 0.0
      %v2304 = vadd.f32 %v2302, %v2303
      %v2305 = vsel %vm1962, %v2258, 0.0
      %v2306 = vadd.f32 %v2304, %v2305
      %v2307 = vsel %vm1962, %v2259, 0.0
      %v2308 = vadd.f32 %v2306, %v2307
      %v2309 = vsel %vm1962, %v2260, 0.0
      %v2310 = vadd.f32 %v2308, %v2309
      %v2311 = vsel %vm1962, %v2261, 0.0
      %v2312 = vadd.f32 %v2310, %v2311
      %v2313 = vsel %vm1962, %v2262, 0.0
      %v2314 = vadd.f32 %v2312, %v2313
      %v2315 = vsel %vm1962, %v2263, 0.0
      %v2316 = vadd.f32 %v2314, %v2315
      %v2317 = vsel %vm1962, %v2264, 0.0
      %v2318 = vadd.f32 %v2316, %v2317
      %v2319 = vsel %vm1962, %v2265, 0.0
      %v2320 = vadd.f32 %v2318, %v2319
      %v2321 = vsel %vm1962, %v2266, 0.0
      %v2322 = vadd.f32 %v2320, %v2321
      %v2323 = vsel %vm1962, %v2267, 0.0
      %v2324 = vadd.f32 %v2322, %v2323
      %v2325 = vsel %vm1962, %v2268, 0.0
      %v2326 = vadd.f32 %v2324, %v2325
      %v2327 = vsel %vm1962, %v2269, 0.0
      %v2328 = vadd.f32 %v2326, %v2327
      %v2329 = vsel %vm1962, %v2270, 0.0
      %v2330 = vadd.f32 %v2328, %v2329
      %v2331 = vsel %vm1962, %v2271, 0.0
      %v2332 = vadd.f32 %v2330, %v2331
      %v2333 = vsel %vm1962, %v2272, 0.0
      %v2334 = vadd.f32 %v2332, %v2333
      %v2335 = vsel %vm1962, %v2273, 0.0
      %v2336 = vadd.f32 %v2334, %v2335
      %v2337 = vrot.slane %v2336, 4
      %v2338 = vadd.f32 %v2336, %v2337
      %v2339 = vrot.slane %v2338, 2
      %v2340 = vadd.f32 %v2338, %v2339
      %v2341 = vrot.slane %v2340, 1
      %v2342 = vadd.f32 %v2340, %v2341
      %vm2343 = vcmask 1040384
      %v2344 = vsel %vm2343, %v2241, %v2342
      %vm2345 = vcmask 254976
      %2346 = vst.msk [vmem:[%s211] sm:$0x3] %vm2345, %v2344
      %p2347 = scmp.lt.s32.totalorder %s19, 1
      %s2348 = scalar_select %p2347, %s19, 1
      %p2349 = scmp.lt.s32.totalorder %s20, 0
      %s2350 = scalar_select %p2349, %s20, 0
      %s2351 = smul.addr %s2350, 32
      %s2352 = smul.addr %s2348, 32
      %s2353 = sadd.s32 %s2351, %s2352
      %s2354 = smul.addr %s2353, 8
      %s2355 = scalar_lea.vmem %s2, %s2354
      %p2356 = scmp.lt.s32.totalorder %s19, 1
      %s2357 = scalar_select %p2356, %s19, 1
      %p2358 = scmp.lt.s32.totalorder %s20, 0
      %s2359 = scalar_select %p2358, %s20, 0
      %s2360 = sadd.s32 %s2359, %s2357
      %s2361 = smul.addr %s2360, 2
      %s2362 = scalar_lea.vmem %s3, %s2361
      // Predicated region
      $region29: #{inconv_forward.4} parent=27 // pred_check
        %p2363 = pneg %p94
      $region30: #{inconv_forward.4} parent=27 // pred_check_branch
        %2365 = sbr.rel (%p2363) target = $region32
      $region31: #{inconv_forward.4} parent=27 // pred_region
        _
      $region32: #{inconv_forward.4} parent=27 // pred_fallthru
        _
      // Predicated region
      $region33: #{inconv_forward.4} parent=27 // pred_check
        %p2366 = pneg %p122
      $region34: #{inconv_forward.4} parent=27 // pred_check_branch
        %2368 = sbr.rel (%p2366) target = $region36
      $region35: #{inconv_forward.4} parent=27 // pred_region
        _
      $region36: #{inconv_forward.4} parent=27 // pred_fallthru
        _
    $region28: #{inconv_forward.4} parent=5 // pred_fallthru
      _
    %p2369 = scmp.le.s32.totalorder 2, %s10
    // Predicated region
    $region37: #{inconv_forward.4} parent=5 // pred_check
      %p2370 = pneg %p2369
    $region38: #{inconv_forward.4} parent=5 // pred_check_branch
      %2372 = sbr.rel (%p2370) target = $region40
    $region39: #{inconv_forward.4} parent=5 // pred_region
      %s2373 = ssub.s32 %s10, 2
      // Predicated region
      $region41: #{inconv_forward.4} parent=39 // pred_check
        %p2374 = pneg %p100
      $region42: #{inconv_forward.4} parent=39 // pred_check_branch
        %2376 = sbr.rel (%p2374) target = $region44
      $region43: #{inconv_forward.4} parent=39 // pred_region
        %p2377 = scmp.lt.s32.totalorder %s21, 1
        %s2378 = scalar_select %p2377, %s21, 1
        %p2379 = scmp.lt.s32.totalorder %s22, 0
        %s2380 = scalar_select %p2379, %s22, 0
        %s2381 = smul.addr %s2380, 32
        %s2382 = smul.addr %s2378, 32
        %s2383 = sadd.s32 %s2381, %s2382
        %s2384 = smul.addr %s2383, 8
        %s2385 = scalar_lea.vmem %s2, %s2384
      $region44: #{inconv_forward.4} parent=39 // pred_fallthru
        _
      // Predicated region
      $region45: #{inconv_forward.4} parent=39 // pred_check
        %p2386 = pneg %p128
      $region46: #{inconv_forward.4} parent=39 // pred_check_branch
        %2388 = sbr.rel (%p2386) target = $region48
      $region47: #{inconv_forward.4} parent=39 // pred_region
        %p2389 = scmp.lt.s32.totalorder %s21, 1
        %s2390 = scalar_select %p2389, %s21, 1
        %p2391 = scmp.lt.s32.totalorder %s22, 0
        %s2392 = scalar_select %p2391, %s22, 0
        %s2393 = sadd.s32 %s2392, %s2390
        %s2394 = smul.addr %s2393, 2
        %s2395 = scalar_lea.vmem %s3, %s2394
      $region48: #{inconv_forward.4} parent=39 // pred_fallthru
        _
    $region40: #{inconv_forward.4} parent=5 // pred_fallthru
      _
  $region6: #{inconv_forward.4} parent=0 // loop_footer
    %s14 = sadd.s32 1, %s10
  $region7: #{inconv_forward.4} parent=0 // loop_footer_branch
    %9 = sbr.rel target = $region3
  $region8: #{inconv_forward.4} parent=0 // loop_exit
    _

// kernel: inconv_forward.6
$region0: #{inconv_forward.6}
  #allocation0 [shape = 'u32[]', space=smem, size = 0x4, offset = 0x4, fixed_abs, tag = 'smem constant byte address 0x4 - core index']
  #allocation1 [shape = 'u32[72,128]{1,0:T(1,128)}', space=vmem, size = 0x9000, scoped, tag = 'internal scratch']
  %s0 = inlined_call_operand.vmem [shape: bf16[2,18,18,32], index: 0, kind: input, shape index: {}]
  %s1 = inlined_call_operand.vmem [shape: bf16[288,32], index: 1, kind: input, shape index: {}]
  %s2 = inlined_call_operand.vmem [shape: f32[2,1,256,32], index: 2, kind: output, shape index: {0}]
  %s3 = inlined_call_operand.vmem [shape: f32[2,1,2,32], index: 3, kind: output, shape index: {1}]
  %4 = xla_tuple %s2, %s3
  %s5 = sld [smem:[#allocation0]]
  $region49: #{inconv_forward.6} parent=0
    _
  %s7 = ssub.s32 1, %s5
  %s8 = scalar_select 0, %s7, %s5
  loop: start=0, step=1, limit=4
  $region2: #{inconv_forward.6} parent=0 // loop_pre_header
    _
  $region3: #{inconv_forward.6} parent=0 // loop_header
    %s10 = sphi 0, %s14
    %p11 = scmp.ge.s32.totalorder %s10, 4
    %s17 = sphi 0, %s29
    %s18 = sphi 0, %s25
    %s19 = sphi 0, %s17
    %s20 = sphi 0, %s18
    %s21 = sphi 0, %s19
    %s22 = sphi 0, %s20
    %s32 = sphi 0, %s34
    %s35 = sphi 0, %s32
    %s36 = sphi 0, %s35
    %s52 = sphi 0, %s36
    %s56 = sphi 0, %s56
    %s58 = sphi 0, %s56
    %s59 = sphi 0, %s58
    %s73 = sphi 0, %s59
    %s81 = sphi 0, %s83
    %s84 = sphi 0, %s81
    %s85 = sphi 0, %s84
    %s101 = sphi 0, %s85
    %s109 = sphi 0, %s111
    %s112 = sphi 0, %s109
    %s113 = sphi 0, %s112
    %s129 = sphi 0, %s113
  $region4: #{inconv_forward.6} parent=0 // loop_header_branch
    %13 = sbr.rel (%p11) target = $region8
  $region5: #{inconv_forward.6} parent=0 // loop_body
    %s15 = ssub.s32 %s10, 1
    %s16 = ssub.s32 %s10, 2
    %s23 = sadd.s32 1, %s18
    %p24 = scmp.ge.s32.totalorder %s23, 1
    %s25 = scalar_select %p24, 0, %s23
    %s26 = sadd.s32 1, %s17
    %s27 = scalar_select %p24, %s26, %s17
    %p28 = scmp.ge.s32.totalorder %s27, 2
    %s29 = scalar_select %p28, 0, %s27
    %s30 = ssub.s32 %s17, %s29
    %p31 = scmp.eq.s32.totalorder %s30, 0
    %s33 = sadd.s32 %s32, 1
    %s34 = scalar_select %p31, %s32, %s33
    %p37 = pneg %p31
    %p38 = scmp.eq.s32.totalorder %s10, 1
    %p39 = por %p37, %p38
    %p40 = scmp.ne.s32.totalorder %s32, %s35
    %p41 = scmp.eq.s32.totalorder %s10, 0
    %p42 = por %p40, %p41
    %p43 = scmp.ne.s32.totalorder %s32, %s35
    %p44 = scmp.eq.s32.totalorder %s15, 1
    %p45 = por %p43, %p44
    %p46 = scmp.ne.s32.totalorder %s35, %s36
    %p47 = scmp.eq.s32.totalorder %s15, 0
    %p48 = por %p46, %p47
    %p49 = scmp.ne.s32.totalorder %s35, %s36
    %p50 = scmp.eq.s32.totalorder %s16, 1
    %p51 = por %p49, %p50
    %p53 = scmp.ne.s32.totalorder %s36, %s52
    %p54 = scmp.eq.s32.totalorder %s16, 0
    %p55 = por %p53, %p54
    %s57 = sadd.s32 %s56, 1
    %p60 = scmp.eq.s32.totalorder %s10, 1
    %p61 = scmp.ne.s32.totalorder %s56, %s58
    %p62 = scmp.eq.s32.totalorder %s10, 0
    %p63 = por %p61, %p62
    %p64 = scmp.ne.s32.totalorder %s56, %s58
    %p65 = scmp.eq.s32.totalorder %s15, 1
    %p66 = por %p64, %p65
    %p67 = scmp.ne.s32.totalorder %s58, %s59
    %p68 = scmp.eq.s32.totalorder %s15, 0
    %p69 = por %p67, %p68
    %p70 = scmp.ne.s32.totalorder %s58, %s59
    %p71 = scmp.eq.s32.totalorder %s16, 1
    %p72 = por %p70, %p71
    %p74 = scmp.ne.s32.totalorder %s59, %s73
    %p75 = scmp.eq.s32.totalorder %s16, 0
    %p76 = por %p74, %p75
    %s77 = ssub.s32 %s17, %s29
    %s78 = ssub.s32 %s18, %s25
    %s79 = sor.u32 %s77, %s78
    %p80 = scmp.eq.s32.totalorder %s79, 0
    %s82 = sadd.s32 %s81, 1
    %s83 = scalar_select %p80, %s81, %s82
    %p86 = pneg %p80
    %p87 = scmp.eq.s32.totalorder %s10, 1
    %p88 = por %p86, %p87
    %p89 = scmp.ne.s32.totalorder %s81, %s84
    %p90 = scmp.eq.s32.totalorder %s10, 0
    %p91 = por %p89, %p90
    %p92 = scmp.ne.s32.totalorder %s81, %s84
    %p93 = scmp.eq.s32.totalorder %s15, 1
    %p94 = por %p92, %p93
    %p95 = scmp.ne.s32.totalorder %s84, %s85
    %p96 = scmp.eq.s32.totalorder %s15, 0
    %p97 = por %p95, %p96
    %p98 = scmp.ne.s32.totalorder %s84, %s85
    %p99 = scmp.eq.s32.totalorder %s16, 1
    %p100 = por %p98, %p99
    %p102 = scmp.ne.s32.totalorder %s85, %s101
    %p103 = scmp.eq.s32.totalorder %s16, 0
    %p104 = por %p102, %p103
    %s105 = ssub.s32 %s17, %s29
    %s106 = ssub.s32 %s18, %s25
    %s107 = sor.u32 %s105, %s106
    %p108 = scmp.eq.s32.totalorder %s107, 0
    %s110 = sadd.s32 %s109, 1
    %s111 = scalar_select %p108, %s109, %s110
    %p114 = pneg %p108
    %p115 = scmp.eq.s32.totalorder %s10, 1
    %p116 = por %p114, %p115
    %p117 = scmp.ne.s32.totalorder %s109, %s112
    %p118 = scmp.eq.s32.totalorder %s10, 0
    %p119 = por %p117, %p118
    %p120 = scmp.ne.s32.totalorder %s109, %s112
    %p121 = scmp.eq.s32.totalorder %s15, 1
    %p122 = por %p120, %p121
    %p123 = scmp.ne.s32.totalorder %s112, %s113
    %p124 = scmp.eq.s32.totalorder %s15, 0
    %p125 = por %p123, %p124
    %p126 = scmp.ne.s32.totalorder %s112, %s113
    %p127 = scmp.eq.s32.totalorder %s16, 1
    %p128 = por %p126, %p127
    %p130 = scmp.ne.s32.totalorder %s113, %s129
    %p131 = scmp.eq.s32.totalorder %s16, 0
    %p132 = por %p130, %p131
    %p133 = scmp.le.s32.totalorder 1, %s10
    %p134 = scmp.lt.s32.totalorder %s10, 3
    %p135 = pnand %p133, %p134
    %p136 = pneg %p135
    // Predicated region
    $region9: #{inconv_forward.6} parent=5 // pred_check
      _
    $region10: #{inconv_forward.6} parent=5 // pred_check_branch
      %138 = sbr.rel (%p135) target = $region12
    $region11: #{inconv_forward.6} parent=5 // pred_region
      %s139 = ssub.s32 %s10, 1
      // Predicated region
      $region13: #{inconv_forward.6} parent=11 // pred_check
        %p140 = pneg %p69
      $region14: #{inconv_forward.6} parent=11 // pred_check_branch
        %142 = sbr.rel (%p140) target = $region16
      $region15: #{inconv_forward.6} parent=11 // pred_region
        _
      $region16: #{inconv_forward.6} parent=11 // pred_fallthru
        _
    $region12: #{inconv_forward.6} parent=5 // pred_fallthru
      _
    %p143 = scmp.lt.s32.totalorder %s10, 2
    // Predicated region
    $region17: #{inconv_forward.6} parent=5 // pred_check
      %p144 = pneg %p143
    $region18: #{inconv_forward.6} parent=5 // pred_check_branch
      %146 = sbr.rel (%p144) target = $region20
    $region19: #{inconv_forward.6} parent=5 // pred_region
      // Predicated region
      $region21: #{inconv_forward.6} parent=19 // pred_check
        %p147 = pneg %p42
      $region22: #{inconv_forward.6} parent=19 // pred_check_branch
        %149 = sbr.rel (%p147) target = $region24
      $region23: #{inconv_forward.6} parent=19 // pred_region
        %p150 = scmp.lt.s32.totalorder %s17, 1
        %s151 = scalar_select %p150, %s17, 1
        %s152 = smul.addr %s151, 54
        %s153 = smul.addr %s152, 4
        %s154 = scalar_lea.vmem %s0, %s153
      $region24: #{inconv_forward.6} parent=19 // pred_fallthru
        _
    $region20: #{inconv_forward.6} parent=5 // pred_fallthru
      _
    %p155 = scmp.le.s32.totalorder 1, %s10
    %p156 = scmp.lt.s32.totalorder %s10, 3
    %p157 = pnand %p155, %p156
    %p158 = pneg %p157
    // Predicated region
    $region25: #{inconv_forward.6} parent=5 // pred_check
      _
    $region26: #{inconv_forward.6} parent=5 // pred_check_branch
      %160 = sbr.rel (%p157) target = $region28
    $region27: #{inconv_forward.6} parent=5 // pred_region
      %s161 = ssub.s32 %s10, 1
      %p162 = scmp.lt.s32.totalorder %s19, 1
      %s163 = scalar_select %p162, %s19, 1
      %s164 = smul.addr %s163, 54
      %s165 = smul.addr %s164, 4
      %s166 = scalar_lea.vmem %s0, %s165
      %p167 = pneg %p48
      %p168 = pneg %p45
      %p169 = pneg %p69
      %p170 = pneg %p66
      %p171 = pneg %p97
      %p172 = pneg %p94
      %p173 = scmp.lt.s32.totalorder %s19, 1
      %s174 = scalar_select %p173, %s19, 1
      %p175 = scmp.lt.s32.totalorder %s20, 0
      %s176 = scalar_select %p175, %s20, 0
      %s177 = smul.addr %s176, 32
      %s178 = smul.addr %s174, 32
      %s179 = sadd.s32 %s177, %s178
      %s180 = smul.addr %s179, 8
      %s181 = scalar_lea.vmem %s2, %s180
      %p182 = pneg %p125
      %p183 = pneg %p122
      %p184 = scmp.lt.s32.totalorder %s19, 1
      %s185 = scalar_select %p184, %s19, 1
      %p186 = scmp.lt.s32.totalorder %s20, 0
      %s187 = scalar_select %p186, %s20, 0
      %s188 = sadd.s32 %s187, %s185
      %s189 = smul.addr %s188, 2
      %s190 = scalar_lea.vmem %s3, %s189
      %p191 = scmp.lt.s32.totalorder %s19, 1
      %s192 = scalar_select %p191, %s19, 1
      %s193 = smul.addr %s192, 54
      %s194 = smul.addr %s193, 4
      %s195 = scalar_lea.vmem %s0, %s194
      %p196 = scmp.lt.s32.totalorder %s19, 1
      %s197 = scalar_select %p196, %s19, 1
      %p198 = scmp.lt.s32.totalorder %s20, 0
      %s199 = scalar_select %p198, %s20, 0
      %s200 = smul.addr %s199, 32
      %s201 = smul.addr %s197, 32
      %s202 = sadd.s32 %s200, %s201
      %s203 = smul.addr %s202, 8
      %s204 = scalar_lea.vmem %s2, %s203
      %p205 = scmp.lt.s32.totalorder %s19, 1
      %s206 = scalar_select %p205, %s19, 1
      %p207 = scmp.lt.s32.totalorder %s20, 0
      %s208 = scalar_select %p207, %s20, 0
      %s209 = sadd.s32 %s208, %s206
      %s210 = smul.addr %s209, 2
      %s211 = scalar_lea.vmem %s3, %s210
      %s213 = smul.u32 %s20, 16
      %s214 = smul.u32 %s213, 3
      %s215 = smul.addr %s214, 4
      %s216 = scalar_lea.vmem %s195, %s215
      %v217 = vld [vmem:[%s216] sm:$0xf]
      %v218 = vld [vmem:[%s216 + $0x4] sm:$0xf]
      %v219 = vld [vmem:[%s216 + $0x8] sm:$0x1]
      %v220 = vld [vmem:[%s216 + $0xc] sm:$0xf]
      %v221 = vld [vmem:[%s216 + $0x10] sm:$0xf]
      %v222 = vld [vmem:[%s216 + $0x14] sm:$0x1]
      %v223 = vld [vmem:[%s216 + $0x18] sm:$0xf]
      %v224 = vld [vmem:[%s216 + $0x1c] sm:$0xf]
      %v225 = vld [vmem:[%s216 + $0x20] sm:$0x1]
      %v226 = vld [vmem:[%s216 + $0x24] sm:$0xf]
      %v227 = vld [vmem:[%s216 + $0x28] sm:$0xf]
      %v228 = vld [vmem:[%s216 + $0x2c] sm:$0x1]
      %v229 = vld [vmem:[%s216 + $0x30] sm:$0xf]
      %v230 = vld [vmem:[%s216 + $0x34] sm:$0xf]
      %v231 = vld [vmem:[%s216 + $0x38] sm:$0x1]
      %v232 = vld [vmem:[%s216 + $0x3c] sm:$0xf]
      %v233 = vld [vmem:[%s216 + $0x40] sm:$0xf]
      %v234 = vld [vmem:[%s216 + $0x44] sm:$0x1]
      %v235 = vld [vmem:[%s216 + $0x48] sm:$0xf]
      %v236 = vld [vmem:[%s216 + $0x4c] sm:$0xf]
      %v237 = vld [vmem:[%s216 + $0x50] sm:$0x1]
      %v238 = vld [vmem:[%s216 + $0x54] sm:$0xf]
      %v239 = vld [vmem:[%s216 + $0x58] sm:$0xf]
      %v240 = vld [vmem:[%s216 + $0x5c] sm:$0x1]
      %v241 = vld [vmem:[%s216 + $0x60] sm:$0xf]
      %v242 = vld [vmem:[%s216 + $0x64] sm:$0xf]
      %v243 = vld [vmem:[%s216 + $0x68] sm:$0x1]
      %v244 = vld [vmem:[%s216 + $0x6c] sm:$0xf]
      %v245 = vld [vmem:[%s216 + $0x70] sm:$0xf]
      %v246 = vld [vmem:[%s216 + $0x74] sm:$0x1]
      %v247 = vld [vmem:[%s216 + $0x78] sm:$0xf]
      %v248 = vld [vmem:[%s216 + $0x7c] sm:$0xf]
      %v249 = vld [vmem:[%s216 + $0x80] sm:$0x1]
      %v250 = vld [vmem:[%s216 + $0x84] sm:$0xf]
      %v251 = vld [vmem:[%s216 + $0x88] sm:$0xf]
      %v252 = vld [vmem:[%s216 + $0x8c] sm:$0x1]
      %v253 = vld [vmem:[%s216 + $0x90] sm:$0xf]
      %v254 = vld [vmem:[%s216 + $0x94] sm:$0xf]
      %v255 = vld [vmem:[%s216 + $0x98] sm:$0x1]
      %v256 = vld [vmem:[%s216 + $0x9c] sm:$0xf]
      %v257 = vld [vmem:[%s216 + $0xa0] sm:$0xf]
      %v258 = vld [vmem:[%s216 + $0xa4] sm:$0x1]
      %v259 = vld [vmem:[%s216 + $0xa8] sm:$0xf]
      %v260 = vld [vmem:[%s216 + $0xac] sm:$0xf]
      %v261 = vld [vmem:[%s216 + $0xb0] sm:$0x1]
      %v262 = vld [vmem:[%s216 + $0xb4] sm:$0xf]
      %v263 = vld [vmem:[%s216 + $0xb8] sm:$0xf]
      %v264 = vld [vmem:[%s216 + $0xbc] sm:$0x1]
      %s265 = sadd.s32 %s213, 1
      %s266 = smul.u32 %s265, 3
      %s267 = smul.addr %s266, 4
      %s268 = scalar_lea.vmem %s195, %s267
      %v269 = vld [vmem:[%s268] sm:$0xf]
      %v270 = vld [vmem:[%s268 + $0x4] sm:$0xf]
      %v271 = vld [vmem:[%s268 + $0x8] sm:$0x1]
      %v272 = vld [vmem:[%s268 + $0xc] sm:$0xf]
      %v273 = vld [vmem:[%s268 + $0x10] sm:$0xf]
      %v274 = vld [vmem:[%s268 + $0x14] sm:$0x1]
      %v275 = vld [vmem:[%s268 + $0x18] sm:$0xf]
      %v276 = vld [vmem:[%s268 + $0x1c] sm:$0xf]
      %v277 = vld [vmem:[%s268 + $0x20] sm:$0x1]
      %v278 = vld [vmem:[%s268 + $0x24] sm:$0xf]
      %v279 = vld [vmem:[%s268 + $0x28] sm:$0xf]
      %v280 = vld [vmem:[%s268 + $0x2c] sm:$0x1]
      %v281 = vld [vmem:[%s268 + $0x30] sm:$0xf]
      %v282 = vld [vmem:[%s268 + $0x34] sm:$0xf]
      %v283 = vld [vmem:[%s268 + $0x38] sm:$0x1]
      %v284 = vld [vmem:[%s268 + $0x3c] sm:$0xf]
      %v285 = vld [vmem:[%s268 + $0x40] sm:$0xf]
      %v286 = vld [vmem:[%s268 + $0x44] sm:$0x1]
      %v287 = vld [vmem:[%s268 + $0x48] sm:$0xf]
      %v288 = vld [vmem:[%s268 + $0x4c] sm:$0xf]
      %v289 = vld [vmem:[%s268 + $0x50] sm:$0x1]
      %v290 = vld [vmem:[%s268 + $0x54] sm:$0xf]
      %v291 = vld [vmem:[%s268 + $0x58] sm:$0xf]
      %v292 = vld [vmem:[%s268 + $0x5c] sm:$0x1]
      %v293 = vld [vmem:[%s268 + $0x60] sm:$0xf]
      %v294 = vld [vmem:[%s268 + $0x64] sm:$0xf]
      %v295 = vld [vmem:[%s268 + $0x68] sm:$0x1]
      %v296 = vld [vmem:[%s268 + $0x6c] sm:$0xf]
      %v297 = vld [vmem:[%s268 + $0x70] sm:$0xf]
      %v298 = vld [vmem:[%s268 + $0x74] sm:$0x1]
      %v299 = vld [vmem:[%s268 + $0x78] sm:$0xf]
      %v300 = vld [vmem:[%s268 + $0x7c] sm:$0xf]
      %v301 = vld [vmem:[%s268 + $0x80] sm:$0x1]
      %v302 = vld [vmem:[%s268 + $0x84] sm:$0xf]
      %v303 = vld [vmem:[%s268 + $0x88] sm:$0xf]
      %v304 = vld [vmem:[%s268 + $0x8c] sm:$0x1]
      %v305 = vld [vmem:[%s268 + $0x90] sm:$0xf]
      %v306 = vld [vmem:[%s268 + $0x94] sm:$0xf]
      %v307 = vld [vmem:[%s268 + $0x98] sm:$0x1]
      %v308 = vld [vmem:[%s268 + $0x9c] sm:$0xf]
      %v309 = vld [vmem:[%s268 + $0xa0] sm:$0xf]
      %v310 = vld [vmem:[%s268 + $0xa4] sm:$0x1]
      %v311 = vld [vmem:[%s268 + $0xa8] sm:$0xf]
      %v312 = vld [vmem:[%s268 + $0xac] sm:$0xf]
      %v313 = vld [vmem:[%s268 + $0xb0] sm:$0x1]
      %v314 = vld [vmem:[%s268 + $0xb4] sm:$0xf]
      %v315 = vld [vmem:[%s268 + $0xb8] sm:$0xf]
      %v316 = vld [vmem:[%s268 + $0xbc] sm:$0x1]
      %s317 = sadd.s32 %s213, 2
      %s318 = smul.u32 %s317, 3
      %s319 = smul.addr %s318, 4
      %s320 = scalar_lea.vmem %s195, %s319
      %v321 = vld [vmem:[%s320] sm:$0xf]
      %v322 = vld [vmem:[%s320 + $0x4] sm:$0xf]
      %v323 = vld [vmem:[%s320 + $0x8] sm:$0x1]
      %v324 = vld [vmem:[%s320 + $0xc] sm:$0xf]
      %v325 = vld [vmem:[%s320 + $0x10] sm:$0xf]
      %v326 = vld [vmem:[%s320 + $0x14] sm:$0x1]
      %v327 = vld [vmem:[%s320 + $0x18] sm:$0xf]
      %v328 = vld [vmem:[%s320 + $0x1c] sm:$0xf]
      %v329 = vld [vmem:[%s320 + $0x20] sm:$0x1]
      %v330 = vld [vmem:[%s320 + $0x24] sm:$0xf]
      %v331 = vld [vmem:[%s320 + $0x28] sm:$0xf]
      %v332 = vld [vmem:[%s320 + $0x2c] sm:$0x1]
      %v333 = vld [vmem:[%s320 + $0x30] sm:$0xf]
      %v334 = vld [vmem:[%s320 + $0x34] sm:$0xf]
      %v335 = vld [vmem:[%s320 + $0x38] sm:$0x1]
      %v336 = vld [vmem:[%s320 + $0x3c] sm:$0xf]
      %v337 = vld [vmem:[%s320 + $0x40] sm:$0xf]
      %v338 = vld [vmem:[%s320 + $0x44] sm:$0x1]
      %v339 = vld [vmem:[%s320 + $0x48] sm:$0xf]
      %v340 = vld [vmem:[%s320 + $0x4c] sm:$0xf]
      %v341 = vld [vmem:[%s320 + $0x50] sm:$0x1]
      %v342 = vld [vmem:[%s320 + $0x54] sm:$0xf]
      %v343 = vld [vmem:[%s320 + $0x58] sm:$0xf]
      %v344 = vld [vmem:[%s320 + $0x5c] sm:$0x1]
      %v345 = vld [vmem:[%s320 + $0x60] sm:$0xf]
      %v346 = vld [vmem:[%s320 + $0x64] sm:$0xf]
      %v347 = vld [vmem:[%s320 + $0x68] sm:$0x1]
      %v348 = vld [vmem:[%s320 + $0x6c] sm:$0xf]
      %v349 = vld [vmem:[%s320 + $0x70] sm:$0xf]
      %v350 = vld [vmem:[%s320 + $0x74] sm:$0x1]
      %v351 = vld [vmem:[%s320 + $0x78] sm:$0xf]
      %v352 = vld [vmem:[%s320 + $0x7c] sm:$0xf]
      %v353 = vld [vmem:[%s320 + $0x80] sm:$0x1]
      %v354 = vld [vmem:[%s320 + $0x84] sm:$0xf]
      %v355 = vld [vmem:[%s320 + $0x88] sm:$0xf]
      %v356 = vld [vmem:[%s320 + $0x8c] sm:$0x1]
      %v357 = vld [vmem:[%s320 + $0x90] sm:$0xf]
      %v358 = vld [vmem:[%s320 + $0x94] sm:$0xf]
      %v359 = vld [vmem:[%s320 + $0x98] sm:$0x1]
      %v360 = vld [vmem:[%s320 + $0x9c] sm:$0xf]
      %v361 = vld [vmem:[%s320 + $0xa0] sm:$0xf]
      %v362 = vld [vmem:[%s320 + $0xa4] sm:$0x1]
      %v363 = vld [vmem:[%s320 + $0xa8] sm:$0xf]
      %v364 = vld [vmem:[%s320 + $0xac] sm:$0xf]
      %v365 = vld [vmem:[%s320 + $0xb0] sm:$0x1]
      %v366 = vld [vmem:[%s320 + $0xb4] sm:$0xf]
      %v367 = vld [vmem:[%s320 + $0xb8] sm:$0xf]
      %v368 = vld [vmem:[%s320 + $0xbc] sm:$0x1]
      %v401 = vunpack.c.l.b16 %v217
      %v402 = vunpack.c.l.b16 %v218
      %v403 = vunpack.c.l.b16 %v220
      %v404 = vunpack.c.l.b16 %v221
      %v405 = vunpack.c.l.b16 %v223
      %v406 = vunpack.c.l.b16 %v224
      %v407 = vunpack.c.l.b16 %v226
      %v408 = vunpack.c.l.b16 %v227
      %v409 = vunpack.c.l.b16 %v229
      %v410 = vunpack.c.l.b16 %v230
      %v411 = vunpack.c.l.b16 %v232
      %v412 = vunpack.c.l.b16 %v233
      %v413 = vunpack.c.l.b16 %v235
      %v414 = vunpack.c.l.b16 %v236
      %v415 = vunpack.c.l.b16 %v238
      %v416 = vunpack.c.l.b16 %v239
      %v417 = vunpack.c.l.b16 %v241
      %v418 = vunpack.c.l.b16 %v242
      %v419 = vunpack.c.l.b16 %v244
      %v420 = vunpack.c.l.b16 %v245
      %v421 = vunpack.c.l.b16 %v247
      %v422 = vunpack.c.l.b16 %v248
      %v423 = vunpack.c.l.b16 %v250
      %v424 = vunpack.c.l.b16 %v251
      %v425 = vunpack.c.l.b16 %v253
      %v426 = vunpack.c.l.b16 %v254
      %v427 = vunpack.c.l.b16 %v256
      %v428 = vunpack.c.l.b16 %v257
      %v429 = vunpack.c.l.b16 %v259
      %v430 = vunpack.c.l.b16 %v260
      %v431 = vunpack.c.l.b16 %v262
      %v432 = vunpack.c.l.b16 %v263
      %v433 = vpack.c.b16 %v402, %v401
      %v434 = vpack.c.b16 %v404, %v403
      %v435 = vpack.c.b16 %v406, %v405
      %v436 = vpack.c.b16 %v408, %v407
      %v437 = vpack.c.b16 %v410, %v409
      %v438 = vpack.c.b16 %v412, %v411
      %v439 = vpack.c.b16 %v414, %v413
      %v440 = vpack.c.b16 %v416, %v415
      %v441 = vpack.c.b16 %v418, %v417
      %v442 = vpack.c.b16 %v420, %v419
      %v443 = vpack.c.b16 %v422, %v421
      %v444 = vpack.c.b16 %v424, %v423
      %v445 = vpack.c.b16 %v426, %v425
      %v446 = vpack.c.b16 %v428, %v427
      %v447 = vpack.c.b16 %v430, %v429
      %v448 = vpack.c.b16 %v432, %v431
      %v465 = vunpack.c.l.b16 %v219
      %v466 = vunpack.c.l.b16 %v222
      %v467 = vunpack.c.l.b16 %v225
      %v468 = vunpack.c.l.b16 %v228
      %v469 = vunpack.c.l.b16 %v231
      %v470 = vunpack.c.l.b16 %v234
      %v471 = vunpack.c.l.b16 %v237
      %v472 = vunpack.c.l.b16 %v240
      %v473 = vunpack.c.l.b16 %v243
      %v474 = vunpack.c.l.b16 %v246
      %v475 = vunpack.c.l.b16 %v249
      %v476 = vunpack.c.l.b16 %v252
      %v477 = vunpack.c.l.b16 %v255
      %v478 = vunpack.c.l.b16 %v258
      %v479 = vunpack.c.l.b16 %v261
      %v480 = vunpack.c.l.b16 %v264
      %v481 = vpack.c.b16 %v465, %v465
      %v482 = vpack.c.b16 %v466, %v466
      %v483 = vpack.c.b16 %v467, %v467
      %v484 = vpack.c.b16 %v468, %v468
      %v485 = vpack.c.b16 %v469, %v469
      %v486 = vpack.c.b16 %v470, %v470
      %v487 = vpack.c.b16 %v471, %v471
      %v488 = vpack.c.b16 %v472, %v472
      %v489 = vpack.c.b16 %v473, %v473
      %v490 = vpack.c.b16 %v474, %v474
      %v491 = vpack.c.b16 %v475, %v475
      %v492 = vpack.c.b16 %v476, %v476
      %v493 = vpack.c.b16 %v477, %v477
      %v494 = vpack.c.b16 %v478, %v478
      %v495 = vpack.c.b16 %v479, %v479
      %v496 = vpack.c.b16 %v480, %v480
      %vm497 = vsmask.f32 7424
      %v499 = vshrl.u32 %v433, 16
      %v501 = vshll.u32 %v433, 16
      %v503 = vrot.slane %v501, 1
      %v504 = vor.u32 %v499, %v503
      %v506 = vshll.u32 %v481, 16
      %v508 = vrot.slane %v506, 1
      %v509 = vsel %vm497, %v504, %v508
      %v511 = vshrl.u32 %v434, 16
      %v513 = vshll.u32 %v434, 16
      %v515 = vrot.slane %v513, 1
      %v516 = vor.u32 %v511, %v515
      %v518 = vshll.u32 %v482, 16
      %v520 = vrot.slane %v518, 1
      %v521 = vsel %vm497, %v516, %v520
      %v523 = vshrl.u32 %v435, 16
      %v525 = vshll.u32 %v435, 16
      %v527 = vrot.slane %v525, 1
      %v528 = vor.u32 %v523, %v527
      %v530 = vshll.u32 %v483, 16
      %v532 = vrot.slane %v530, 1
      %v533 = vsel %vm497, %v528, %v532
      %v535 = vshrl.u32 %v436, 16
      %v537 = vshll.u32 %v436, 16
      %v539 = vrot.slane %v537, 1
      %v540 = vor.u32 %v535, %v539
      %v542 = vshll.u32 %v484, 16
      %v544 = vrot.slane %v542, 1
      %v545 = vsel %vm497, %v540, %v544
      %v547 = vshrl.u32 %v437, 16
      %v549 = vshll.u32 %v437, 16
      %v551 = vrot.slane %v549, 1
      %v552 = vor.u32 %v547, %v551
      %v554 = vshll.u32 %v485, 16
      %v556 = vrot.slane %v554, 1
      %v557 = vsel %vm497, %v552, %v556
      %v559 = vshrl.u32 %v438, 16
      %v561 = vshll.u32 %v438, 16
      %v563 = vrot.slane %v561, 1
      %v564 = vor.u32 %v559, %v563
      %v566 = vshll.u32 %v486, 16
      %v568 = vrot.slane %v566, 1
      %v569 = vsel %vm497, %v564, %v568
      %v571 = vshrl.u32 %v439, 16
      %v573 = vshll.u32 %v439, 16
      %v575 = vrot.slane %v573, 1
      %v576 = vor.u32 %v571, %v575
      %v578 = vshll.u32 %v487, 16
      %v580 = vrot.slane %v578, 1
      %v581 = vsel %vm497, %v576, %v580
      %v583 = vshrl.u32 %v440, 16
      %v585 = vshll.u32 %v440, 16
      %v587 = vrot.slane %v585, 1
      %v588 = vor.u32 %v583, %v587
      %v590 = vshll.u32 %v488, 16
      %v592 = vrot.slane %v590, 1
      %v593 = vsel %vm497, %v588, %v592
      %v595 = vshrl.u32 %v441, 16
      %v597 = vshll.u32 %v441, 16
      %v599 = vrot.slane %v597, 1
      %v600 = vor.u32 %v595, %v599
      %v602 = vshll.u32 %v489, 16
      %v604 = vrot.slane %v602, 1
      %v605 = vsel %vm497, %v600, %v604
      %v607 = vshrl.u32 %v442, 16
      %v609 = vshll.u32 %v442, 16
      %v611 = vrot.slane %v609, 1
      %v612 = vor.u32 %v607, %v611
      %v614 = vshll.u32 %v490, 16
      %v616 = vrot.slane %v614, 1
      %v617 = vsel %vm497, %v612, %v616
      %v619 = vshrl.u32 %v443, 16
      %v621 = vshll.u32 %v443, 16
      %v623 = vrot.slane %v621, 1
      %v624 = vor.u32 %v619, %v623
      %v626 = vshll.u32 %v491, 16
      %v628 = vrot.slane %v626, 1
      %v629 = vsel %vm497, %v624, %v628
      %v631 = vshrl.u32 %v444, 16
      %v633 = vshll.u32 %v444, 16
      %v635 = vrot.slane %v633, 1
      %v636 = vor.u32 %v631, %v635
      %v638 = vshll.u32 %v492, 16
      %v640 = vrot.slane %v638, 1
      %v641 = vsel %vm497, %v636, %v640
      %v643 = vshrl.u32 %v445, 16
      %v645 = vshll.u32 %v445, 16
      %v647 = vrot.slane %v645, 1
      %v648 = vor.u32 %v643, %v647
      %v650 = vshll.u32 %v493, 16
      %v652 = vrot.slane %v650, 1
      %v653 = vsel %vm497, %v648, %v652
      %v655 = vshrl.u32 %v446, 16
      %v657 = vshll.u32 %v446, 16
      %v659 = vrot.slane %v657, 1
      %v660 = vor.u32 %v655, %v659
      %v662 = vshll.u32 %v494, 16
      %v664 = vrot.slane %v662, 1
      %v665 = vsel %vm497, %v660, %v664
      %v667 = vshrl.u32 %v447, 16
      %v669 = vshll.u32 %v447, 16
      %v671 = vrot.slane %v669, 1
      %v672 = vor.u32 %v667, %v671
      %v674 = vshll.u32 %v495, 16
      %v676 = vrot.slane %v674, 1
      %v677 = vsel %vm497, %v672, %v676
      %v679 = vshrl.u32 %v448, 16
      %v681 = vshll.u32 %v448, 16
      %v683 = vrot.slane %v681, 1
      %v684 = vor.u32 %v679, %v683
      %v686 = vshll.u32 %v496, 16
      %v688 = vrot.slane %v686, 1
      %v689 = vsel %vm497, %v684, %v688
      %690 = vrot.lane.b32.xlu0 %v509, 32
      %v691 = vpop.permute.xlu0 %690
      %692 = vrot.lane.b32.xlu0 %v521, 32
      %v693 = vpop.permute.xlu0 %692
      %694 = vrot.lane.b32.xlu0 %v533, 32
      %v695 = vpop.permute.xlu0 %694
      %696 = vrot.lane.b32.xlu0 %v545, 32
      %v697 = vpop.permute.xlu0 %696
      %698 = vrot.lane.b32.xlu0 %v557, 32
      %v699 = vpop.permute.xlu0 %698
      %700 = vrot.lane.b32.xlu0 %v569, 32
      %v701 = vpop.permute.xlu0 %700
      %702 = vrot.lane.b32.xlu0 %v581, 32
      %v703 = vpop.permute.xlu0 %702
      %704 = vrot.lane.b32.xlu0 %v593, 32
      %v705 = vpop.permute.xlu0 %704
      %706 = vrot.lane.b32.xlu0 %v605, 32
      %v707 = vpop.permute.xlu0 %706
      %708 = vrot.lane.b32.xlu0 %v617, 32
      %v709 = vpop.permute.xlu0 %708
      %710 = vrot.lane.b32.xlu0 %v629, 32
      %v711 = vpop.permute.xlu0 %710
      %712 = vrot.lane.b32.xlu0 %v641, 32
      %v713 = vpop.permute.xlu0 %712
      %714 = vrot.lane.b32.xlu0 %v653, 32
      %v715 = vpop.permute.xlu0 %714
      %716 = vrot.lane.b32.xlu0 %v665, 32
      %v717 = vpop.permute.xlu0 %716
      %718 = vrot.lane.b32.xlu0 %v677, 32
      %v719 = vpop.permute.xlu0 %718
      %720 = vrot.lane.b32.xlu0 %v689, 32
      %v721 = vpop.permute.xlu0 %720
      %vm722 = vcmask 1046528
      %v723 = vrot.slane %v433, 1
      %v724 = vrot.slane %v481, 1
      %v725 = vsel %vm722, %v723, %v724
      %v726 = vrot.slane %v434, 1
      %v727 = vrot.slane %v482, 1
      %v728 = vsel %vm722, %v726, %v727
      %v729 = vrot.slane %v435, 1
      %v730 = vrot.slane %v483, 1
      %v731 = vsel %vm722, %v729, %v730
      %v732 = vrot.slane %v436, 1
      %v733 = vrot.slane %v484, 1
      %v734 = vsel %vm722, %v732, %v733
      %v735 = vrot.slane %v437, 1
      %v736 = vrot.slane %v485, 1
      %v737 = vsel %vm722, %v735, %v736
      %v738 = vrot.slane %v438, 1
      %v739 = vrot.slane %v486, 1
      %v740 = vsel %vm722, %v738, %v739
      %v741 = vrot.slane %v439, 1
      %v742 = vrot.slane %v487, 1
      %v743 = vsel %vm722, %v741, %v742
      %v744 = vrot.slane %v440, 1
      %v745 = vrot.slane %v488, 1
      %v746 = vsel %vm722, %v744, %v745
      %v747 = vrot.slane %v441, 1
      %v748 = vrot.slane %v489, 1
      %v749 = vsel %vm722, %v747, %v748
      %v750 = vrot.slane %v442, 1
      %v751 = vrot.slane %v490, 1
      %v752 = vsel %vm722, %v750, %v751
      %v753 = vrot.slane %v443, 1
      %v754 = vrot.slane %v491, 1
      %v755 = vsel %vm722, %v753, %v754
      %v756 = vrot.slane %v444, 1
      %v757 = vrot.slane %v492, 1
      %v758 = vsel %vm722, %v756, %v757
      %v759 = vrot.slane %v445, 1
      %v760 = vrot.slane %v493, 1
      %v761 = vsel %vm722, %v759, %v760
      %v762 = vrot.slane %v446, 1
      %v763 = vrot.slane %v494, 1
      %v764 = vsel %vm722, %v762, %v763
      %v765 = vrot.slane %v447, 1
      %v766 = vrot.slane %v495, 1
      %v767 = vsel %vm722, %v765, %v766
      %v768 = vrot.slane %v448, 1
      %v769 = vrot.slane %v496, 1
      %v770 = vsel %vm722, %v768, %v769
      %771 = vrot.lane.b32.xlu0 %v725, 64
      %v772 = vpop.permute.xlu0 %771
      %773 = vrot.lane.b32.xlu0 %v728, 64
      %v774 = vpop.permute.xlu0 %773
      %775 = vrot.lane.b32.xlu0 %v731, 64
      %v776 = vpop.permute.xlu0 %775
      %777 = vrot.lane.b32.xlu0 %v734, 64
      %v778 = vpop.permute.xlu0 %777
      %779 = vrot.lane.b32.xlu0 %v737, 64
      %v780 = vpop.permute.xlu0 %779
      %781 = vrot.lane.b32.xlu0 %v740, 64
      %v782 = vpop.permute.xlu0 %781
      %783 = vrot.lane.b32.xlu0 %v743, 64
      %v784 = vpop.permute.xlu0 %783
      %785 = vrot.lane.b32.xlu0 %v746, 64
      %v786 = vpop.permute.xlu0 %785
      %787 = vrot.lane.b32.xlu0 %v749, 64
      %v788 = vpop.permute.xlu0 %787
      %789 = vrot.lane.b32.xlu0 %v752, 64
      %v790 = vpop.permute.xlu0 %789
      %791 = vrot.lane.b32.xlu0 %v755, 64
      %v792 = vpop.permute.xlu0 %791
      %793 = vrot.lane.b32.xlu0 %v758, 64
      %v794 = vpop.permute.xlu0 %793
      %795 = vrot.lane.b32.xlu0 %v761, 64
      %v796 = vpop.permute.xlu0 %795
      %797 = vrot.lane.b32.xlu0 %v764, 64
      %v798 = vpop.permute.xlu0 %797
      %799 = vrot.lane.b32.xlu0 %v767, 64
      %v800 = vpop.permute.xlu0 %799
      %801 = vrot.lane.b32.xlu0 %v770, 64
      %v802 = vpop.permute.xlu0 %801
      %v835 = vunpack.c.l.b16 %v269
      %v836 = vunpack.c.l.b16 %v270
      %v837 = vunpack.c.l.b16 %v272
      %v838 = vunpack.c.l.b16 %v273
      %v839 = vunpack.c.l.b16 %v275
      %v840 = vunpack.c.l.b16 %v276
      %v841 = vunpack.c.l.b16 %v278
      %v842 = vunpack.c.l.b16 %v279
      %v843 = vunpack.c.l.b16 %v281
      %v844 = vunpack.c.l.b16 %v282
      %v845 = vunpack.c.l.b16 %v284
      %v846 = vunpack.c.l.b16 %v285
      %v847 = vunpack.c.l.b16 %v287
      %v848 = vunpack.c.l.b16 %v288
      %v849 = vunpack.c.l.b16 %v290
      %v850 = vunpack.c.l.b16 %v291
      %v851 = vunpack.c.l.b16 %v293
      %v852 = vunpack.c.l.b16 %v294
      %v853 = vunpack.c.l.b16 %v296
      %v854 = vunpack.c.l.b16 %v297
      %v855 = vunpack.c.l.b16 %v299
      %v856 = vunpack.c.l.b16 %v300
      %v857 = vunpack.c.l.b16 %v302
      %v858 = vunpack.c.l.b16 %v303
      %v859 = vunpack.c.l.b16 %v305
      %v860 = vunpack.c.l.b16 %v306
      %v861 = vunpack.c.l.b16 %v308
      %v862 = vunpack.c.l.b16 %v309
      %v863 = vunpack.c.l.b16 %v311
      %v864 = vunpack.c.l.b16 %v312
      %v865 = vunpack.c.l.b16 %v314
      %v866 = vunpack.c.l.b16 %v315
      %v867 = vpack.c.b16 %v836, %v835
      %v868 = vpack.c.b16 %v838, %v837
      %v869 = vpack.c.b16 %v840, %v839
      %v870 = vpack.c.b16 %v842, %v841
      %v871 = vpack.c.b16 %v844, %v843
      %v872 = vpack.c.b16 %v846, %v845
      %v873 = vpack.c.b16 %v848, %v847
      %v874 = vpack.c.b16 %v850, %v849
      %v875 = vpack.c.b16 %v852, %v851
      %v876 = vpack.c.b16 %v854, %v853
      %v877 = vpack.c.b16 %v856, %v855
      %v878 = vpack.c.b16 %v858, %v857
      %v879 = vpack.c.b16 %v860, %v859
      %v880 = vpack.c.b16 %v862, %v861
      %v881 = vpack.c.b16 %v864, %v863
      %v882 = vpack.c.b16 %v866, %v865
      %883 = vrot.lane.b32.xlu0 %v867, 96
      %v884 = vpop.permute.xlu0 %883
      %885 = vrot.lane.b32.xlu0 %v868, 96
      %v886 = vpop.permute.xlu0 %885
      %887 = vrot.lane.b32.xlu0 %v869, 96
      %v888 = vpop.permute.xlu0 %887
      %889 = vrot.lane.b32.xlu0 %v870, 96
      %v890 = vpop.permute.xlu0 %889
      %891 = vrot.lane.b32.xlu0 %v871, 96
      %v892 = vpop.permute.xlu0 %891
      %893 = vrot.lane.b32.xlu0 %v872, 96
      %v894 = vpop.permute.xlu0 %893
      %895 = vrot.lane.b32.xlu0 %v873, 96
      %v896 = vpop.permute.xlu0 %895
      %897 = vrot.lane.b32.xlu0 %v874, 96
      %v898 = vpop.permute.xlu0 %897
      %899 = vrot.lane.b32.xlu0 %v875, 96
      %v900 = vpop.permute.xlu0 %899
      %901 = vrot.lane.b32.xlu0 %v876, 96
      %v902 = vpop.permute.xlu0 %901
      %903 = vrot.lane.b32.xlu0 %v877, 96
      %v904 = vpop.permute.xlu0 %903
      %905 = vrot.lane.b32.xlu0 %v878, 96
      %v906 = vpop.permute.xlu0 %905
      %907 = vrot.lane.b32.xlu0 %v879, 96
      %v908 = vpop.permute.xlu0 %907
      %909 = vrot.lane.b32.xlu0 %v880, 96
      %v910 = vpop.permute.xlu0 %909
      %911 = vrot.lane.b32.xlu0 %v881, 96
      %v912 = vpop.permute.xlu0 %911
      %913 = vrot.lane.b32.xlu0 %v882, 96
      %v914 = vpop.permute.xlu0 %913
      %v931 = vunpack.c.l.b16 %v271
      %v932 = vunpack.c.l.b16 %v274
      %v933 = vunpack.c.l.b16 %v277
      %v934 = vunpack.c.l.b16 %v280
      %v935 = vunpack.c.l.b16 %v283
      %v936 = vunpack.c.l.b16 %v286
      %v937 = vunpack.c.l.b16 %v289
      %v938 = vunpack.c.l.b16 %v292
      %v939 = vunpack.c.l.b16 %v295
      %v940 = vunpack.c.l.b16 %v298
      %v941 = vunpack.c.l.b16 %v301
      %v942 = vunpack.c.l.b16 %v304
      %v943 = vunpack.c.l.b16 %v307
      %v944 = vunpack.c.l.b16 %v310
      %v945 = vunpack.c.l.b16 %v313
      %v946 = vunpack.c.l.b16 %v316
      %v947 = vpack.c.b16 %v931, %v931
      %v948 = vpack.c.b16 %v932, %v932
      %v949 = vpack.c.b16 %v933, %v933
      %v950 = vpack.c.b16 %v934, %v934
      %v951 = vpack.c.b16 %v935, %v935
      %v952 = vpack.c.b16 %v936, %v936
      %v953 = vpack.c.b16 %v937, %v937
      %v954 = vpack.c.b16 %v938, %v938
      %v955 = vpack.c.b16 %v939, %v939
      %v956 = vpack.c.b16 %v940, %v940
      %v957 = vpack.c.b16 %v941, %v941
      %v958 = vpack.c.b16 %v942, %v942
      %v959 = vpack.c.b16 %v943, %v943
      %v960 = vpack.c.b16 %v944, %v944
      %v961 = vpack.c.b16 %v945, %v945
      %v962 = vpack.c.b16 %v946, %v946
      %v964 = vshrl.u32 %v867, 16
      %v966 = vshll.u32 %v867, 16
      %v968 = vrot.slane %v966, 1
      %v969 = vor.u32 %v964, %v968
      %v971 = vshll.u32 %v947, 16
      %v973 = vrot.slane %v971, 1
      %v974 = vsel %vm497, %v969, %v973
      %v976 = vshrl.u32 %v868, 16
      %v978 = vshll.u32 %v868, 16
      %v980 = vrot.slane %v978, 1
      %v981 = vor.u32 %v976, %v980
      %v983 = vshll.u32 %v948, 16
      %v985 = vrot.slane %v983, 1
      %v986 = vsel %vm497, %v981, %v985
      %v988 = vshrl.u32 %v869, 16
      %v990 = vshll.u32 %v869, 16
      %v992 = vrot.slane %v990, 1
      %v993 = vor.u32 %v988, %v992
      %v995 = vshll.u32 %v949, 16
      %v997 = vrot.slane %v995, 1
      %v998 = vsel %vm497, %v993, %v997
      %v1000 = vshrl.u32 %v870, 16
      %v1002 = vshll.u32 %v870, 16
      %v1004 = vrot.slane %v1002, 1
      %v1005 = vor.u32 %v1000, %v1004
      %v1007 = vshll.u32 %v950, 16
      %v1009 = vrot.slane %v1007, 1
      %v1010 = vsel %vm497, %v1005, %v1009
      %v1012 = vshrl.u32 %v871, 16
      %v1014 = vshll.u32 %v871, 16
      %v1016 = vrot.slane %v1014, 1
      %v1017 = vor.u32 %v1012, %v1016
      %v1019 = vshll.u32 %v951, 16
      %v1021 = vrot.slane %v1019, 1
      %v1022 = vsel %vm497, %v1017, %v1021
      %v1024 = vshrl.u32 %v872, 16
      %v1026 = vshll.u32 %v872, 16
      %v1028 = vrot.slane %v1026, 1
      %v1029 = vor.u32 %v1024, %v1028
      %v1031 = vshll.u32 %v952, 16
      %v1033 = vrot.slane %v1031, 1
      %v1034 = vsel %vm497, %v1029, %v1033
      %v1036 = vshrl.u32 %v873, 16
      %v1038 = vshll.u32 %v873, 16
      %v1040 = vrot.slane %v1038, 1
      %v1041 = vor.u32 %v1036, %v1040
      %v1043 = vshll.u32 %v953, 16
      %v1045 = vrot.slane %v1043, 1
      %v1046 = vsel %vm497, %v1041, %v1045
      %v1048 = vshrl.u32 %v874, 16
      %v1050 = vshll.u32 %v874, 16
      %v1052 = vrot.slane %v1050, 1
      %v1053 = vor.u32 %v1048, %v1052
      %v1055 = vshll.u32 %v954, 16
      %v1057 = vrot.slane %v1055, 1
      %v1058 = vsel %vm497, %v1053, %v1057
      %v1060 = vshrl.u32 %v875, 16
      %v1062 = vshll.u32 %v875, 16
      %v1064 = vrot.slane %v1062, 1
      %v1065 = vor.u32 %v1060, %v1064
      %v1067 = vshll.u32 %v955, 16
      %v1069 = vrot.slane %v1067, 1
      %v1070 = vsel %vm497, %v1065, %v1069
      %v1072 = vshrl.u32 %v876, 16
      %v1074 = vshll.u32 %v876, 16
      %v1076 = vrot.slane %v1074, 1
      %v1077 = vor.u32 %v1072, %v1076
      %v1079 = vshll.u32 %v956, 16
      %v1081 = vrot.slane %v1079, 1
      %v1082 = vsel %vm497, %v1077, %v1081
      %v1084 = vshrl.u32 %v877, 16
      %v1086 = vshll.u32 %v877, 16
      %v1088 = vrot.slane %v1086, 1
      %v1089 = vor.u32 %v1084, %v1088
      %v1091 = vshll.u32 %v957, 16
      %v1093 = vrot.slane %v1091, 1
      %v1094 = vsel %vm497, %v1089, %v1093
      %v1096 = vshrl.u32 %v878, 16
      %v1098 = vshll.u32 %v878, 16
      %v1100 = vrot.slane %v1098, 1
      %v1101 = vor.u32 %v1096, %v1100
      %v1103 = vshll.u32 %v958, 16
      %v1105 = vrot.slane %v1103, 1
      %v1106 = vsel %vm497, %v1101, %v1105
      %v1108 = vshrl.u32 %v879, 16
      %v1110 = vshll.u32 %v879, 16
      %v1112 = vrot.slane %v1110, 1
      %v1113 = vor.u32 %v1108, %v1112
      %v1115 = vshll.u32 %v959, 16
      %v1117 = vrot.slane %v1115, 1
      %v1118 = vsel %vm497, %v1113, %v1117
      %v1120 = vshrl.u32 %v880, 16
      %v1122 = vshll.u32 %v880, 16
      %v1124 = vrot.slane %v1122, 1
      %v1125 = vor.u32 %v1120, %v1124
      %v1127 = vshll.u32 %v960, 16
      %v1129 = vrot.slane %v1127, 1
      %v1130 = vsel %vm497, %v1125, %v1129
      %v1132 = vshrl.u32 %v881, 16
      %v1134 = vshll.u32 %v881, 16
      %v1136 = vrot.slane %v1134, 1
      %v1137 = vor.u32 %v1132, %v1136
      %v1139 = vshll.u32 %v961, 16
      %v1141 = vrot.slane %v1139, 1
      %v1142 = vsel %vm497, %v1137, %v1141
      %v1144 = vshrl.u32 %v882, 16
      %v1146 = vshll.u32 %v882, 16
      %v1148 = vrot.slane %v1146, 1
      %v1149 = vor.u32 %v1144, %v1148
      %v1151 = vshll.u32 %v962, 16
      %v1153 = vrot.slane %v1151, 1
      %v1154 = vsel %vm497, %v1149, %v1153
      %v1155 = vrot.slane %v867, 1
      %v1156 = vrot.slane %v947, 1
      %v1157 = vsel %vm722, %v1155, %v1156
      %v1158 = vrot.slane %v868, 1
      %v1159 = vrot.slane %v948, 1
      %v1160 = vsel %vm722, %v1158, %v1159
      %v1161 = vrot.slane %v869, 1
      %v1162 = vrot.slane %v949, 1
      %v1163 = vsel %vm722, %v1161, %v1162
      %v1164 = vrot.slane %v870, 1
      %v1165 = vrot.slane %v950, 1
      %v1166 = vsel %vm722, %v1164, %v1165
      %v1167 = vrot.slane %v871, 1
      %v1168 = vrot.slane %v951, 1
      %v1169 = vsel %vm722, %v1167, %v1168
      %v1170 = vrot.slane %v872, 1
      %v1171 = vrot.slane %v952, 1
      %v1172 = vsel %vm722, %v1170, %v1171
      %v1173 = vrot.slane %v873, 1
      %v1174 = vrot.slane %v953, 1
      %v1175 = vsel %vm722, %v1173, %v1174
      %v1176 = vrot.slane %v874, 1
      %v1177 = vrot.slane %v954, 1
      %v1178 = vsel %vm722, %v1176, %v1177
      %v1179 = vrot.slane %v875, 1
      %v1180 = vrot.slane %v955, 1
      %v1181 = vsel %vm722, %v1179, %v1180
      %v1182 = vrot.slane %v876, 1
      %v1183 = vrot.slane %v956, 1
      %v1184 = vsel %vm722, %v1182, %v1183
      %v1185 = vrot.slane %v877, 1
      %v1186 = vrot.slane %v957, 1
      %v1187 = vsel %vm722, %v1185, %v1186
      %v1188 = vrot.slane %v878, 1
      %v1189 = vrot.slane %v958, 1
      %v1190 = vsel %vm722, %v1188, %v1189
      %v1191 = vrot.slane %v879, 1
      %v1192 = vrot.slane %v959, 1
      %v1193 = vsel %vm722, %v1191, %v1192
      %v1194 = vrot.slane %v880, 1
      %v1195 = vrot.slane %v960, 1
      %v1196 = vsel %vm722, %v1194, %v1195
      %v1197 = vrot.slane %v881, 1
      %v1198 = vrot.slane %v961, 1
      %v1199 = vsel %vm722, %v1197, %v1198
      %v1200 = vrot.slane %v882, 1
      %v1201 = vrot.slane %v962, 1
      %v1202 = vsel %vm722, %v1200, %v1201
      %1203 = vrot.lane.b32.xlu0 %v1157, 32
      %v1204 = vpop.permute.xlu0 %1203
      %1205 = vrot.lane.b32.xlu0 %v1160, 32
      %v1206 = vpop.permute.xlu0 %1205
      %1207 = vrot.lane.b32.xlu0 %v1163, 32
      %v1208 = vpop.permute.xlu0 %1207
      %1209 = vrot.lane.b32.xlu0 %v1166, 32
      %v1210 = vpop.permute.xlu0 %1209
      %1211 = vrot.lane.b32.xlu0 %v1169, 32
      %v1212 = vpop.permute.xlu0 %1211
      %1213 = vrot.lane.b32.xlu0 %v1172, 32
      %v1214 = vpop.permute.xlu0 %1213
      %1215 = vrot.lane.b32.xlu0 %v1175, 32
      %v1216 = vpop.permute.xlu0 %1215
      %1217 = vrot.lane.b32.xlu0 %v1178, 32
      %v1218 = vpop.permute.xlu0 %1217
      %1219 = vrot.lane.b32.xlu0 %v1181, 32
      %v1220 = vpop.permute.xlu0 %1219
      %1221 = vrot.lane.b32.xlu0 %v1184, 32
      %v1222 = vpop.permute.xlu0 %1221
      %1223 = vrot.lane.b32.xlu0 %v1187, 32
      %v1224 = vpop.permute.xlu0 %1223
      %1225 = vrot.lane.b32.xlu0 %v1190, 32
      %v1226 = vpop.permute.xlu0 %1225
      %1227 = vrot.lane.b32.xlu0 %v1193, 32
      %v1228 = vpop.permute.xlu0 %1227
      %1229 = vrot.lane.b32.xlu0 %v1196, 32
      %v1230 = vpop.permute.xlu0 %1229
      %1231 = vrot.lane.b32.xlu0 %v1199, 32
      %v1232 = vpop.permute.xlu0 %1231
      %1233 = vrot.lane.b32.xlu0 %v1202, 32
      %v1234 = vpop.permute.xlu0 %1233
      %v1267 = vunpack.c.l.b16 %v321
      %v1268 = vunpack.c.l.b16 %v322
      %v1269 = vunpack.c.l.b16 %v324
      %v1270 = vunpack.c.l.b16 %v325
      %v1271 = vunpack.c.l.b16 %v327
      %v1272 = vunpack.c.l.b16 %v328
      %v1273 = vunpack.c.l.b16 %v330
      %v1274 = vunpack.c.l.b16 %v331
      %v1275 = vunpack.c.l.b16 %v333
      %v1276 = vunpack.c.l.b16 %v334
      %v1277 = vunpack.c.l.b16 %v336
      %v1278 = vunpack.c.l.b16 %v337
      %v1279 = vunpack.c.l.b16 %v339
      %v1280 = vunpack.c.l.b16 %v340
      %v1281 = vunpack.c.l.b16 %v342
      %v1282 = vunpack.c.l.b16 %v343
      %v1283 = vunpack.c.l.b16 %v345
      %v1284 = vunpack.c.l.b16 %v346
      %v1285 = vunpack.c.l.b16 %v348
      %v1286 = vunpack.c.l.b16 %v349
      %v1287 = vunpack.c.l.b16 %v351
      %v1288 = vunpack.c.l.b16 %v352
      %v1289 = vunpack.c.l.b16 %v354
      %v1290 = vunpack.c.l.b16 %v355
      %v1291 = vunpack.c.l.b16 %v357
      %v1292 = vunpack.c.l.b16 %v358
      %v1293 = vunpack.c.l.b16 %v360
      %v1294 = vunpack.c.l.b16 %v361
      %v1295 = vunpack.c.l.b16 %v363
      %v1296 = vunpack.c.l.b16 %v364
      %v1297 = vunpack.c.l.b16 %v366
      %v1298 = vunpack.c.l.b16 %v367
      %v1299 = vpack.c.b16 %v1268, %v1267
      %v1300 = vpack.c.b16 %v1270, %v1269
      %v1301 = vpack.c.b16 %v1272, %v1271
      %v1302 = vpack.c.b16 %v1274, %v1273
      %v1303 = vpack.c.b16 %v1276, %v1275
      %v1304 = vpack.c.b16 %v1278, %v1277
      %v1305 = vpack.c.b16 %v1280, %v1279
      %v1306 = vpack.c.b16 %v1282, %v1281
      %v1307 = vpack.c.b16 %v1284, %v1283
      %v1308 = vpack.c.b16 %v1286, %v1285
      %v1309 = vpack.c.b16 %v1288, %v1287
      %v1310 = vpack.c.b16 %v1290, %v1289
      %v1311 = vpack.c.b16 %v1292, %v1291
      %v1312 = vpack.c.b16 %v1294, %v1293
      %v1313 = vpack.c.b16 %v1296, %v1295
      %v1314 = vpack.c.b16 %v1298, %v1297
      %1315 = vrot.lane.b32.xlu0 %v1299, 64
      %v1316 = vpop.permute.xlu0 %1315
      %1317 = vrot.lane.b32.xlu0 %v1300, 64
      %v1318 = vpop.permute.xlu0 %1317
      %1319 = vrot.lane.b32.xlu0 %v1301, 64
      %v1320 = vpop.permute.xlu0 %1319
      %1321 = vrot.lane.b32.xlu0 %v1302, 64
      %v1322 = vpop.permute.xlu0 %1321
      %1323 = vrot.lane.b32.xlu0 %v1303, 64
      %v1324 = vpop.permute.xlu0 %1323
      %1325 = vrot.lane.b32.xlu0 %v1304, 64
      %v1326 = vpop.permute.xlu0 %1325
      %1327 = vrot.lane.b32.xlu0 %v1305, 64
      %v1328 = vpop.permute.xlu0 %1327
      %1329 = vrot.lane.b32.xlu0 %v1306, 64
      %v1330 = vpop.permute.xlu0 %1329
      %1331 = vrot.lane.b32.xlu0 %v1307, 64
      %v1332 = vpop.permute.xlu0 %1331
      %1333 = vrot.lane.b32.xlu0 %v1308, 64
      %v1334 = vpop.permute.xlu0 %1333
      %1335 = vrot.lane.b32.xlu0 %v1309, 64
      %v1336 = vpop.permute.xlu0 %1335
      %1337 = vrot.lane.b32.xlu0 %v1310, 64
      %v1338 = vpop.permute.xlu0 %1337
      %1339 = vrot.lane.b32.xlu0 %v1311, 64
      %v1340 = vpop.permute.xlu0 %1339
      %1341 = vrot.lane.b32.xlu0 %v1312, 64
      %v1342 = vpop.permute.xlu0 %1341
      %1343 = vrot.lane.b32.xlu0 %v1313, 64
      %v1344 = vpop.permute.xlu0 %1343
      %1345 = vrot.lane.b32.xlu0 %v1314, 64
      %v1346 = vpop.permute.xlu0 %1345
      %v1363 = vunpack.c.l.b16 %v323
      %v1364 = vunpack.c.l.b16 %v326
      %v1365 = vunpack.c.l.b16 %v329
      %v1366 = vunpack.c.l.b16 %v332
      %v1367 = vunpack.c.l.b16 %v335
      %v1368 = vunpack.c.l.b16 %v338
      %v1369 = vunpack.c.l.b16 %v341
      %v1370 = vunpack.c.l.b16 %v344
      %v1371 = vunpack.c.l.b16 %v347
      %v1372 = vunpack.c.l.b16 %v350
      %v1373 = vunpack.c.l.b16 %v353
      %v1374 = vunpack.c.l.b16 %v356
      %v1375 = vunpack.c.l.b16 %v359
      %v1376 = vunpack.c.l.b16 %v362
      %v1377 = vunpack.c.l.b16 %v365
      %v1378 = vunpack.c.l.b16 %v368
      %v1379 = vpack.c.b16 %v1363, %v1363
      %v1380 = vpack.c.b16 %v1364, %v1364
      %v1381 = vpack.c.b16 %v1365, %v1365
      %v1382 = vpack.c.b16 %v1366, %v1366
      %v1383 = vpack.c.b16 %v1367, %v1367
      %v1384 = vpack.c.b16 %v1368, %v1368
      %v1385 = vpack.c.b16 %v1369, %v1369
      %v1386 = vpack.c.b16 %v1370, %v1370
      %v1387 = vpack.c.b16 %v1371, %v1371
      %v1388 = vpack.c.b16 %v1372, %v1372
      %v1389 = vpack.c.b16 %v1373, %v1373
      %v1390 = vpack.c.b16 %v1374, %v1374
      %v1391 = vpack.c.b16 %v1375, %v1375
      %v1392 = vpack.c.b16 %v1376, %v1376
      %v1393 = vpack.c.b16 %v1377, %v1377
      %v1394 = vpack.c.b16 %v1378, %v1378
      %v1396 = vshrl.u32 %v1299, 16
      %v1398 = vshll.u32 %v1299, 16
      %v1400 = vrot.slane %v1398, 1
      %v1401 = vor.u32 %v1396, %v1400
      %v1403 = vshll.u32 %v1379, 16
      %v1405 = vrot.slane %v1403, 1
      %v1406 = vsel %vm497, %v1401, %v1405
      %v1408 = vshrl.u32 %v1300, 16
      %v1410 = vshll.u32 %v1300, 16
      %v1412 = vrot.slane %v1410, 1
      %v1413 = vor.u32 %v1408, %v1412
      %v1415 = vshll.u32 %v1380, 16
      %v1417 = vrot.slane %v1415, 1
      %v1418 = vsel %vm497, %v1413, %v1417
      %v1420 = vshrl.u32 %v1301, 16
      %v1422 = vshll.u32 %v1301, 16
      %v1424 = vrot.slane %v1422, 1
      %v1425 = vor.u32 %v1420, %v1424
      %v1427 = vshll.u32 %v1381, 16
      %v1429 = vrot.slane %v1427, 1
      %v1430 = vsel %vm497, %v1425, %v1429
      %v1432 = vshrl.u32 %v1302, 16
      %v1434 = vshll.u32 %v1302, 16
      %v1436 = vrot.slane %v1434, 1
      %v1437 = vor.u32 %v1432, %v1436
      %v1439 = vshll.u32 %v1382, 16
      %v1441 = vrot.slane %v1439, 1
      %v1442 = vsel %vm497, %v1437, %v1441
      %v1444 = vshrl.u32 %v1303, 16
      %v1446 = vshll.u32 %v1303, 16
      %v1448 = vrot.slane %v1446, 1
      %v1449 = vor.u32 %v1444, %v1448
      %v1451 = vshll.u32 %v1383, 16
      %v1453 = vrot.slane %v1451, 1
      %v1454 = vsel %vm497, %v1449, %v1453
      %v1456 = vshrl.u32 %v1304, 16
      %v1458 = vshll.u32 %v1304, 16
      %v1460 = vrot.slane %v1458, 1
      %v1461 = vor.u32 %v1456, %v1460
      %v1463 = vshll.u32 %v1384, 16
      %v1465 = vrot.slane %v1463, 1
      %v1466 = vsel %vm497, %v1461, %v1465
      %v1468 = vshrl.u32 %v1305, 16
      %v1470 = vshll.u32 %v1305, 16
      %v1472 = vrot.slane %v1470, 1
      %v1473 = vor.u32 %v1468, %v1472
      %v1475 = vshll.u32 %v1385, 16
      %v1477 = vrot.slane %v1475, 1
      %v1478 = vsel %vm497, %v1473, %v1477
      %v1480 = vshrl.u32 %v1306, 16
      %v1482 = vshll.u32 %v1306, 16
      %v1484 = vrot.slane %v1482, 1
      %v1485 = vor.u32 %v1480, %v1484
      %v1487 = vshll.u32 %v1386, 16
      %v1489 = vrot.slane %v1487, 1
      %v1490 = vsel %vm497, %v1485, %v1489
      %v1492 = vshrl.u32 %v1307, 16
      %v1494 = vshll.u32 %v1307, 16
      %v1496 = vrot.slane %v1494, 1
      %v1497 = vor.u32 %v1492, %v1496
      %v1499 = vshll.u32 %v1387, 16
      %v1501 = vrot.slane %v1499, 1
      %v1502 = vsel %vm497, %v1497, %v1501
      %v1504 = vshrl.u32 %v1308, 16
      %v1506 = vshll.u32 %v1308, 16
      %v1508 = vrot.slane %v1506, 1
      %v1509 = vor.u32 %v1504, %v1508
      %v1511 = vshll.u32 %v1388, 16
      %v1513 = vrot.slane %v1511, 1
      %v1514 = vsel %vm497, %v1509, %v1513
      %v1516 = vshrl.u32 %v1309, 16
      %v1518 = vshll.u32 %v1309, 16
      %v1520 = vrot.slane %v1518, 1
      %v1521 = vor.u32 %v1516, %v1520
      %v1523 = vshll.u32 %v1389, 16
      %v1525 = vrot.slane %v1523, 1
      %v1526 = vsel %vm497, %v1521, %v1525
      %v1528 = vshrl.u32 %v1310, 16
      %v1530 = vshll.u32 %v1310, 16
      %v1532 = vrot.slane %v1530, 1
      %v1533 = vor.u32 %v1528, %v1532
      %v1535 = vshll.u32 %v1390, 16
      %v1537 = vrot.slane %v1535, 1
      %v1538 = vsel %vm497, %v1533, %v1537
      %v1540 = vshrl.u32 %v1311, 16
      %v1542 = vshll.u32 %v1311, 16
      %v1544 = vrot.slane %v1542, 1
      %v1545 = vor.u32 %v1540, %v1544
      %v1547 = vshll.u32 %v1391, 16
      %v1549 = vrot.slane %v1547, 1
      %v1550 = vsel %vm497, %v1545, %v1549
      %v1552 = vshrl.u32 %v1312, 16
      %v1554 = vshll.u32 %v1312, 16
      %v1556 = vrot.slane %v1554, 1
      %v1557 = vor.u32 %v1552, %v1556
      %v1559 = vshll.u32 %v1392, 16
      %v1561 = vrot.slane %v1559, 1
      %v1562 = vsel %vm497, %v1557, %v1561
      %v1564 = vshrl.u32 %v1313, 16
      %v1566 = vshll.u32 %v1313, 16
      %v1568 = vrot.slane %v1566, 1
      %v1569 = vor.u32 %v1564, %v1568
      %v1571 = vshll.u32 %v1393, 16
      %v1573 = vrot.slane %v1571, 1
      %v1574 = vsel %vm497, %v1569, %v1573
      %v1576 = vshrl.u32 %v1314, 16
      %v1578 = vshll.u32 %v1314, 16
      %v1580 = vrot.slane %v1578, 1
      %v1581 = vor.u32 %v1576, %v1580
      %v1583 = vshll.u32 %v1394, 16
      %v1585 = vrot.slane %v1583, 1
      %v1586 = vsel %vm497, %v1581, %v1585
      %1587 = vrot.lane.b32.xlu0 %v1406, 96
      %v1588 = vpop.permute.xlu0 %1587
      %1589 = vrot.lane.b32.xlu0 %v1418, 96
      %v1590 = vpop.permute.xlu0 %1589
      %1591 = vrot.lane.b32.xlu0 %v1430, 96
      %v1592 = vpop.permute.xlu0 %1591
      %1593 = vrot.lane.b32.xlu0 %v1442, 96
      %v1594 = vpop.permute.xlu0 %1593
      %1595 = vrot.lane.b32.xlu0 %v1454, 96
      %v1596 = vpop.permute.xlu0 %1595
      %1597 = vrot.lane.b32.xlu0 %v1466, 96
      %v1598 = vpop.permute.xlu0 %1597
      %1599 = vrot.lane.b32.xlu0 %v1478, 96
      %v1600 = vpop.permute.xlu0 %1599
      %1601 = vrot.lane.b32.xlu0 %v1490, 96
      %v1602 = vpop.permute.xlu0 %1601
      %1603 = vrot.lane.b32.xlu0 %v1502, 96
      %v1604 = vpop.permute.xlu0 %1603
      %1605 = vrot.lane.b32.xlu0 %v1514, 96
      %v1606 = vpop.permute.xlu0 %1605
      %1607 = vrot.lane.b32.xlu0 %v1526, 96
      %v1608 = vpop.permute.xlu0 %1607
      %1609 = vrot.lane.b32.xlu0 %v1538, 96
      %v1610 = vpop.permute.xlu0 %1609
      %1611 = vrot.lane.b32.xlu0 %v1550, 96
      %v1612 = vpop.permute.xlu0 %1611
      %1613 = vrot.lane.b32.xlu0 %v1562, 96
      %v1614 = vpop.permute.xlu0 %1613
      %1615 = vrot.lane.b32.xlu0 %v1574, 96
      %v1616 = vpop.permute.xlu0 %1615
      %1617 = vrot.lane.b32.xlu0 %v1586, 96
      %v1618 = vpop.permute.xlu0 %1617
      %v1619 = vrot.slane %v1299, 1
      %v1620 = vrot.slane %v1379, 1
      %v1621 = vsel %vm722, %v1619, %v1620
      %v1622 = vrot.slane %v1300, 1
      %v1623 = vrot.slane %v1380, 1
      %v1624 = vsel %vm722, %v1622, %v1623
      %v1625 = vrot.slane %v1301, 1
      %v1626 = vrot.slane %v1381, 1
      %v1627 = vsel %vm722, %v1625, %v1626
      %v1628 = vrot.slane %v1302, 1
      %v1629 = vrot.slane %v1382, 1
      %v1630 = vsel %vm722, %v1628, %v1629
      %v1631 = vrot.slane %v1303, 1
      %v1632 = vrot.slane %v1383, 1
      %v1633 = vsel %vm722, %v1631, %v1632
      %v1634 = vrot.slane %v1304, 1
      %v1635 = vrot.slane %v1384, 1
      %v1636 = vsel %vm722, %v1634, %v1635
      %v1637 = vrot.slane %v1305, 1
      %v1638 = vrot.slane %v1385, 1
      %v1639 = vsel %vm722, %v1637, %v1638
      %v1640 = vrot.slane %v1306, 1
      %v1641 = vrot.slane %v1386, 1
      %v1642 = vsel %vm722, %v1640, %v1641
      %v1643 = vrot.slane %v1307, 1
      %v1644 = vrot.slane %v1387, 1
      %v1645 = vsel %vm722, %v1643, %v1644
      %v1646 = vrot.slane %v1308, 1
      %v1647 = vrot.slane %v1388, 1
      %v1648 = vsel %vm722, %v1646, %v1647
      %v1649 = vrot.slane %v1309, 1
      %v1650 = vrot.slane %v1389, 1
      %v1651 = vsel %vm722, %v1649, %v1650
      %v1652 = vrot.slane %v1310, 1
      %v1653 = vrot.slane %v1390, 1
      %v1654 = vsel %vm722, %v1652, %v1653
      %v1655 = vrot.slane %v1311, 1
      %v1656 = vrot.slane %v1391, 1
      %v1657 = vsel %vm722, %v1655, %v1656
      %v1658 = vrot.slane %v1312, 1
      %v1659 = vrot.slane %v1392, 1
      %v1660 = vsel %vm722, %v1658, %v1659
      %v1661 = vrot.slane %v1313, 1
      %v1662 = vrot.slane %v1393, 1
      %v1663 = vsel %vm722, %v1661, %v1662
      %v1664 = vrot.slane %v1314, 1
      %v1665 = vrot.slane %v1394, 1
      %v1666 = vsel %vm722, %v1664, %v1665
      %vm1667 = vcmask 261120
      %v1669 = vsel %vm1667, %v433, %v691
      %v1671 = vsel %vm1667, %v434, %v693
      %v1673 = vsel %vm1667, %v435, %v695
      %v1675 = vsel %vm1667, %v436, %v697
      %v1677 = vsel %vm1667, %v437, %v699
      %v1679 = vsel %vm1667, %v438, %v701
      %v1681 = vsel %vm1667, %v439, %v703
      %v1683 = vsel %vm1667, %v440, %v705
      %v1685 = vsel %vm1667, %v441, %v707
      %v1687 = vsel %vm1667, %v442, %v709
      %v1689 = vsel %vm1667, %v443, %v711
      %v1691 = vsel %vm1667, %v444, %v713
      %v1693 = vsel %vm1667, %v445, %v715
      %v1695 = vsel %vm1667, %v446, %v717
      %v1697 = vsel %vm1667, %v447, %v719
      %v1699 = vsel %vm1667, %v448, %v721
      %vm1700 = vcmask 523264
      %v1702 = vsel %vm1700, %v1669, %v772
      %v1704 = vsel %vm1700, %v1671, %v774
      %v1706 = vsel %vm1700, %v1673, %v776
      %v1708 = vsel %vm1700, %v1675, %v778
      %v1710 = vsel %vm1700, %v1677, %v780
      %v1712 = vsel %vm1700, %v1679, %v782
      %v1714 = vsel %vm1700, %v1681, %v784
      %v1716 = vsel %vm1700, %v1683, %v786
      %v1718 = vsel %vm1700, %v1685, %v788
      %v1720 = vsel %vm1700, %v1687, %v790
      %v1722 = vsel %vm1700, %v1689, %v792
      %v1724 = vsel %vm1700, %v1691, %v794
      %v1726 = vsel %vm1700, %v1693, %v796
      %v1728 = vsel %vm1700, %v1695, %v798
      %v1730 = vsel %vm1700, %v1697, %v800
      %v1732 = vsel %vm1700, %v1699, %v802
      %vm1733 = vcmask 785408
      %v1735 = vsel %vm1733, %v1702, %v884
      %v1738 = vsel %vm1733, %v1704, %v886
      %v1741 = vsel %vm1733, %v1706, %v888
      %v1744 = vsel %vm1733, %v1708, %v890
      %v1747 = vsel %vm1733, %v1710, %v892
      %v1750 = vsel %vm1733, %v1712, %v894
      %v1753 = vsel %vm1733, %v1714, %v896
      %v1756 = vsel %vm1733, %v1716, %v898
      %v1759 = vsel %vm1733, %v1718, %v900
      %v1762 = vsel %vm1733, %v1720, %v902
      %v1765 = vsel %vm1733, %v1722, %v904
      %v1768 = vsel %vm1733, %v1724, %v906
      %v1771 = vsel %vm1733, %v1726, %v908
      %v1774 = vsel %vm1733, %v1728, %v910
      %v1777 = vsel %vm1733, %v1730, %v912
      %v1780 = vsel %vm1733, %v1732, %v914
      %v1784 = vsel %vm1667, %v974, %v1204
      %v1787 = vsel %vm1667, %v986, %v1206
      %v1790 = vsel %vm1667, %v998, %v1208
      %v1793 = vsel %vm1667, %v1010, %v1210
      %v1796 = vsel %vm1667, %v1022, %v1212
      %v1799 = vsel %vm1667, %v1034, %v1214
      %v1802 = vsel %vm1667, %v1046, %v1216
      %v1805 = vsel %vm1667, %v1058, %v1218
      %v1808 = vsel %vm1667, %v1070, %v1220
      %v1811 = vsel %vm1667, %v1082, %v1222
      %v1814 = vsel %vm1667, %v1094, %v1224
      %v1817 = vsel %vm1667, %v1106, %v1226
      %v1820 = vsel %vm1667, %v1118, %v1228
      %v1823 = vsel %vm1667, %v1130, %v1230
      %v1826 = vsel %vm1667, %v1142, %v1232
      %v1829 = vsel %vm1667, %v1154, %v1234
      %v1831 = vsel %vm1700, %v1784, %v1316
      %v1833 = vsel %vm1700, %v1787, %v1318
      %v1835 = vsel %vm1700, %v1790, %v1320
      %v1837 = vsel %vm1700, %v1793, %v1322
      %v1839 = vsel %vm1700, %v1796, %v1324
      %v1841 = vsel %vm1700, %v1799, %v1326
      %v1843 = vsel %vm1700, %v1802, %v1328
      %v1845 = vsel %vm1700, %v1805, %v1330
      %v1847 = vsel %vm1700, %v1808, %v1332
      %v1849 = vsel %vm1700, %v1811, %v1334
      %v1851 = vsel %vm1700, %v1814, %v1336
      %v1853 = vsel %vm1700, %v1817, %v1338
      %v1855 = vsel %vm1700, %v1820, %v1340
      %v1857 = vsel %vm1700, %v1823, %v1342
      %v1859 = vsel %vm1700, %v1826, %v1344
      %v1861 = vsel %vm1700, %v1829, %v1346
      %v1863 = vsel %vm1733, %v1831, %v1588
      %v1866 = vsel %vm1733, %v1833, %v1590
      %v1869 = vsel %vm1733, %v1835, %v1592
      %v1872 = vsel %vm1733, %v1837, %v1594
      %v1875 = vsel %vm1733, %v1839, %v1596
      %v1878 = vsel %vm1733, %v1841, %v1598
      %v1881 = vsel %vm1733, %v1843, %v1600
      %v1884 = vsel %vm1733, %v1845, %v1602
      %v1887 = vsel %vm1733, %v1847, %v1604
      %v1890 = vsel %vm1733, %v1849, %v1606
      %v1893 = vsel %vm1733, %v1851, %v1608
      %v1896 = vsel %vm1733, %v1853, %v1610
      %v1899 = vsel %vm1733, %v1855, %v1612
      %v1902 = vsel %vm1733, %v1857, %v1614
      %v1905 = vsel %vm1733, %v1859, %v1616
      %v1908 = vsel %vm1733, %v1861, %v1618
      %v1910 = vld [vmem:[%s1] sm:$0xf]
      %v1911 = vld [vmem:[%s1 + $0x4] sm:$0xf]
      %v1912 = vld [vmem:[%s1 + $0x8] sm:$0xf]
      %v1913 = vld [vmem:[%s1 + $0xc] sm:$0xf]
      %v1914 = vld [vmem:[%s1 + $0x10] sm:$0xf]
      %v1915 = vld [vmem:[%s1 + $0x14] sm:$0xf]
      %v1916 = vld [vmem:[%s1 + $0x18] sm:$0xf]
      %v1917 = vld [vmem:[%s1 + $0x1c] sm:$0xf]
      %v1918 = vld [vmem:[%s1 + $0x20] sm:$0xf]
      %v1919 = vld [vmem:[%s1 + $0x24] sm:$0xf]
      %v1920 = vld [vmem:[%s1 + $0x28] sm:$0xf]
      %v1921 = vld [vmem:[%s1 + $0x2c] sm:$0xf]
      %v1922 = vld [vmem:[%s1 + $0x30] sm:$0xf]
      %v1923 = vld [vmem:[%s1 + $0x34] sm:$0xf]
      %v1924 = vld [vmem:[%s1 + $0x38] sm:$0xf]
      %v1925 = vld [vmem:[%s1 + $0x3c] sm:$0xf]
      %v1926 = vld [vmem:[%s1 + $0x40] sm:$0xf]
      %v1927 = vld [vmem:[%s1 + $0x44] sm:$0xf]
      %v1928 = vld [vmem:[%s1 + $0x48] sm:$0xf]
      %v1929 = vld [vmem:[%s1 + $0x4c] sm:$0xf]
      %v1930 = vld [vmem:[%s1 + $0x50] sm:$0xf]
      %v1931 = vld [vmem:[%s1 + $0x54] sm:$0xf]
      %v1932 = vld [vmem:[%s1 + $0x58] sm:$0xf]
      %v1933 = vld [vmem:[%s1 + $0x5c] sm:$0xf]
      %v1934 = vld [vmem:[%s1 + $0x60] sm:$0xf]
      %v1935 = vld [vmem:[%s1 + $0x64] sm:$0xf]
      %v1936 = vld [vmem:[%s1 + $0x68] sm:$0xf]
      %v1937 = vld [vmem:[%s1 + $0x6c] sm:$0xf]
      %v1938 = vld [vmem:[%s1 + $0x70] sm:$0xf]
      %v1939 = vld [vmem:[%s1 + $0x74] sm:$0xf]
      %v1940 = vld [vmem:[%s1 + $0x78] sm:$0xf]
      %v1941 = vld [vmem:[%s1 + $0x7c] sm:$0xf]
      %v1942 = vld [vmem:[%s1 + $0x80] sm:$0xf]
      %v1943 = vld [vmem:[%s1 + $0x84] sm:$0xf]
      %v1944 = vld [vmem:[%s1 + $0x88] sm:$0xf]
      %v1945 = vld [vmem:[%s1 + $0x8c] sm:$0xf]
      %v1982 = vunpack.c.l.b16 %v1910
      %v1983 = vunpack.c.l.b16 %v1911
      %v1984 = vunpack.c.l.b16 %v1912
      %v1985 = vunpack.c.l.b16 %v1913
      %v1986 = vunpack.c.l.b16 %v1914
      %v1987 = vunpack.c.l.b16 %v1915
      %v1988 = vunpack.c.l.b16 %v1916
      %v1989 = vunpack.c.l.b16 %v1917
      %v1990 = vunpack.c.l.b16 %v1918
      %v1991 = vunpack.c.l.b16 %v1919
      %v1992 = vunpack.c.l.b16 %v1920
      %v1993 = vunpack.c.l.b16 %v1921
      %v1994 = vunpack.c.l.b16 %v1922
      %v1995 = vunpack.c.l.b16 %v1923
      %v1996 = vunpack.c.l.b16 %v1924
      %v1997 = vunpack.c.l.b16 %v1925
      %v1998 = vunpack.c.l.b16 %v1926
      %v1999 = vunpack.c.l.b16 %v1927
      %v2000 = vunpack.c.l.b16 %v1928
      %v2001 = vunpack.c.l.b16 %v1929
      %v2002 = vunpack.c.l.b16 %v1930
      %v2003 = vunpack.c.l.b16 %v1931
      %v2004 = vunpack.c.l.b16 %v1932
      %v2005 = vunpack.c.l.b16 %v1933
      %v2006 = vunpack.c.l.b16 %v1934
      %v2007 = vunpack.c.l.b16 %v1935
      %v2008 = vunpack.c.l.b16 %v1936
      %v2009 = vunpack.c.l.b16 %v1937
      %v2010 = vunpack.c.l.b16 %v1938
      %v2011 = vunpack.c.l.b16 %v1939
      %v2012 = vunpack.c.l.b16 %v1940
      %v2013 = vunpack.c.l.b16 %v1941
      %v2014 = vunpack.c.l.b16 %v1942
      %v2015 = vunpack.c.l.b16 %v1943
      %v2016 = vunpack.c.l.b16 %v1944
      %v2017 = vunpack.c.l.b16 %v1945
      %v2018 = vpack.c.b16 %v1983, %v1982
      %v2019 = vpack.c.b16 %v1985, %v1984
      %v2020 = vpack.c.b16 %v1987, %v1986
      %v2021 = vpack.c.b16 %v1989, %v1988
      %v2022 = vpack.c.b16 %v1991, %v1990
      %v2023 = vpack.c.b16 %v1993, %v1992
      %v2024 = vpack.c.b16 %v1995, %v1994
      %v2025 = vpack.c.b16 %v1997, %v1996
      %v2026 = vpack.c.b16 %v1999, %v1998
      %v2027 = vpack.c.b16 %v2001, %v2000
      %v2028 = vpack.c.b16 %v2003, %v2002
      %v2029 = vpack.c.b16 %v2005, %v2004
      %v2030 = vpack.c.b16 %v2007, %v2006
      %v2031 = vpack.c.b16 %v2009, %v2008
      %v2032 = vpack.c.b16 %v2011, %v2010
      %v2033 = vpack.c.b16 %v2013, %v2012
      %v2034 = vpack.c.b16 %v2015, %v2014
      %v2035 = vpack.c.b16 %v2017, %v2016
      %v2055 = vsel %vm1667, %v1621, 0
      %v2058 = vsel %vm1667, %v1624, 0
      %v2061 = vsel %vm1667, %v1627, 0
      %v2064 = vsel %vm1667, %v1630, 0
      %v2067 = vsel %vm1667, %v1633, 0
      %v2070 = vsel %vm1667, %v1636, 0
      %v2073 = vsel %vm1667, %v1639, 0
      %v2076 = vsel %vm1667, %v1642, 0
      %v2079 = vsel %vm1667, %v1645, 0
      %v2082 = vsel %vm1667, %v1648, 0
      %v2085 = vsel %vm1667, %v1651, 0
      %v2088 = vsel %vm1667, %v1654, 0
      %v2091 = vsel %vm1667, %v1657, 0
      %v2094 = vsel %vm1667, %v1660, 0
      %v2097 = vsel %vm1667, %v1663, 0
      %v2100 = vsel %vm1667, %v1666, 0
      %2102 = vmatpush.bf16.msra.mxu0 %v2025
      %2103 = vmatpush.bf16.msra.mxu0 %v2024
      %2104 = vmatpush.bf16.msra.mxu0 %v2023
      %2105 = vmatpush.bf16.msra.mxu0 %v2022
      %2106 = vmatpush.bf16.msra.mxu0 %v2021
      %2107 = vmatpush.bf16.msra.mxu0 %v2020
      %2108 = vmatpush.bf16.msra.mxu0 %v2019
      %2109 = vmatpush.bf16.msra.mxu0 %v2018
      %2110 = vmatmul.bf16.gmra.mxu0 %v1735
      %v2111 = vpop.f32.mrf.mxu0
      %v2112 = vadd.f32 0.0, %v2111
      %v2113 = vpop.f32.mrf.mxu0
      %v2114 = vadd.f32 0.0, %v2113
      %2115 = vmatmul.bf16.gmra.mxu0 %v1738
      %v2116 = vpop.f32.mrf.mxu0
      %v2117 = vadd.f32 0.0, %v2116
      %v2118 = vpop.f32.mrf.mxu0
      %v2119 = vadd.f32 0.0, %v2118
      %2120 = vmatmul.bf16.gmra.mxu0 %v1741
      %v2121 = vpop.f32.mrf.mxu0
      %v2122 = vadd.f32 0.0, %v2121
      %v2123 = vpop.f32.mrf.mxu0
      %v2124 = vadd.f32 0.0, %v2123
      %2125 = vmatmul.bf16.gmra.mxu0 %v1744
      %v2126 = vpop.f32.mrf.mxu0
      %v2127 = vadd.f32 0.0, %v2126
      %v2128 = vpop.f32.mrf.mxu0
      %v2129 = vadd.f32 0.0, %v2128
      %2130 = vmatmul.bf16.gmra.mxu0 %v1747
      %v2131 = vpop.f32.mrf.mxu0
      %v2132 = vadd.f32 0.0, %v2131
      %v2133 = vpop.f32.mrf.mxu0
      %v2134 = vadd.f32 0.0, %v2133
      %2135 = vmatmul.bf16.gmra.mxu0 %v1750
      %v2136 = vpop.f32.mrf.mxu0
      %v2137 = vadd.f32 0.0, %v2136
      %v2138 = vpop.f32.mrf.mxu0
      %v2139 = vadd.f32 0.0, %v2138
      %2140 = vmatmul.bf16.gmra.mxu0 %v1753
      %v2141 = vpop.f32.mrf.mxu0
      %v2142 = vadd.f32 0.0, %v2141
      %v2143 = vpop.f32.mrf.mxu0
      %v2144 = vadd.f32 0.0, %v2143
      %2145 = vmatmul.bf16.gmra.mxu0 %v1756
      %v2146 = vpop.f32.mrf.mxu0
      %v2147 = vadd.f32 0.0, %v2146
      %v2148 = vpop.f32.mrf.mxu0
      %v2149 = vadd.f32 0.0, %v2148
      %2150 = vmatmul.bf16.gmra.mxu0 %v1759
      %v2151 = vpop.f32.mrf.mxu0
      %v2152 = vadd.f32 0.0, %v2151
      %v2153 = vpop.f32.mrf.mxu0
      %v2154 = vadd.f32 0.0, %v2153
      %2155 = vmatmul.bf16.gmra.mxu0 %v1762
      %v2156 = vpop.f32.mrf.mxu0
      %v2157 = vadd.f32 0.0, %v2156
      %v2158 = vpop.f32.mrf.mxu0
      %v2159 = vadd.f32 0.0, %v2158
      %2160 = vmatmul.bf16.gmra.mxu0 %v1765
      %v2161 = vpop.f32.mrf.mxu0
      %v2162 = vadd.f32 0.0, %v2161
      %v2163 = vpop.f32.mrf.mxu0
      %v2164 = vadd.f32 0.0, %v2163
      %2165 = vmatmul.bf16.gmra.mxu0 %v1768
      %v2166 = vpop.f32.mrf.mxu0
      %v2167 = vadd.f32 0.0, %v2166
      %v2168 = vpop.f32.mrf.mxu0
      %v2169 = vadd.f32 0.0, %v2168
      %2170 = vmatmul.bf16.gmra.mxu0 %v1771
      %v2171 = vpop.f32.mrf.mxu0
      %v2172 = vadd.f32 0.0, %v2171
      %v2173 = vpop.f32.mrf.mxu0
      %v2174 = vadd.f32 0.0, %v2173
      %2175 = vmatmul.bf16.gmra.mxu0 %v1774
      %v2176 = vpop.f32.mrf.mxu0
      %v2177 = vadd.f32 0.0, %v2176
      %v2178 = vpop.f32.mrf.mxu0
      %v2179 = vadd.f32 0.0, %v2178
      %2180 = vmatmul.bf16.gmra.mxu0 %v1777
      %v2181 = vpop.f32.mrf.mxu0
      %v2182 = vadd.f32 0.0, %v2181
      %v2183 = vpop.f32.mrf.mxu0
      %v2184 = vadd.f32 0.0, %v2183
      %2185 = vmatmul.bf16.gmra.mxu0 %v1780
      %v2186 = vpop.f32.mrf.mxu0
      %v2187 = vadd.f32 0.0, %v2186
      %v2188 = vpop.f32.mrf.mxu0
      %v2189 = vadd.f32 0.0, %v2188
      %2190 = vdwg.mxu0
      %2191 = vmatpush.bf16.msra.mxu0 %v2033
      %2192 = vmatpush.bf16.msra.mxu0 %v2032
      %2193 = vmatpush.bf16.msra.mxu0 %v2031
      %2194 = vmatpush.bf16.msra.mxu0 %v2030
      %2195 = vmatpush.bf16.msra.mxu0 %v2029
      %2196 = vmatpush.bf16.msra.mxu0 %v2028
      %2197 = vmatpush.bf16.msra.mxu0 %v2027
      %2198 = vmatpush.bf16.msra.mxu0 %v2026
      %2199 = vmatmul.bf16.gmra.mxu0 %v1863
      %v2200 = vpop.f32.mrf.mxu0
      %v2201 = vadd.f32 %v2112, %v2200
      %v2202 = vpop.f32.mrf.mxu0
      %v2203 = vadd.f32 %v2114, %v2202
      %2204 = vmatmul.bf16.gmra.mxu0 %v1866
      %v2205 = vpop.f32.mrf.mxu0
      %v2206 = vadd.f32 %v2117, %v2205
      %v2207 = vpop.f32.mrf.mxu0
      %v2208 = vadd.f32 %v2119, %v2207
      %2209 = vmatmul.bf16.gmra.mxu0 %v1869
      %v2210 = vpop.f32.mrf.mxu0
      %v2211 = vadd.f32 %v2122, %v2210
      %v2212 = vpop.f32.mrf.mxu0
      %v2213 = vadd.f32 %v2124, %v2212
      %2214 = vmatmul.bf16.gmra.mxu0 %v1872
      %v2215 = vpop.f32.mrf.mxu0
      %v2216 = vadd.f32 %v2127, %v2215
      %v2217 = vpop.f32.mrf.mxu0
      %v2218 = vadd.f32 %v2129, %v2217
      %2219 = vmatmul.bf16.gmra.mxu0 %v1875
      %v2220 = vpop.f32.mrf.mxu0
      %v2221 = vadd.f32 %v2132, %v2220
      %v2222 = vpop.f32.mrf.mxu0
      %v2223 = vadd.f32 %v2134, %v2222
      %2224 = vmatmul.bf16.gmra.mxu0 %v1878
      %v2225 = vpop.f32.mrf.mxu0
      %v2226 = vadd.f32 %v2137, %v2225
      %v2227 = vpop.f32.mrf.mxu0
      %v2228 = vadd.f32 %v2139, %v2227
      %2229 = vmatmul.bf16.gmra.mxu0 %v1881
      %v2230 = vpop.f32.mrf.mxu0
      %v2231 = vadd.f32 %v2142, %v2230
      %v2232 = vpop.f32.mrf.mxu0
      %v2233 = vadd.f32 %v2144, %v2232
      %2234 = vmatmul.bf16.gmra.mxu0 %v1884
      %v2235 = vpop.f32.mrf.mxu0
      %v2236 = vadd.f32 %v2147, %v2235
      %v2237 = vpop.f32.mrf.mxu0
      %v2238 = vadd.f32 %v2149, %v2237
      %2239 = vmatmul.bf16.gmra.mxu0 %v1887
      %v2240 = vpop.f32.mrf.mxu0
      %v2241 = vadd.f32 %v2152, %v2240
      %v2242 = vpop.f32.mrf.mxu0
      %v2243 = vadd.f32 %v2154, %v2242
      %2244 = vmatmul.bf16.gmra.mxu0 %v1890
      %v2245 = vpop.f32.mrf.mxu0
      %v2246 = vadd.f32 %v2157, %v2245
      %v2247 = vpop.f32.mrf.mxu0
      %v2248 = vadd.f32 %v2159, %v2247
      %2249 = vmatmul.bf16.gmra.mxu0 %v1893
      %v2250 = vpop.f32.mrf.mxu0
      %v2251 = vadd.f32 %v2162, %v2250
      %v2252 = vpop.f32.mrf.mxu0
      %v2253 = vadd.f32 %v2164, %v2252
      %2254 = vmatmul.bf16.gmra.mxu0 %v1896
      %v2255 = vpop.f32.mrf.mxu0
      %v2256 = vadd.f32 %v2167, %v2255
      %v2257 = vpop.f32.mrf.mxu0
      %v2258 = vadd.f32 %v2169, %v2257
      %2259 = vmatmul.bf16.gmra.mxu0 %v1899
      %v2260 = vpop.f32.mrf.mxu0
      %v2261 = vadd.f32 %v2172, %v2260
      %v2262 = vpop.f32.mrf.mxu0
      %v2263 = vadd.f32 %v2174, %v2262
      %2264 = vmatmul.bf16.gmra.mxu0 %v1902
      %v2265 = vpop.f32.mrf.mxu0
      %v2266 = vadd.f32 %v2177, %v2265
      %v2267 = vpop.f32.mrf.mxu0
      %v2268 = vadd.f32 %v2179, %v2267
      %2269 = vmatmul.bf16.gmra.mxu0 %v1905
      %v2270 = vpop.f32.mrf.mxu0
      %v2271 = vadd.f32 %v2182, %v2270
      %v2272 = vpop.f32.mrf.mxu0
      %v2273 = vadd.f32 %v2184, %v2272
      %2274 = vmatmul.bf16.gmra.mxu0 %v1908
      %v2275 = vpop.f32.mrf.mxu0
      %v2276 = vadd.f32 %v2187, %v2275
      %v2277 = vpop.f32.mrf.mxu0
      %v2278 = vadd.f32 %v2189, %v2277
      %2279 = vdwg.mxu0
      %2280 = vmatpush.bf16.msra.mxu0 0
      %2281 = vmatpush.bf16.msra.mxu0 0
      %2282 = vmatpush.bf16.msra.mxu0 0
      %2283 = vmatpush.bf16.msra.mxu0 0
      %2284 = vmatpush.bf16.msra.mxu0 0
      %2285 = vmatpush.bf16.msra.mxu0 0
      %2286 = vmatpush.bf16.msra.mxu0 %v2035
      %2287 = vmatpush.bf16.msra.mxu0 %v2034
      %2288 = vmatmul.bf16.gmra.mxu0 %v2055
      %v2289 = vpop.f32.mrf.mxu0
      %v2290 = vadd.f32 %v2201, %v2289
      %v2291 = vpop.f32.mrf.mxu0
      %v2292 = vadd.f32 %v2203, %v2291
      %2293 = vmatmul.bf16.gmra.mxu0 %v2058
      %v2294 = vpop.f32.mrf.mxu0
      %v2295 = vadd.f32 %v2206, %v2294
      %v2296 = vpop.f32.mrf.mxu0
      %v2297 = vadd.f32 %v2208, %v2296
      %2298 = vmatmul.bf16.gmra.mxu0 %v2061
      %v2299 = vpop.f32.mrf.mxu0
      %v2300 = vadd.f32 %v2211, %v2299
      %v2301 = vpop.f32.mrf.mxu0
      %v2302 = vadd.f32 %v2213, %v2301
      %2303 = vmatmul.bf16.gmra.mxu0 %v2064
      %v2304 = vpop.f32.mrf.mxu0
      %v2305 = vadd.f32 %v2216, %v2304
      %v2306 = vpop.f32.mrf.mxu0
      %v2307 = vadd.f32 %v2218, %v2306
      %2308 = vmatmul.bf16.gmra.mxu0 %v2067
      %v2309 = vpop.f32.mrf.mxu0
      %v2310 = vadd.f32 %v2221, %v2309
      %v2311 = vpop.f32.mrf.mxu0
      %v2312 = vadd.f32 %v2223, %v2311
      %2313 = vmatmul.bf16.gmra.mxu0 %v2070
      %v2314 = vpop.f32.mrf.mxu0
      %v2315 = vadd.f32 %v2226, %v2314
      %v2316 = vpop.f32.mrf.mxu0
      %v2317 = vadd.f32 %v2228, %v2316
      %2318 = vmatmul.bf16.gmra.mxu0 %v2073
      %v2319 = vpop.f32.mrf.mxu0
      %v2320 = vadd.f32 %v2231, %v2319
      %v2321 = vpop.f32.mrf.mxu0
      %v2322 = vadd.f32 %v2233, %v2321
      %2323 = vmatmul.bf16.gmra.mxu0 %v2076
      %v2324 = vpop.f32.mrf.mxu0
      %v2325 = vadd.f32 %v2236, %v2324
      %v2326 = vpop.f32.mrf.mxu0
      %v2327 = vadd.f32 %v2238, %v2326
      %2328 = vmatmul.bf16.gmra.mxu0 %v2079
      %v2329 = vpop.f32.mrf.mxu0
      %v2330 = vadd.f32 %v2241, %v2329
      %v2331 = vpop.f32.mrf.mxu0
      %v2332 = vadd.f32 %v2243, %v2331
      %2333 = vmatmul.bf16.gmra.mxu0 %v2082
      %v2334 = vpop.f32.mrf.mxu0
      %v2335 = vadd.f32 %v2246, %v2334
      %v2336 = vpop.f32.mrf.mxu0
      %v2337 = vadd.f32 %v2248, %v2336
      %2338 = vmatmul.bf16.gmra.mxu0 %v2085
      %v2339 = vpop.f32.mrf.mxu0
      %v2340 = vadd.f32 %v2251, %v2339
      %v2341 = vpop.f32.mrf.mxu0
      %v2342 = vadd.f32 %v2253, %v2341
      %2343 = vmatmul.bf16.gmra.mxu0 %v2088
      %v2344 = vpop.f32.mrf.mxu0
      %v2345 = vadd.f32 %v2256, %v2344
      %v2346 = vpop.f32.mrf.mxu0
      %v2347 = vadd.f32 %v2258, %v2346
      %2348 = vmatmul.bf16.gmra.mxu0 %v2091
      %v2349 = vpop.f32.mrf.mxu0
      %v2350 = vadd.f32 %v2261, %v2349
      %v2351 = vpop.f32.mrf.mxu0
      %v2352 = vadd.f32 %v2263, %v2351
      %2353 = vmatmul.bf16.gmra.mxu0 %v2094
      %v2354 = vpop.f32.mrf.mxu0
      %v2355 = vadd.f32 %v2266, %v2354
      %v2356 = vpop.f32.mrf.mxu0
      %v2357 = vadd.f32 %v2268, %v2356
      %2358 = vmatmul.bf16.gmra.mxu0 %v2097
      %v2359 = vpop.f32.mrf.mxu0
      %v2360 = vadd.f32 %v2271, %v2359
      %v2361 = vpop.f32.mrf.mxu0
      %v2362 = vadd.f32 %v2273, %v2361
      %2363 = vmatmul.bf16.gmra.mxu0 %v2100
      %v2364 = vpop.f32.mrf.mxu0
      %v2365 = vadd.f32 %v2276, %v2364
      %v2366 = vpop.f32.mrf.mxu0
      %v2367 = vadd.f32 %v2278, %v2366
      %2368 = vdwg.mxu0
      %2369 = vst.msk [vmem:[%s204] sm:$0xff] %vm1667, %v2290
      %2370 = vst.msk [vmem:[%s204 + $0x8] sm:$0xff] %vm1667, %v2292
      %2371 = vst.msk [vmem:[%s204 + $0x10] sm:$0xff] %vm1667, %v2295
      %2372 = vst.msk [vmem:[%s204 + $0x18] sm:$0xff] %vm1667, %v2297
      %2373 = vst.msk [vmem:[%s204 + $0x20] sm:$0xff] %vm1667, %v2300
      %2374 = vst.msk [vmem:[%s204 + $0x28] sm:$0xff] %vm1667, %v2302
      %2375 = vst.msk [vmem:[%s204 + $0x30] sm:$0xff] %vm1667, %v2305
      %2376 = vst.msk [vmem:[%s204 + $0x38] sm:$0xff] %vm1667, %v2307
      %2377 = vst.msk [vmem:[%s204 + $0x40] sm:$0xff] %vm1667, %v2310
      %2378 = vst.msk [vmem:[%s204 + $0x48] sm:$0xff] %vm1667, %v2312
      %2379 = vst.msk [vmem:[%s204 + $0x50] sm:$0xff] %vm1667, %v2315
      %2380 = vst.msk [vmem:[%s204 + $0x58] sm:$0xff] %vm1667, %v2317
      %2381 = vst.msk [vmem:[%s204 + $0x60] sm:$0xff] %vm1667, %v2320
      %2382 = vst.msk [vmem:[%s204 + $0x68] sm:$0xff] %vm1667, %v2322
      %2383 = vst.msk [vmem:[%s204 + $0x70] sm:$0xff] %vm1667, %v2325
      %2384 = vst.msk [vmem:[%s204 + $0x78] sm:$0xff] %vm1667, %v2327
      %2385 = vst.msk [vmem:[%s204 + $0x80] sm:$0xff] %vm1667, %v2330
      %2386 = vst.msk [vmem:[%s204 + $0x88] sm:$0xff] %vm1667, %v2332
      %2387 = vst.msk [vmem:[%s204 + $0x90] sm:$0xff] %vm1667, %v2335
      %2388 = vst.msk [vmem:[%s204 + $0x98] sm:$0xff] %vm1667, %v2337
      %2389 = vst.msk [vmem:[%s204 + $0xa0] sm:$0xff] %vm1667, %v2340
      %2390 = vst.msk [vmem:[%s204 + $0xa8] sm:$0xff] %vm1667, %v2342
      %2391 = vst.msk [vmem:[%s204 + $0xb0] sm:$0xff] %vm1667, %v2345
      %2392 = vst.msk [vmem:[%s204 + $0xb8] sm:$0xff] %vm1667, %v2347
      %2393 = vst.msk [vmem:[%s204 + $0xc0] sm:$0xff] %vm1667, %v2350
      %2394 = vst.msk [vmem:[%s204 + $0xc8] sm:$0xff] %vm1667, %v2352
      %2395 = vst.msk [vmem:[%s204 + $0xd0] sm:$0xff] %vm1667, %v2355
      %2396 = vst.msk [vmem:[%s204 + $0xd8] sm:$0xff] %vm1667, %v2357
      %2397 = vst.msk [vmem:[%s204 + $0xe0] sm:$0xff] %vm1667, %v2360
      %2398 = vst.msk [vmem:[%s204 + $0xe8] sm:$0xff] %vm1667, %v2362
      %2399 = vst.msk [vmem:[%s204 + $0xf0] sm:$0xff] %vm1667, %v2365
      %2400 = vst.msk [vmem:[%s204 + $0xf8] sm:$0xff] %vm1667, %v2367
      %v2401 = vsel %vm1667, %v2290, 0.0
      %v2402 = vsel %vm1667, %v2292, 0.0
      %v2403 = vadd.f32 %v2401, %v2402
      %v2404 = vsel %vm1667, %v2295, 0.0
      %v2405 = vadd.f32 %v2403, %v2404
      %v2406 = vsel %vm1667, %v2297, 0.0
      %v2407 = vadd.f32 %v2405, %v2406
      %v2408 = vsel %vm1667, %v2300, 0.0
      %v2409 = vadd.f32 %v2407, %v2408
      %v2410 = vsel %vm1667, %v2302, 0.0
      %v2411 = vadd.f32 %v2409, %v2410
      %v2412 = vsel %vm1667, %v2305, 0.0
      %v2413 = vadd.f32 %v2411, %v2412
      %v2414 = vsel %vm1667, %v2307, 0.0
      %v2415 = vadd.f32 %v2413, %v2414
      %v2416 = vsel %vm1667, %v2310, 0.0
      %v2417 = vadd.f32 %v2415, %v2416
      %v2418 = vsel %vm1667, %v2312, 0.0
      %v2419 = vadd.f32 %v2417, %v2418
      %v2420 = vsel %vm1667, %v2315, 0.0
      %v2421 = vadd.f32 %v2419, %v2420
      %v2422 = vsel %vm1667, %v2317, 0.0
      %v2423 = vadd.f32 %v2421, %v2422
      %v2424 = vsel %vm1667, %v2320, 0.0
      %v2425 = vadd.f32 %v2423, %v2424
      %v2426 = vsel %vm1667, %v2322, 0.0
      %v2427 = vadd.f32 %v2425, %v2426
      %v2428 = vsel %vm1667, %v2325, 0.0
      %v2429 = vadd.f32 %v2427, %v2428
      %v2430 = vsel %vm1667, %v2327, 0.0
      %v2431 = vadd.f32 %v2429, %v2430
      %v2432 = vsel %vm1667, %v2330, 0.0
      %v2433 = vadd.f32 %v2431, %v2432
      %v2434 = vsel %vm1667, %v2332, 0.0
      %v2435 = vadd.f32 %v2433, %v2434
      %v2436 = vsel %vm1667, %v2335, 0.0
      %v2437 = vadd.f32 %v2435, %v2436
      %v2438 = vsel %vm1667, %v2337, 0.0
      %v2439 = vadd.f32 %v2437, %v2438
      %v2440 = vsel %vm1667, %v2340, 0.0
      %v2441 = vadd.f32 %v2439, %v2440
      %v2442 = vsel %vm1667, %v2342, 0.0
      %v2443 = vadd.f32 %v2441, %v2442
      %v2444 = vsel %vm1667, %v2345, 0.0
      %v2445 = vadd.f32 %v2443, %v2444
      %v2446 = vsel %vm1667, %v2347, 0.0
      %v2447 = vadd.f32 %v2445, %v2446
      %v2448 = vsel %vm1667, %v2350, 0.0
      %v2449 = vadd.f32 %v2447, %v2448
      %v2450 = vsel %vm1667, %v2352, 0.0
      %v2451 = vadd.f32 %v2449, %v2450
      %v2452 = vsel %vm1667, %v2355, 0.0
      %v2453 = vadd.f32 %v2451, %v2452
      %v2454 = vsel %vm1667, %v2357, 0.0
      %v2455 = vadd.f32 %v2453, %v2454
      %v2456 = vsel %vm1667, %v2360, 0.0
      %v2457 = vadd.f32 %v2455, %v2456
      %v2458 = vsel %vm1667, %v2362, 0.0
      %v2459 = vadd.f32 %v2457, %v2458
      %v2460 = vsel %vm1667, %v2365, 0.0
      %v2461 = vadd.f32 %v2459, %v2460
      %v2462 = vsel %vm1667, %v2367, 0.0
      %v2463 = vadd.f32 %v2461, %v2462
      %v2464 = vrot.slane %v2463, 4
      %v2465 = vadd.f32 %v2463, %v2464
      %v2466 = vrot.slane %v2465, 2
      %v2467 = vadd.f32 %v2465, %v2466
      %v2468 = vrot.slane %v2467, 1
      %v2469 = vadd.f32 %v2467, %v2468
      %v2470 = vmul.f32 %v2290, %v2290
      %v2471 = vmul.f32 %v2292, %v2292
      %v2472 = vmul.f32 %v2295, %v2295
      %v2473 = vmul.f32 %v2297, %v2297
      %v2474 = vmul.f32 %v2300, %v2300
      %v2475 = vmul.f32 %v2302, %v2302
      %v2476 = vmul.f32 %v2305, %v2305
      %v2477 = vmul.f32 %v2307, %v2307
      %v2478 = vmul.f32 %v2310, %v2310
      %v2479 = vmul.f32 %v2312, %v2312
      %v2480 = vmul.f32 %v2315, %v2315
      %v2481 = vmul.f32 %v2317, %v2317
      %v2482 = vmul.f32 %v2320, %v2320
      %v2483 = vmul.f32 %v2322, %v2322
      %v2484 = vmul.f32 %v2325, %v2325
      %v2485 = vmul.f32 %v2327, %v2327
      %v2486 = vmul.f32 %v2330, %v2330
      %v2487 = vmul.f32 %v2332, %v2332
      %v2488 = vmul.f32 %v2335, %v2335
      %v2489 = vmul.f32 %v2337, %v2337
      %v2490 = vmul.f32 %v2340, %v2340
      %v2491 = vmul.f32 %v2342, %v2342
      %v2492 = vmul.f32 %v2345, %v2345
      %v2493 = vmul.f32 %v2347, %v2347
      %v2494 = vmul.f32 %v2350, %v2350
      %v2495 = vmul.f32 %v2352, %v2352
      %v2496 = vmul.f32 %v2355, %v2355
      %v2497 = vmul.f32 %v2357, %v2357
      %v2498 = vmul.f32 %v2360, %v2360
      %v2499 = vmul.f32 %v2362, %v2362
      %v2500 = vmul.f32 %v2365, %v2365
      %v2501 = vmul.f32 %v2367, %v2367
      %v2502 = vsel %vm1667, %v2470, 0.0
      %v2503 = vsel %vm1667, %v2471, 0.0
      %v2504 = vadd.f32 %v2502, %v2503
      %v2505 = vsel %vm1667, %v2472, 0.0
      %v2506 = vadd.f32 %v2504, %v2505
      %v2507 = vsel %vm1667, %v2473, 0.0
      %v2508 = vadd.f32 %v2506, %v2507
      %v2509 = vsel %vm1667, %v2474, 0.0
      %v2510 = vadd.f32 %v2508, %v2509
      %v2511 = vsel %vm1667, %v2475, 0.0
      %v2512 = vadd.f32 %v2510, %v2511
      %v2513 = vsel %vm1667, %v2476, 0.0
      %v2514 = vadd.f32 %v2512, %v2513
      %v2515 = vsel %vm1667, %v2477, 0.0
      %v2516 = vadd.f32 %v2514, %v2515
      %v2517 = vsel %vm1667, %v2478, 0.0
      %v2518 = vadd.f32 %v2516, %v2517
      %v2519 = vsel %vm1667, %v2479, 0.0
      %v2520 = vadd.f32 %v2518, %v2519
      %v2521 = vsel %vm1667, %v2480, 0.0
      %v2522 = vadd.f32 %v2520, %v2521
      %v2523 = vsel %vm1667, %v2481, 0.0
      %v2524 = vadd.f32 %v2522, %v2523
      %v2525 = vsel %vm1667, %v2482, 0.0
      %v2526 = vadd.f32 %v2524, %v2525
      %v2527 = vsel %vm1667, %v2483, 0.0
      %v2528 = vadd.f32 %v2526, %v2527
      %v2529 = vsel %vm1667, %v2484, 0.0
      %v2530 = vadd.f32 %v2528, %v2529
      %v2531 = vsel %vm1667, %v2485, 0.0
      %v2532 = vadd.f32 %v2530, %v2531
      %v2533 = vsel %vm1667, %v2486, 0.0
      %v2534 = vadd.f32 %v2532, %v2533
      %v2535 = vsel %vm1667, %v2487, 0.0
      %v2536 = vadd.f32 %v2534, %v2535
      %v2537 = vsel %vm1667, %v2488, 0.0
      %v2538 = vadd.f32 %v2536, %v2537
      %v2539 = vsel %vm1667, %v2489, 0.0
      %v2540 = vadd.f32 %v2538, %v2539
      %v2541 = vsel %vm1667, %v2490, 0.0
      %v2542 = vadd.f32 %v2540, %v2541
      %v2543 = vsel %vm1667, %v2491, 0.0
      %v2544 = vadd.f32 %v2542, %v2543
      %v2545 = vsel %vm1667, %v2492, 0.0
      %v2546 = vadd.f32 %v2544, %v2545
      %v2547 = vsel %vm1667, %v2493, 0.0
      %v2548 = vadd.f32 %v2546, %v2547
      %v2549 = vsel %vm1667, %v2494, 0.0
      %v2550 = vadd.f32 %v2548, %v2549
      %v2551 = vsel %vm1667, %v2495, 0.0
      %v2552 = vadd.f32 %v2550, %v2551
      %v2553 = vsel %vm1667, %v2496, 0.0
      %v2554 = vadd.f32 %v2552, %v2553
      %v2555 = vsel %vm1667, %v2497, 0.0
      %v2556 = vadd.f32 %v2554, %v2555
      %v2557 = vsel %vm1667, %v2498, 0.0
      %v2558 = vadd.f32 %v2556, %v2557
      %v2559 = vsel %vm1667, %v2499, 0.0
      %v2560 = vadd.f32 %v2558, %v2559
      %v2561 = vsel %vm1667, %v2500, 0.0
      %v2562 = vadd.f32 %v2560, %v2561
      %v2563 = vsel %vm1667, %v2501, 0.0
      %v2564 = vadd.f32 %v2562, %v2563
      %v2565 = vrot.slane %v2564, 4
      %v2566 = vadd.f32 %v2564, %v2565
      %v2567 = vrot.slane %v2566, 2
      %v2568 = vadd.f32 %v2566, %v2567
      %v2569 = vrot.slane %v2568, 1
      %v2570 = vadd.f32 %v2568, %v2569
      %vm2571 = vcmask 1040384
      %v2572 = vsel %vm2571, %v2469, %v2570
      %vm2573 = vcmask 254976
      %2574 = vst.msk [vmem:[%s211] sm:$0x3] %vm2573, %v2572
      %p2575 = scmp.lt.s32.totalorder %s19, 1
      %s2576 = scalar_select %p2575, %s19, 1
      %p2577 = scmp.lt.s32.totalorder %s20, 0
      %s2578 = scalar_select %p2577, %s20, 0
      %s2579 = smul.addr %s2578, 32
      %s2580 = smul.addr %s2576, 32
      %s2581 = sadd.s32 %s2579, %s2580
      %s2582 = smul.addr %s2581, 8
      %s2583 = scalar_lea.vmem %s2, %s2582
      %p2584 = scmp.lt.s32.totalorder %s19, 1
      %s2585 = scalar_select %p2584, %s19, 1
      %p2586 = scmp.lt.s32.totalorder %s20, 0
      %s2587 = scalar_select %p2586, %s20, 0
      %s2588 = sadd.s32 %s2587, %s2585
      %s2589 = smul.addr %s2588, 2
      %s2590 = scalar_lea.vmem %s3, %s2589
      // Predicated region
      $region29: #{inconv_forward.6} parent=27 // pred_check
        %p2591 = pneg %p94
      $region30: #{inconv_forward.6} parent=27 // pred_check_branch
        %2593 = sbr.rel (%p2591) target = $region32
      $region31: #{inconv_forward.6} parent=27 // pred_region
        _
      $region32: #{inconv_forward.6} parent=27 // pred_fallthru
        _
      // Predicated region
      $region33: #{inconv_forward.6} parent=27 // pred_check
        %p2594 = pneg %p122
      $region34: #{inconv_forward.6} parent=27 // pred_check_branch
        %2596 = sbr.rel (%p2594) target = $region36
      $region35: #{inconv_forward.6} parent=27 // pred_region
        _
      $region36: #{inconv_forward.6} parent=27 // pred_fallthru
        _
    $region28: #{inconv_forward.6} parent=5 // pred_fallthru
      _
    %p2597 = scmp.le.s32.totalorder 2, %s10
    // Predicated region
    $region37: #{inconv_forward.6} parent=5 // pred_check
      %p2598 = pneg %p2597
    $region38: #{inconv_forward.6} parent=5 // pred_check_branch
      %2600 = sbr.rel (%p2598) target = $region40
    $region39: #{inconv_forward.6} parent=5 // pred_region
      %s2601 = ssub.s32 %s10, 2
      // Predicated region
      $region41: #{inconv_forward.6} parent=39 // pred_check
        %p2602 = pneg %p100
      $region42: #{inconv_forward.6} parent=39 // pred_check_branch
        %2604 = sbr.rel (%p2602) target = $region44
      $region43: #{inconv_forward.6} parent=39 // pred_region
        %p2605 = scmp.lt.s32.totalorder %s21, 1
        %s2606 = scalar_select %p2605, %s21, 1
        %p2607 = scmp.lt.s32.totalorder %s22, 0
        %s2608 = scalar_select %p2607, %s22, 0
        %s2609 = smul.addr %s2608, 32
        %s2610 = smul.addr %s2606, 32
        %s2611 = sadd.s32 %s2609, %s2610
        %s2612 = smul.addr %s2611, 8
        %s2613 = scalar_lea.vmem %s2, %s2612
      $region44: #{inconv_forward.6} parent=39 // pred_fallthru
        _
      // Predicated region
      $region45: #{inconv_forward.6} parent=39 // pred_check
        %p2614 = pneg %p128
      $region46: #{inconv_forward.6} parent=39 // pred_check_branch
        %2616 = sbr.rel (%p2614) target = $region48
      $region47: #{inconv_forward.6} parent=39 // pred_region
        %p2617 = scmp.lt.s32.totalorder %s21, 1
        %s2618 = scalar_select %p2617, %s21, 1
        %p2619 = scmp.lt.s32.totalorder %s22, 0
        %s2620 = scalar_select %p2619, %s22, 0
        %s2621 = sadd.s32 %s2620, %s2618
        %s2622 = smul.addr %s2621, 2
        %s2623 = scalar_lea.vmem %s3, %s2622
      $region48: #{inconv_forward.6} parent=39 // pred_fallthru
        _
    $region40: #{inconv_forward.6} parent=5 // pred_fallthru
      _
  $region6: #{inconv_forward.6} parent=0 // loop_footer
    %s14 = sadd.s32 1, %s10
  $region7: #{inconv_forward.6} parent=0 // loop_footer_branch
    %9 = sbr.rel target = $region3
  $region8: #{inconv_forward.6} parent=0 // loop_exit
    _

</llo_original>
